<compile_context>
chip_gen: v5e
topology: v5e:2x2
jax: 0.10.0
libtpu: 0.0.40
codegen_flags: <defaults>
</compile_context>

<pallas_src>
import functools

import jax
import jax.numpy as jnp
from jax.experimental import pallas as pl
from jax.experimental.pallas import tpu as pltpu


def attn_lora_kernel(*refs, num_heads, head_dim, batch_block, epsilon,
                     compute_dtype, has_multipliers, approx_recip):
    if has_multipliers:
        (x_ref, mult_ref, wqkv_ref, bqkv_ref, wol_ref, bout_ref, o_ref) = refs
    else:
        (x_ref, wqkv_ref, bqkv_ref, wol_ref, bout_ref, o_ref) = refs
        mult_ref = None

    Bb = batch_block
    H = num_heads
    hd = head_dim
    S = x_ref.shape[1]
    D = x_ref.shape[2]
    N = Bb * H

    # ---- fused qkv projection: one lane-dense (Bb*S, D) @ (D, 3D) matmul ----
    # (1/sqrt(hd) already folded into the q columns / q bias by the wrapper)
    x2 = x_ref[...].reshape(Bb * S, D)              # collapse leading dims
    qkv = jnp.dot(x2, wqkv_ref[...],
                  preferred_element_type=jnp.float32) + bqkv_ref[...]
    qkv = qkv.astype(compute_dtype)                 # (Bb*S, 3D)

    # ---- per-(batch, head) q/k/v tiles for the attention matmuls ----------
    qs, ks, vs = [], [], []
    for b in range(Bb):
        r0 = b * S
        for h in range(H):
            c0 = h * hd
            qs.append(qkv[r0:r0 + S, c0:c0 + hd])
            ks.append(qkv[r0:r0 + S, D + c0:D + c0 + hd])
            vs.append(qkv[r0:r0 + S, 2 * D + c0:2 * D + c0 + hd])
    q = jnp.stack(qs, axis=0)                       # (N, S, hd)
    k = jnp.stack(ks, axis=0)
    v = jnp.stack(vs, axis=0)

    # ---- scores + fused softmax / multiplier renormalization (f32) --------
    s = jnp.einsum("nqc,nkc->nqk", q, k,
                   preferred_element_type=jnp.float32)        # (N, S, S)
    m = jnp.max(s, axis=-1, keepdims=True)
    e = jnp.exp(s - m)
    if has_multipliers:
        mult = mult_ref[...]                                  # (Bb, S, S) f32
        if Bb == 1:
            mult_n = mult                                     # broadcasts over N
        else:
            mult_n = jnp.concatenate(
                [jnp.broadcast_to(mult[b], (H, S, S)) for b in range(Bb)],
                axis=0)
        p = e * mult_n
        # softmax -> *mult -> renorm(+eps) folded into one denominator:
        #   attn = e*mult / (sum(e*mult) + eps*sum(e))   (identical algebra)
        denom = (jnp.sum(p, axis=-1, keepdims=True)
                 + epsilon * jnp.sum(e, axis=-1, keepdims=True))
    else:
        p = e
        denom = jnp.sum(e, axis=-1, keepdims=True)

    # ---- unnormalized context, then deferred normalization on (N, S, hd) --
    ctx_un = jnp.einsum("nqk,nkc->nqc", p.astype(compute_dtype), v,
                        preferred_element_type=jnp.float32)   # (N, S, hd) f32
    inv = pl.reciprocal(denom, approx=approx_recip)           # (N, S, 1)
    ctx = (ctx_un * inv).astype(compute_dtype)

    # ---- merge heads + fuse LoRA input: cat = [ctx_merged | x] ------------
    rows = []
    for b in range(Bb):
        pieces = [ctx[b * H + h] for h in range(H)]           # H x (S, hd)
        pieces.append(x2[b * S:(b + 1) * S, :])               # (S, D)
        rows.append(jnp.concatenate(pieces, axis=-1))         # (S, 2D)
    cat = rows[0] if Bb == 1 else jnp.concatenate(rows, axis=0)  # (Bb*S, 2D)

    # ---- single fused output+LoRA matmul: (Bb*S, 2D) @ (2D, D) ------------
    out = jnp.dot(cat, wol_ref[...],
                  preferred_element_type=jnp.float32) + bout_ref[...]
    o_ref[...] = out.reshape(Bb, S, D).astype(o_ref.dtype)


def _largest_divisor_at_most(n, cap):
    cap = max(1, min(n, cap))
    for d in range(cap, 0, -1):
        if n % d == 0:
            return d
    return 1


def attention_block_with_lora(x, multipliers, params, *, num_heads, lora_alpha,
                              epsilon=1e-15, compute_dtype=jnp.bfloat16,
                              batch_block=None, vmem_limit_bytes=None,
                              single_buffer_weights=True):
    """x: [B, S, D]. multipliers: [B, S, S] or None. Returns [B, S, D] in x.dtype.

    compute_dtype=jnp.bfloat16 -> fast MXU path (f32 accumulation, approx EUP
    reciprocal). compute_dtype=jnp.float32 -> exact path.
    """
    B, S, D = x.shape
    H = num_heads
    hd = D // H
    out_dtype = x.dtype
    f32 = jnp.float32
    has_mult = multipliers is not None
    approx_recip = compute_dtype != jnp.float32

    if batch_block is None:
        # Amortize per-grid-step overhead (target ~256 projection rows) while
        # keeping >= 2 grid steps when B allows (v7x has 2 TensorCores).
        rows_target = max(1, 256 // max(S, 1))
        cap = max(1, B // 2)
        batch_block = _largest_divisor_at_most(B, min(rows_target, cap))
    assert B % batch_block == 0, "batch_block must divide the batch size"

    # ---- parameter preparation (done once, outside the kernel) -------------
    w_in = params["w_in"].astype(f32)                  # (3D, D), rows p*D+h*hd+c
    b_in = params["b_in"].astype(f32)                  # (3D,)
    precond = 1.0 / (hd ** 0.5)
    scale = jnp.concatenate(
        [jnp.full((D,), precond, f32), jnp.ones((2 * D,), f32)], axis=0)
    w_qkv = (w_in.T * scale[None, :]).astype(compute_dtype)   # (D, 3D)
    b_qkv = (b_in * scale).reshape(1, 3 * D)                   # f32

    # fused output weight: [W_out^T ; alpha * A @ B]  -> (2D, D)
    ab = lora_alpha * (params["A"].astype(f32) @ params["B"].astype(f32))
    w_out_lora = jnp.concatenate(
        [params["w_out"].astype(f32).T, ab], axis=0).astype(compute_dtype)
    b_out = params["b_out"].astype(f32).reshape(1, D)

    x_c = x.astype(compute_dtype)

    args = [x_c]
    if has_mult:
        args.append(multipliers.astype(f32))   # kept f32: consumed by f32 VPU mul
    args += [w_qkv, b_qkv, w_out_lora, b_out]

    kernel = functools.partial(
        attn_lora_kernel, num_heads=H, head_dim=hd, batch_block=batch_block,
        epsilon=epsilon, compute_dtype=compute_dtype,
        has_multipliers=has_mult, approx_recip=approx_recip)

    comp_bytes = jnp.dtype(compute_dtype).itemsize
    flops = B * (10 * S * D * D + 4 * S * S * D)
    transcendentals = B * H * S * S
    bytes_accessed = (B * S * D * comp_bytes
                      + (B * S * S * 4 if has_mult else 0)
                      + B * S * D * jnp.dtype(out_dtype).itemsize
                      + 5 * D * D * comp_bytes + 4 * D * 4)

    def _const_spec(shape, single_buffer):
        ndim = len(shape)
        if single_buffer:
            # Weights are grid-invariant: single buffer saves VMEM.
            return pl.BlockSpec(shape, lambda i: (0,) * ndim,
                                pipeline_mode=pl.Buffered(1))
        return pl.BlockSpec(shape, lambda i: (0,) * ndim)

    def _build(single_buffer):
        in_specs = [pl.BlockSpec((batch_block, S, D), lambda i: (i, 0, 0))]
        if has_mult:
            in_specs.append(
                pl.BlockSpec((batch_block, S, S), lambda i: (i, 0, 0)))
        in_specs += [
            _const_spec((D, 3 * D), single_buffer),   # w_qkv (q cols pre-scaled)
            _const_spec((1, 3 * D), single_buffer),   # b_qkv
            _const_spec((2 * D, D), single_buffer),   # [W_out^T ; alpha*A@B]
            _const_spec((1, D), single_buffer),       # b_out
        ]
        grid_spec = pltpu.PrefetchScalarGridSpec(
            num_scalar_prefetch=0,
            grid=(B // batch_block,),
            in_specs=in_specs,
            out_specs=pl.BlockSpec((batch_block, S, D), lambda i: (i, 0, 0)))
        return pl.pallas_call(
            kernel,
            out_shape=jax.ShapeDtypeStruct((B, S, D), out_dtype),
            grid_spec=grid_spec,
            cost_estimate=pl.CostEstimate(flops=flops,
                                          transcendentals=transcendentals,
                                          bytes_accessed=bytes_accessed),
            compiler_params=pltpu.CompilerParams(
                dimension_semantics=("parallel",),
                vmem_limit_bytes=vmem_limit_bytes),
        )

    if single_buffer_weights:
        try:
            return _build(True)(*args)
        except Exception:
            # pl.Buffered(1) not accepted by this jax version -> fall back to
            # default double-buffered weight specs (weights are tiny here).
            pass
    return _build(False)(*args)


# ---------------- pure-JAX reference (mirrors the PyTorch forward) ----------
def reference_forward(x, multipliers, params, *, num_heads, lora_alpha,
                      epsilon=1e-15):
    B, S, D = x.shape
    hd = D // num_heads
    qkv = x @ params["w_in"].T + params["b_in"]                  # (B,S,3D)
    qkv = qkv.reshape(B, S, 3, num_heads, hd).transpose(2, 0, 3, 1, 4)
    q, k, v = qkv[0], qkv[1], qkv[2]                             # (B,H,S,hd)
    attn = jnp.einsum("bhqd,bhkd->bhqk", q, k) / (hd ** 0.5)
    attn = jax.nn.softmax(attn, axis=-1)
    if multipliers is not None:
        attn = attn * multipliers[:, None, :, :]
        attn = attn / (attn.sum(-1, keepdims=True) + epsilon)
    ctx = jnp.einsum("bhqk,bhkd->bhqd", attn, v)                 # (B,H,S,hd)
    ctx = ctx.transpose(0, 2, 1, 3).reshape(B, S, D)
    attn_out = ctx @ params["w_out"].T + params["b_out"]
    lora = x @ params["A"] @ params["B"]
    return attn_out + lora_alpha * lora


if __name__ == "__main__":
    # Small but lane-dense config: B=2, S=32, hidden D=128, 4 heads
    # (head_dim=32), LoRA rank 4, alpha 0.5.
    B, S, D, H, R = 2, 32, 128, 4, 4
    ALPHA = 0.5

    key = jax.random.PRNGKey(0)
    keys = jax.random.split(key, 8)

    x = jax.random.normal(keys[0], (B, S, D), dtype=jnp.float32)
    multipliers = jax.random.uniform(keys[1], (B, S, S), dtype=jnp.float32,
                                     minval=0.1, maxval=1.0)

    # Deterministic synthetic parameters (module init zeros LoRA A; we use a
    # small random A so the LoRA path is actually exercised).
    params = {
        "w_in": jax.random.normal(keys[2], (3 * D, D), jnp.float32) * 0.1,
        "b_in": jax.random.normal(keys[3], (3 * D,), jnp.float32) * 0.01,
        "w_out": jax.random.normal(keys[4], (D, D), jnp.float32) * 0.1,
        "b_out": jax.random.normal(keys[5], (D,), jnp.float32) * 0.01,
        "A": jax.random.normal(keys[6], (D, R), jnp.float32) * 0.1,
        "B": jax.random.normal(keys[7], (R, D), jnp.float32) * 0.1,
    }

    ref_mult = reference_forward(x, multipliers, params,
                                 num_heads=H, lora_alpha=ALPHA)
    ref_none = reference_forward(x, None, params,
                                 num_heads=H, lora_alpha=ALPHA)

    # 1) exact f32 path, with multipliers
    out_f32 = attention_block_with_lora(x, multipliers, params, num_heads=H,
                                        lora_alpha=ALPHA,
                                        compute_dtype=jnp.float32)
    out_f32 = jax.block_until_ready(out_f32)
    assert out_f32.shape == (B, S, D)
    assert jnp.allclose(out_f32, ref_mult, atol=1e-4, rtol=1e-4), (
        f"f32+mult max abs err = {jnp.max(jnp.abs(out_f32 - ref_mult))}")

    # 2) exact f32 path, multipliers=None (specialized kernel: no ones tensor)
    out_f32_n = attention_block_with_lora(x, None, params, num_heads=H,
                                          lora_alpha=ALPHA,
                                          compute_dtype=jnp.float32)
    out_f32_n = jax.block_until_ready(out_f32_n)
    assert jnp.allclose(out_f32_n, ref_none, atol=1e-4, rtol=1e-4), (
        f"f32 no-mult max abs err = {jnp.max(jnp.abs(out_f32_n - ref_none))}")

    # 3) fast bf16 MXU path (f32 accumulation) — bf16-appropriate tolerance
    out_bf16 = attention_block_with_lora(x, multipliers, params, num_heads=H,
                                         lora_alpha=ALPHA,
                                         compute_dtype=jnp.bfloat16)
    out_bf16 = jax.block_until_ready(out_bf16)
    assert jnp.allclose(out_bf16, ref_mult, atol=1e-1, rtol=1e-1), (
        f"bf16 max abs err = {jnp.max(jnp.abs(out_bf16 - ref_mult))}")

    print("KERNEL_OK")
</pallas_src>

<mosaic_0001>
module attributes {stable_mosaic.version = 11 : i64} {
  func.func @attn_lora_kernel(%arg0: i32, %arg1: memref<1x32x128xf32, #tpu.memory_space<vmem>>, %arg2: memref<1x32x32xf32, #tpu.memory_space<vmem>>, %arg3: memref<128x384xf32, #tpu.memory_space<vmem>>, %arg4: memref<1x384xf32, #tpu.memory_space<vmem>>, %arg5: memref<256x128xf32, #tpu.memory_space<vmem>>, %arg6: memref<1x128xf32, #tpu.memory_space<vmem>>, %arg7: memref<1x32x128xf32, #tpu.memory_space<vmem>>) attributes {dimension_semantics = [#tpu.dimension_semantics<parallel>], iteration_bounds = array<i64: 2>, scalar_prefetch = 0 : i64, scratch_operands = 0 : i64, tpu.core_type = #tpu.core_type<tc>, window_params = [{transform_indices = @transform_0, window_bounds = array<i64: 1, 32, 128>}, {transform_indices = @transform_1, window_bounds = array<i64: 1, 32, 32>}, {pipeline_mode = #tpu.pipeline_mode<synchronous>, transform_indices = @transform_2, window_bounds = array<i64: 128, 384>}, {pipeline_mode = #tpu.pipeline_mode<synchronous>, transform_indices = @transform_3, window_bounds = array<i64: 1, 384>}, {pipeline_mode = #tpu.pipeline_mode<synchronous>, transform_indices = @transform_4, window_bounds = array<i64: 256, 128>}, {pipeline_mode = #tpu.pipeline_mode<synchronous>, transform_indices = @transform_5, window_bounds = array<i64: 1, 128>}, {transform_indices = @transform_6, window_bounds = array<i64: 1, 32, 128>}]} {
    %c0 = arith.constant 0 : index
    %c0_0 = arith.constant 0 : index
    %c0_1 = arith.constant 0 : index
    %0 = vector.load %arg1[%c0, %c0_0, %c0_1] : memref<1x32x128xf32, #tpu.memory_space<vmem>>, vector<1x32x128xf32>
    %1 = vector.shape_cast %0 : vector<1x32x128xf32> to vector<32x128xf32>
    %c0_2 = arith.constant 0 : index
    %c0_3 = arith.constant 0 : index
    %2 = vector.load %arg3[%c0_2, %c0_3] : memref<128x384xf32, #tpu.memory_space<vmem>>, vector<128x384xf32>
    %cst = arith.constant dense<0.000000e+00> : vector<32x384xf32>
    %3 = tpu.matmul %1, %2, %cst {dimension_numbers = #tpu.dot_dimension_numbers<[1], [0], [0], [1], [0, 0, 1, 1], [], []>} : vector<32x128xf32>, vector<128x384xf32>, vector<32x384xf32> -> vector<32x384xf32>
    %c0_4 = arith.constant 0 : index
    %c0_5 = arith.constant 0 : index
    %4 = vector.load %arg4[%c0_4, %c0_5] : memref<1x384xf32, #tpu.memory_space<vmem>>, vector<1x384xf32>
    %5 = vector.broadcast %4 : vector<1x384xf32> to vector<32x384xf32>
    %6 = arith.addf %3, %5 : vector<32x384xf32>
    %7 = vector.extract_strided_slice %6 {offsets = [0, 0], sizes = [32, 32], strides = [1, 1]} : vector<32x384xf32> to vector<32x32xf32>
    %8 = vector.extract_strided_slice %6 {offsets = [0, 128], sizes = [32, 32], strides = [1, 1]} : vector<32x384xf32> to vector<32x32xf32>
    %9 = vector.extract_strided_slice %6 {offsets = [0, 256], sizes = [32, 32], strides = [1, 1]} : vector<32x384xf32> to vector<32x32xf32>
    %10 = vector.extract_strided_slice %6 {offsets = [0, 32], sizes = [32, 32], strides = [1, 1]} : vector<32x384xf32> to vector<32x32xf32>
    %11 = vector.extract_strided_slice %6 {offsets = [0, 160], sizes = [32, 32], strides = [1, 1]} : vector<32x384xf32> to vector<32x32xf32>
    %12 = vector.extract_strided_slice %6 {offsets = [0, 288], sizes = [32, 32], strides = [1, 1]} : vector<32x384xf32> to vector<32x32xf32>
    %13 = vector.extract_strided_slice %6 {offsets = [0, 64], sizes = [32, 32], strides = [1, 1]} : vector<32x384xf32> to vector<32x32xf32>
    %14 = vector.extract_strided_slice %6 {offsets = [0, 192], sizes = [32, 32], strides = [1, 1]} : vector<32x384xf32> to vector<32x32xf32>
    %15 = vector.extract_strided_slice %6 {offsets = [0, 320], sizes = [32, 32], strides = [1, 1]} : vector<32x384xf32> to vector<32x32xf32>
    %16 = vector.extract_strided_slice %6 {offsets = [0, 96], sizes = [32, 32], strides = [1, 1]} : vector<32x384xf32> to vector<32x32xf32>
    %17 = vector.extract_strided_slice %6 {offsets = [0, 224], sizes = [32, 32], strides = [1, 1]} : vector<32x384xf32> to vector<32x32xf32>
    %18 = vector.extract_strided_slice %6 {offsets = [0, 352], sizes = [32, 32], strides = [1, 1]} : vector<32x384xf32> to vector<32x32xf32>
    %19 = vector.shape_cast %7 : vector<32x32xf32> to vector<1x32x32xf32>
    %20 = vector.shape_cast %10 : vector<32x32xf32> to vector<1x32x32xf32>
    %21 = vector.shape_cast %13 : vector<32x32xf32> to vector<1x32x32xf32>
    %22 = vector.shape_cast %16 : vector<32x32xf32> to vector<1x32x32xf32>
    %23 = tpu.concatenate %19, %20, %21, %22 in 0 : vector<1x32x32xf32>, vector<1x32x32xf32>, vector<1x32x32xf32>, vector<1x32x32xf32> -> vector<4x32x32xf32>
    %24 = vector.shape_cast %8 : vector<32x32xf32> to vector<1x32x32xf32>
    %25 = vector.shape_cast %11 : vector<32x32xf32> to vector<1x32x32xf32>
    %26 = vector.shape_cast %14 : vector<32x32xf32> to vector<1x32x32xf32>
    %27 = vector.shape_cast %17 : vector<32x32xf32> to vector<1x32x32xf32>
    %28 = tpu.concatenate %24, %25, %26, %27 in 0 : vector<1x32x32xf32>, vector<1x32x32xf32>, vector<1x32x32xf32>, vector<1x32x32xf32> -> vector<4x32x32xf32>
    %29 = vector.shape_cast %9 : vector<32x32xf32> to vector<1x32x32xf32>
    %30 = vector.shape_cast %12 : vector<32x32xf32> to vector<1x32x32xf32>
    %31 = vector.shape_cast %15 : vector<32x32xf32> to vector<1x32x32xf32>
    %32 = vector.shape_cast %18 : vector<32x32xf32> to vector<1x32x32xf32>
    %33 = tpu.concatenate %29, %30, %31, %32 in 0 : vector<1x32x32xf32>, vector<1x32x32xf32>, vector<1x32x32xf32>, vector<1x32x32xf32> -> vector<4x32x32xf32>
    "tpu.trace_start"() <{level = 10 : i32, message = "nqc,nkc->nqk"}> : () -> ()
    %cst_6 = arith.constant dense<0.000000e+00> : vector<4x32x32xf32>
    %34 = tpu.matmul %23, %28, %cst_6 {dimension_numbers = #tpu.dot_dimension_numbers<[2], [2], [1], [1], [0, 0, 0, 1, 1, 1], [0], [0]>} : vector<4x32x32xf32>, vector<4x32x32xf32>, vector<4x32x32xf32> -> vector<4x32x32xf32>
    "tpu.trace_stop"() : () -> ()
    %cst_7 = arith.constant dense<0xFF800000> : vector<4x32xf32>
    %35 = vector.multi_reduction <maximumf>, %34, %cst_7 [2] : vector<4x32x32xf32> to vector<4x32xf32>
    %36 = vector.shape_cast %35 : vector<4x32xf32> to vector<4x32x1xf32>
    %37 = vector.broadcast %36 : vector<4x32x1xf32> to vector<4x32x32xf32>
    %38 = arith.subf %34, %37 : vector<4x32x32xf32>
    %39 = math.exp %38 : vector<4x32x32xf32>
    %c0_8 = arith.constant 0 : index
    %c0_9 = arith.constant 0 : index
    %c0_10 = arith.constant 0 : index
    %40 = vector.load %arg2[%c0_8, %c0_9, %c0_10] : memref<1x32x32xf32, #tpu.memory_space<vmem>>, vector<1x32x32xf32>
    %41 = vector.broadcast %40 : vector<1x32x32xf32> to vector<4x32x32xf32>
    %42 = arith.mulf %39, %41 : vector<4x32x32xf32>
    %cst_11 = arith.constant dense<0.000000e+00> : vector<4x32xf32>
    %43 = vector.multi_reduction <add>, %42, %cst_11 [2] : vector<4x32x32xf32> to vector<4x32xf32>
    %44 = vector.shape_cast %43 : vector<4x32xf32> to vector<4x32x1xf32>
    %cst_12 = arith.constant dense<0.000000e+00> : vector<4x32xf32>
    %45 = vector.multi_reduction <add>, %39, %cst_12 [2] : vector<4x32x32xf32> to vector<4x32xf32>
    %46 = vector.shape_cast %45 : vector<4x32xf32> to vector<4x32x1xf32>
    %cst_13 = arith.constant 1.000000e-15 : f32
    %47 = vector.broadcast %cst_13 : f32 to vector<4x32x1xf32>
    %48 = arith.mulf %47, %46 : vector<4x32x1xf32>
    %49 = arith.addf %44, %48 : vector<4x32x1xf32>
    "tpu.trace_start"() <{level = 10 : i32, message = "nqk,nkc->nqc"}> : () -> ()
    %cst_14 = arith.constant dense<0.000000e+00> : vector<4x32x32xf32>
    %50 = tpu.matmul %42, %33, %cst_14 {dimension_numbers = #tpu.dot_dimension_numbers<[2], [1], [1], [2], [0, 0, 0, 1, 1, 2], [0], [0]>} : vector<4x32x32xf32>, vector<4x32x32xf32>, vector<4x32x32xf32> -> vector<4x32x32xf32>
    "tpu.trace_stop"() : () -> ()
    %51 = tpu.reciprocal %49 : vector<4x32x1xf32> -> vector<4x32x1xf32>
    %52 = vector.broadcast %51 : vector<4x32x1xf32> to vector<4x32x32xf32>
    %53 = arith.mulf %50, %52 : vector<4x32x32xf32>
    %54 = vector.extract_strided_slice %53 {offsets = [0, 0, 0], sizes = [1, 32, 32], strides = [1, 1, 1]} : vector<4x32x32xf32> to vector<1x32x32xf32>
    %55 = vector.shape_cast %54 : vector<1x32x32xf32> to vector<32x32xf32>
    %56 = vector.extract_strided_slice %53 {offsets = [1, 0, 0], sizes = [1, 32, 32], strides = [1, 1, 1]} : vector<4x32x32xf32> to vector<1x32x32xf32>
    %57 = vector.shape_cast %56 : vector<1x32x32xf32> to vector<32x32xf32>
    %58 = vector.extract_strided_slice %53 {offsets = [2, 0, 0], sizes = [1, 32, 32], strides = [1, 1, 1]} : vector<4x32x32xf32> to vector<1x32x32xf32>
    %59 = vector.shape_cast %58 : vector<1x32x32xf32> to vector<32x32xf32>
    %60 = vector.extract_strided_slice %53 {offsets = [3, 0, 0], sizes = [1, 32, 32], strides = [1, 1, 1]} : vector<4x32x32xf32> to vector<1x32x32xf32>
    %61 = vector.shape_cast %60 : vector<1x32x32xf32> to vector<32x32xf32>
    %62 = tpu.concatenate %55, %57, %59, %61, %1 in 1 : vector<32x32xf32>, vector<32x32xf32>, vector<32x32xf32>, vector<32x32xf32>, vector<32x128xf32> -> vector<32x256xf32>
    %c0_15 = arith.constant 0 : index
    %c0_16 = arith.constant 0 : index
    %63 = vector.load %arg5[%c0_15, %c0_16] : memref<256x128xf32, #tpu.memory_space<vmem>>, vector<256x128xf32>
    %cst_17 = arith.constant dense<0.000000e+00> : vector<32x128xf32>
    %64 = tpu.matmul %62, %63, %cst_17 {dimension_numbers = #tpu.dot_dimension_numbers<[1], [0], [0], [1], [0, 0, 1, 1], [], []>} : vector<32x256xf32>, vector<256x128xf32>, vector<32x128xf32> -> vector<32x128xf32>
    %c0_18 = arith.constant 0 : index
    %c0_19 = arith.constant 0 : index
    %65 = vector.load %arg6[%c0_18, %c0_19] : memref<1x128xf32, #tpu.memory_space<vmem>>, vector<1x128xf32>
    %66 = vector.broadcast %65 : vector<1x128xf32> to vector<32x128xf32>
    %67 = arith.addf %64, %66 : vector<32x128xf32>
    %68 = vector.shape_cast %67 : vector<32x128xf32> to vector<1x32x128xf32>
    %c0_20 = arith.constant 0 : index
    %c0_21 = arith.constant 0 : index
    %c0_22 = arith.constant 0 : index
    %69 = vector.load %arg7[%c0_20, %c0_21, %c0_22] : memref<1x32x128xf32, #tpu.memory_space<vmem>>, vector<1x32x128xf32>
    tpu.vector_store %arg7[%c0_20, %c0_21, %c0_22], %68 {strides = array<i32>} : memref<1x32x128xf32, #tpu.memory_space<vmem>>, vector<1x32x128xf32>,
    return
  }
  func.func @transform_0(%arg0: i32) -> (i32, i32, i32) {
    %c0_i32 = arith.constant 0 : i32
    %c0_i32_0 = arith.constant 0 : i32
    %c0_i32_1 = arith.constant 0 : i32
    return %arg0, %c0_i32, %c0_i32_0 : i32, i32, i32
  }
  func.func @transform_1(%arg0: i32) -> (i32, i32, i32) {
    %c0_i32 = arith.constant 0 : i32
    %c0_i32_0 = arith.constant 0 : i32
    %c0_i32_1 = arith.constant 0 : i32
    return %arg0, %c0_i32, %c0_i32_0 : i32, i32, i32
  }
  func.func @transform_2(%arg0: i32) -> (i32, i32) {
    %c0_i32 = arith.constant 0 : i32
    %c0_i32_0 = arith.constant 0 : i32
    %c0_i32_1 = arith.constant 0 : i32
    return %c0_i32, %c0_i32_0 : i32, i32
  }
  func.func @transform_3(%arg0: i32) -> (i32, i32) {
    %c0_i32 = arith.constant 0 : i32
    %c0_i32_0 = arith.constant 0 : i32
    %c0_i32_1 = arith.constant 0 : i32
    return %c0_i32, %c0_i32_0 : i32, i32
  }
  func.func @transform_4(%arg0: i32) -> (i32, i32) {
    %c0_i32 = arith.constant 0 : i32
    %c0_i32_0 = arith.constant 0 : i32
    %c0_i32_1 = arith.constant 0 : i32
    return %c0_i32, %c0_i32_0 : i32, i32
  }
  func.func @transform_5(%arg0: i32) -> (i32, i32) {
    %c0_i32 = arith.constant 0 : i32
    %c0_i32_0 = arith.constant 0 : i32
    %c0_i32_1 = arith.constant 0 : i32
    return %c0_i32, %c0_i32_0 : i32, i32
  }
  func.func @transform_6(%arg0: i32) -> (i32, i32, i32) {
    %c0_i32 = arith.constant 0 : i32
    %c0_i32_0 = arith.constant 0 : i32
    %c0_i32_1 = arith.constant 0 : i32
    return %arg0, %c0_i32, %c0_i32_0 : i32, i32, i32
  }
}

module attributes {stable_mosaic.version = 11 : i64} {
  func.func @attn_lora_kernel(%arg0: i32, %arg1: memref<1x32x128xf32, #tpu.memory_space<vmem>>, %arg2: memref<1x32x32xf32, #tpu.memory_space<vmem>>, %arg3: memref<128x384xf32, #tpu.memory_space<vmem>>, %arg4: memref<1x384xf32, #tpu.memory_space<vmem>>, %arg5: memref<256x128xf32, #tpu.memory_space<vmem>>, %arg6: memref<1x128xf32, #tpu.memory_space<vmem>>, %arg7: memref<1x32x128xf32, #tpu.memory_space<vmem>>) attributes {dimension_semantics = [#tpu.dimension_semantics<parallel>], iteration_bounds = array<i64: 2>, scalar_prefetch = 0 : i64, scratch_operands = 0 : i64, tpu.core_type = #tpu.core_type<tc>, window_params = [{transform_indices = @transform_0, window_bounds = array<i64: 1, 32, 128>}, {transform_indices = @transform_1, window_bounds = array<i64: 1, 32, 32>}, {pipeline_mode = #tpu.pipeline_mode<synchronous>, transform_indices = @transform_2, window_bounds = array<i64: 128, 384>}, {pipeline_mode = #tpu.pipeline_mode<synchronous>, transform_indices = @transform_3, window_bounds = array<i64: 1, 384>}, {pipeline_mode = #tpu.pipeline_mode<synchronous>, transform_indices = @transform_4, window_bounds = array<i64: 256, 128>}, {pipeline_mode = #tpu.pipeline_mode<synchronous>, transform_indices = @transform_5, window_bounds = array<i64: 1, 128>}, {transform_indices = @transform_6, window_bounds = array<i64: 1, 32, 128>}]} {
    %c0 = arith.constant 0 : index
    %c0_0 = arith.constant 0 : index
    %c0_1 = arith.constant 0 : index
    %0 = vector.load %arg1[%c0, %c0_0, %c0_1] : memref<1x32x128xf32, #tpu.memory_space<vmem>>, vector<1x32x128xf32>
    %1 = vector.shape_cast %0 : vector<1x32x128xf32> to vector<32x128xf32>
    %c0_2 = arith.constant 0 : index
    %c0_3 = arith.constant 0 : index
    %2 = vector.load %arg3[%c0_2, %c0_3] : memref<128x384xf32, #tpu.memory_space<vmem>>, vector<128x384xf32>
    %cst = arith.constant dense<0.000000e+00> : vector<32x384xf32>
    %3 = tpu.matmul %1, %2, %cst {dimension_numbers = #tpu.dot_dimension_numbers<[1], [0], [0], [1], [0, 0, 1, 1], [], []>} : vector<32x128xf32>, vector<128x384xf32>, vector<32x384xf32> -> vector<32x384xf32>
    %c0_4 = arith.constant 0 : index
    %c0_5 = arith.constant 0 : index
    %4 = vector.load %arg4[%c0_4, %c0_5] : memref<1x384xf32, #tpu.memory_space<vmem>>, vector<1x384xf32>
    %5 = vector.broadcast %4 : vector<1x384xf32> to vector<32x384xf32>
    %6 = arith.addf %3, %5 : vector<32x384xf32>
    %7 = vector.extract_strided_slice %6 {offsets = [0, 0], sizes = [32, 32], strides = [1, 1]} : vector<32x384xf32> to vector<32x32xf32>
    %8 = vector.extract_strided_slice %6 {offsets = [0, 128], sizes = [32, 32], strides = [1, 1]} : vector<32x384xf32> to vector<32x32xf32>
    %9 = vector.extract_strided_slice %6 {offsets = [0, 256], sizes = [32, 32], strides = [1, 1]} : vector<32x384xf32> to vector<32x32xf32>
    %10 = vector.extract_strided_slice %6 {offsets = [0, 32], sizes = [32, 32], strides = [1, 1]} : vector<32x384xf32> to vector<32x32xf32>
    %11 = vector.extract_strided_slice %6 {offsets = [0, 160], sizes = [32, 32], strides = [1, 1]} : vector<32x384xf32> to vector<32x32xf32>
    %12 = vector.extract_strided_slice %6 {offsets = [0, 288], sizes = [32, 32], strides = [1, 1]} : vector<32x384xf32> to vector<32x32xf32>
    %13 = vector.extract_strided_slice %6 {offsets = [0, 64], sizes = [32, 32], strides = [1, 1]} : vector<32x384xf32> to vector<32x32xf32>
    %14 = vector.extract_strided_slice %6 {offsets = [0, 192], sizes = [32, 32], strides = [1, 1]} : vector<32x384xf32> to vector<32x32xf32>
    %15 = vector.extract_strided_slice %6 {offsets = [0, 320], sizes = [32, 32], strides = [1, 1]} : vector<32x384xf32> to vector<32x32xf32>
    %16 = vector.extract_strided_slice %6 {offsets = [0, 96], sizes = [32, 32], strides = [1, 1]} : vector<32x384xf32> to vector<32x32xf32>
    %17 = vector.extract_strided_slice %6 {offsets = [0, 224], sizes = [32, 32], strides = [1, 1]} : vector<32x384xf32> to vector<32x32xf32>
    %18 = vector.extract_strided_slice %6 {offsets = [0, 352], sizes = [32, 32], strides = [1, 1]} : vector<32x384xf32> to vector<32x32xf32>
    %19 = vector.shape_cast %7 : vector<32x32xf32> to vector<1x32x32xf32>
    %20 = vector.shape_cast %10 : vector<32x32xf32> to vector<1x32x32xf32>
    %21 = vector.shape_cast %13 : vector<32x32xf32> to vector<1x32x32xf32>
    %22 = vector.shape_cast %16 : vector<32x32xf32> to vector<1x32x32xf32>
    %23 = tpu.concatenate %19, %20, %21, %22 in 0 : vector<1x32x32xf32>, vector<1x32x32xf32>, vector<1x32x32xf32>, vector<1x32x32xf32> -> vector<4x32x32xf32>
    %24 = vector.shape_cast %8 : vector<32x32xf32> to vector<1x32x32xf32>
    %25 = vector.shape_cast %11 : vector<32x32xf32> to vector<1x32x32xf32>
    %26 = vector.shape_cast %14 : vector<32x32xf32> to vector<1x32x32xf32>
    %27 = vector.shape_cast %17 : vector<32x32xf32> to vector<1x32x32xf32>
    %28 = tpu.concatenate %24, %25, %26, %27 in 0 : vector<1x32x32xf32>, vector<1x32x32xf32>, vector<1x32x32xf32>, vector<1x32x32xf32> -> vector<4x32x32xf32>
    %29 = vector.shape_cast %9 : vector<32x32xf32> to vector<1x32x32xf32>
    %30 = vector.shape_cast %12 : vector<32x32xf32> to vector<1x32x32xf32>
    %31 = vector.shape_cast %15 : vector<32x32xf32> to vector<1x32x32xf32>
    %32 = vector.shape_cast %18 : vector<32x32xf32> to vector<1x32x32xf32>
    %33 = tpu.concatenate %29, %30, %31, %32 in 0 : vector<1x32x32xf32>, vector<1x32x32xf32>, vector<1x32x32xf32>, vector<1x32x32xf32> -> vector<4x32x32xf32>
    "tpu.trace_start"() <{level = 10 : i32, message = "nqc,nkc->nqk"}> : () -> ()
    %cst_6 = arith.constant dense<0.000000e+00> : vector<4x32x32xf32>
    %34 = tpu.matmul %23, %28, %cst_6 {dimension_numbers = #tpu.dot_dimension_numbers<[2], [2], [1], [1], [0, 0, 0, 1, 1, 1], [0], [0]>} : vector<4x32x32xf32>, vector<4x32x32xf32>, vector<4x32x32xf32> -> vector<4x32x32xf32>
    "tpu.trace_stop"() : () -> ()
    %cst_7 = arith.constant dense<0xFF800000> : vector<4x32xf32>
    %35 = vector.multi_reduction <maximumf>, %34, %cst_7 [2] : vector<4x32x32xf32> to vector<4x32xf32>
    %36 = vector.shape_cast %35 : vector<4x32xf32> to vector<4x32x1xf32>
    %37 = vector.broadcast %36 : vector<4x32x1xf32> to vector<4x32x32xf32>
    %38 = arith.subf %34, %37 : vector<4x32x32xf32>
    %39 = math.exp %38 : vector<4x32x32xf32>
    %c0_8 = arith.constant 0 : index
    %c0_9 = arith.constant 0 : index
    %c0_10 = arith.constant 0 : index
    %40 = vector.load %arg2[%c0_8, %c0_9, %c0_10] : memref<1x32x32xf32, #tpu.memory_space<vmem>>, vector<1x32x32xf32>
    %41 = vector.broadcast %40 : vector<1x32x32xf32> to vector<4x32x32xf32>
    %42 = arith.mulf %39, %41 : vector<4x32x32xf32>
    %cst_11 = arith.constant dense<0.000000e+00> : vector<4x32xf32>
    %43 = vector.multi_reduction <add>, %42, %cst_11 [2] : vector<4x32x32xf32> to vector<4x32xf32>
    %44 = vector.shape_cast %43 : vector<4x32xf32> to vector<4x32x1xf32>
    %cst_12 = arith.constant dense<0.000000e+00> : vector<4x32xf32>
    %45 = vector.multi_reduction <add>, %39, %cst_12 [2] : vector<4x32x32xf32> to vector<4x32xf32>
    %46 = vector.shape_cast %45 : vector<4x32xf32> to vector<4x32x1xf32>
    %cst_13 = arith.constant 1.000000e-15 : f32
    %47 = vector.broadcast %cst_13 : f32 to vector<4x32x1xf32>
    %48 = arith.mulf %47, %46 : vector<4x32x1xf32>
    %49 = arith.addf %44, %48 : vector<4x32x1xf32>
    "tpu.trace_start"() <{level = 10 : i32, message = "nqk,nkc->nqc"}> : () -> ()
    %cst_14 = arith.constant dense<0.000000e+00> : vector<4x32x32xf32>
    %50 = tpu.matmul %42, %33, %cst_14 {dimension_numbers = #tpu.dot_dimension_numbers<[2], [1], [1], [2], [0, 0, 0, 1, 1, 2], [0], [0]>} : vector<4x32x32xf32>, vector<4x32x32xf32>, vector<4x32x32xf32> -> vector<4x32x32xf32>
    "tpu.trace_stop"() : () -> ()
    %51 = tpu.reciprocal %49 : vector<4x32x1xf32> -> vector<4x32x1xf32>
    %52 = vector.broadcast %51 : vector<4x32x1xf32> to vector<4x32x32xf32>
    %53 = arith.mulf %50, %52 : vector<4x32x32xf32>
    %54 = vector.extract_strided_slice %53 {offsets = [0, 0, 0], sizes = [1, 32, 32], strides = [1, 1, 1]} : vector<4x32x32xf32> to vector<1x32x32xf32>
    %55 = vector.shape_cast %54 : vector<1x32x32xf32> to vector<32x32xf32>
    %56 = vector.extract_strided_slice %53 {offsets = [1, 0, 0], sizes = [1, 32, 32], strides = [1, 1, 1]} : vector<4x32x32xf32> to vector<1x32x32xf32>
    %57 = vector.shape_cast %56 : vector<1x32x32xf32> to vector<32x32xf32>
    %58 = vector.extract_strided_slice %53 {offsets = [2, 0, 0], sizes = [1, 32, 32], strides = [1, 1, 1]} : vector<4x32x32xf32> to vector<1x32x32xf32>
    %59 = vector.shape_cast %58 : vector<1x32x32xf32> to vector<32x32xf32>
    %60 = vector.extract_strided_slice %53 {offsets = [3, 0, 0], sizes = [1, 32, 32], strides = [1, 1, 1]} : vector<4x32x32xf32> to vector<1x32x32xf32>
    %61 = vector.shape_cast %60 : vector<1x32x32xf32> to vector<32x32xf32>
    %62 = tpu.concatenate %55, %57, %59, %61, %1 in 1 : vector<32x32xf32>, vector<32x32xf32>, vector<32x32xf32>, vector<32x32xf32>, vector<32x128xf32> -> vector<32x256xf32>
    %c0_15 = arith.constant 0 : index
    %c0_16 = arith.constant 0 : index
    %63 = vector.load %arg5[%c0_15, %c0_16] : memref<256x128xf32, #tpu.memory_space<vmem>>, vector<256x128xf32>
    %cst_17 = arith.constant dense<0.000000e+00> : vector<32x128xf32>
    %64 = tpu.matmul %62, %63, %cst_17 {dimension_numbers = #tpu.dot_dimension_numbers<[1], [0], [0], [1], [0, 0, 1, 1], [], []>} : vector<32x256xf32>, vector<256x128xf32>, vector<32x128xf32> -> vector<32x128xf32>
    %c0_18 = arith.constant 0 : index
    %c0_19 = arith.constant 0 : index
    %65 = vector.load %arg6[%c0_18, %c0_19] : memref<1x128xf32, #tpu.memory_space<vmem>>, vector<1x128xf32>
    %66 = vector.broadcast %65 : vector<1x128xf32> to vector<32x128xf32>
    %67 = arith.addf %64, %66 : vector<32x128xf32>
    %68 = vector.shape_cast %67 : vector<32x128xf32> to vector<1x32x128xf32>
    %c0_20 = arith.constant 0 : index
    %c0_21 = arith.constant 0 : index
    %c0_22 = arith.constant 0 : index
    %69 = vector.load %arg7[%c0_20, %c0_21, %c0_22] : memref<1x32x128xf32, #tpu.memory_space<vmem>>, vector<1x32x128xf32>
    tpu.vector_store %arg7[%c0_20, %c0_21, %c0_22], %68 {strides = array<i32>} : memref<1x32x128xf32, #tpu.memory_space<vmem>>, vector<1x32x128xf32>,
    return
  }
  func.func @transform_0(%arg0: i32) -> (i32, i32, i32) {
    %c0_i32 = arith.constant 0 : i32
    %c0_i32_0 = arith.constant 0 : i32
    %c0_i32_1 = arith.constant 0 : i32
    return %arg0, %c0_i32, %c0_i32_0 : i32, i32, i32
  }
  func.func @transform_1(%arg0: i32) -> (i32, i32, i32) {
    %c0_i32 = arith.constant 0 : i32
    %c0_i32_0 = arith.constant 0 : i32
    %c0_i32_1 = arith.constant 0 : i32
    return %arg0, %c0_i32, %c0_i32_0 : i32, i32, i32
  }
  func.func @transform_2(%arg0: i32) -> (i32, i32) {
    %c0_i32 = arith.constant 0 : i32
    %c0_i32_0 = arith.constant 0 : i32
    %c0_i32_1 = arith.constant 0 : i32
    return %c0_i32, %c0_i32_0 : i32, i32
  }
  func.func @transform_3(%arg0: i32) -> (i32, i32) {
    %c0_i32 = arith.constant 0 : i32
    %c0_i32_0 = arith.constant 0 : i32
    %c0_i32_1 = arith.constant 0 : i32
    return %c0_i32, %c0_i32_0 : i32, i32
  }
  func.func @transform_4(%arg0: i32) -> (i32, i32) {
    %c0_i32 = arith.constant 0 : i32
    %c0_i32_0 = arith.constant 0 : i32
    %c0_i32_1 = arith.constant 0 : i32
    return %c0_i32, %c0_i32_0 : i32, i32
  }
  func.func @transform_5(%arg0: i32) -> (i32, i32) {
    %c0_i32 = arith.constant 0 : i32
    %c0_i32_0 = arith.constant 0 : i32
    %c0_i32_1 = arith.constant 0 : i32
    return %c0_i32, %c0_i32_0 : i32, i32
  }
  func.func @transform_6(%arg0: i32) -> (i32, i32, i32) {
    %c0_i32 = arith.constant 0 : i32
    %c0_i32_0 = arith.constant 0 : i32
    %c0_i32_1 = arith.constant 0 : i32
    return %arg0, %c0_i32, %c0_i32_0 : i32, i32, i32
  }
}

</mosaic_0001>

<llo_original>
// kernel: tpu_custom_call.1
$region0: #{tpu_custom_call.1}
  #allocation0 [shape = 'u32[]', space=smem, size = 0x4, offset = 0x4, fixed_abs, tag = 'smem constant byte address 0x4 - core index']
  #allocation1 [shape = 'u32[72,128]{1,0:T(1,128)}', space=vmem, size = 0x9000, scoped, tag = 'internal scratch']
  %s0 = inlined_call_operand.hbm [shape: f32[2,32,128], index: 0, kind: input, shape index: {}]
  %s1 = inlined_call_operand.hbm [shape: f32[2,32,32], index: 1, kind: input, shape index: {}]
  %s2 = inlined_call_operand.hbm [shape: f32[128,384], index: 2, kind: input, shape index: {}]
  %s3 = inlined_call_operand.hbm [shape: f32[1,384], index: 3, kind: input, shape index: {}]
  %s4 = inlined_call_operand.hbm [shape: f32[256,128], index: 4, kind: input, shape index: {}]
  %s5 = inlined_call_operand.vmem [shape: f32[1,128], index: 5, kind: input, shape index: {}]
  %s6 = inlined_call_operand.hbm [shape: f32[2,32,128], index: 6, kind: output, shape index: {}]
  %s7 = sld [smem:[#allocation0]]
  $region77: #{tpu_custom_call.1} parent=0
    _
  %s9 = ssub.s32 1, %s7
  %s10 = scalar_select 0, %s9, %s7
  $region1: #{tpu_custom_call.1} parent=0
    #allocation2 [shape = 'u8[32768]{0}', space=vmem, size = 0x8000, scoped, tag = 'input window, operand 0']
    #allocation3 [shape = 's32[2]{0}', space=sflag, size = 0x8, scoped, tag = 'scoped memory for tpu_custom_call.1']
    #allocation4 [shape = 's32[2]{0}', space=sflag, size = 0x8, scoped, tag = 'scoped memory for tpu_custom_call.1']
    #allocation5 [shape = 'u8[32768]{0}', space=vmem, size = 0x8000, scoped, tag = 'input window, operand 1']
    #allocation6 [shape = 's32[2]{0}', space=sflag, size = 0x8, scoped, tag = 'scoped memory for tpu_custom_call.1']
    #allocation7 [shape = 'u8[196608]{0}', space=vmem, size = 0x30000, scoped, tag = 'input window, operand 2, single buffered']
    #allocation8 [shape = 'u8[1536]{0}', space=vmem, size = 0x800, scoped, tag = 'input window, operand 3, single buffered']
    #allocation9 [shape = 's32[1]{0}', space=sflag, size = 0x4, scoped, tag = 'scoped memory for tpu_custom_call.1']
    #allocation10 [shape = 'u8[131072]{0}', space=vmem, size = 0x20000, scoped, tag = 'input window, operand 4, single buffered']
    #allocation11 [shape = 'u8[32768]{0}', space=vmem, size = 0x8000, scoped, tag = 'output window, operand 0']
    %11 = vsyncpa [#allocation3], 0
    %s12 = scalar_lea.sflag [#allocation3], 1
    %13 = vsyncpa %s12, 0
    %14 = vsyncpa [#allocation6], 0
    %s15 = scalar_lea.sflag [#allocation6], 1
    %16 = vsyncpa %s15, 0
    %17 = vsyncpa [#allocation9], 0
    %18 = vsyncpa [#allocation4], 0
    %s19 = scalar_lea.sflag [#allocation4], 1
    %20 = vsyncpa %s19, 0
    loop: start=0, step=1, limit=4
    $region2: #{tpu_custom_call.1} parent=1 // loop_pre_header
      _
    $region3: #{tpu_custom_call.1} parent=1 // loop_header
      %s22 = sphi 0, %s26
      %p23 = scmp.ge.s32.totalorder %s22, 4
      %s32 = sphi 0, %s34
      %s35 = sphi 0, %s32
      %s36 = sphi 0, %s35
      %s52 = sphi 0, %s36
      %s58 = sphi 0, %s60
      %s61 = sphi 0, %s58
      %s62 = sphi 0, %s61
      %s78 = sphi 0, %s62
      %s82 = sphi 0, %s82
      %s84 = sphi 0, %s82
      %s85 = sphi 0, %s84
      %s99 = sphi 0, %s85
      %s103 = sphi 0, %s103
      %s105 = sphi 0, %s103
      %s106 = sphi 0, %s105
      %s120 = sphi 0, %s106
      %s124 = sphi 0, %s124
      %s126 = sphi 0, %s124
      %s127 = sphi 0, %s126
      %s141 = sphi 0, %s127
      %s145 = sphi 0, %s145
      %s147 = sphi 0, %s145
      %s148 = sphi 0, %s147
      %s162 = sphi 0, %s148
      %s168 = sphi 0, %s170
      %s171 = sphi 0, %s168
      %s172 = sphi 0, %s171
      %s188 = sphi 0, %s172
    $region4: #{tpu_custom_call.1} parent=1 // loop_header_branch
      %25 = sbr.rel (%p23) target = $region8
    $region5: #{tpu_custom_call.1} parent=1 // loop_body
      %s27 = ssub.s32 %s22, 1
      %s28 = ssub.s32 %s22, 2
      %s29 = sadd.s32 %s22, 1
      %s30 = ssub.s32 %s22, %s29
      %p31 = scmp.eq.s32.totalorder %s30, 0
      %s33 = sadd.s32 %s32, 1
      %s34 = scalar_select %p31, %s32, %s33
      %p37 = pneg %p31
      %p38 = scmp.eq.s32.totalorder %s22, 1
      %p39 = por %p37, %p38
      %p40 = scmp.ne.s32.totalorder %s32, %s35
      %p41 = scmp.eq.s32.totalorder %s22, 0
      %p42 = por %p40, %p41
      %p43 = scmp.ne.s32.totalorder %s32, %s35
      %p44 = scmp.eq.s32.totalorder %s27, 1
      %p45 = por %p43, %p44
      %p46 = scmp.ne.s32.totalorder %s35, %s36
      %p47 = scmp.eq.s32.totalorder %s27, 0
      %p48 = por %p46, %p47
      %p49 = scmp.ne.s32.totalorder %s35, %s36
      %p50 = scmp.eq.s32.totalorder %s28, 1
      %p51 = por %p49, %p50
      %p53 = scmp.ne.s32.totalorder %s36, %s52
      %p54 = scmp.eq.s32.totalorder %s28, 0
      %p55 = por %p53, %p54
      %s56 = ssub.s32 %s22, %s29
      %p57 = scmp.eq.s32.totalorder %s56, 0
      %s59 = sadd.s32 %s58, 1
      %s60 = scalar_select %p57, %s58, %s59
      %p63 = pneg %p57
      %p64 = scmp.eq.s32.totalorder %s22, 1
      %p65 = por %p63, %p64
      %p66 = scmp.ne.s32.totalorder %s58, %s61
      %p67 = scmp.eq.s32.totalorder %s22, 0
      %p68 = por %p66, %p67
      %p69 = scmp.ne.s32.totalorder %s58, %s61
      %p70 = scmp.eq.s32.totalorder %s27, 1
      %p71 = por %p69, %p70
      %p72 = scmp.ne.s32.totalorder %s61, %s62
      %p73 = scmp.eq.s32.totalorder %s27, 0
      %p74 = por %p72, %p73
      %p75 = scmp.ne.s32.totalorder %s61, %s62
      %p76 = scmp.eq.s32.totalorder %s28, 1
      %p77 = por %p75, %p76
      %p79 = scmp.ne.s32.totalorder %s62, %s78
      %p80 = scmp.eq.s32.totalorder %s28, 0
      %p81 = por %p79, %p80
      %s83 = sadd.s32 %s82, 1
      %p86 = scmp.eq.s32.totalorder %s22, 1
      %p87 = scmp.ne.s32.totalorder %s82, %s84
      %p88 = scmp.eq.s32.totalorder %s22, 0
      %p89 = por %p87, %p88
      %p90 = scmp.ne.s32.totalorder %s82, %s84
      %p91 = scmp.eq.s32.totalorder %s27, 1
      %p92 = por %p90, %p91
      %p93 = scmp.ne.s32.totalorder %s84, %s85
      %p94 = scmp.eq.s32.totalorder %s27, 0
      %p95 = por %p93, %p94
      %p96 = scmp.ne.s32.totalorder %s84, %s85
      %p97 = scmp.eq.s32.totalorder %s28, 1
      %p98 = por %p96, %p97
      %p100 = scmp.ne.s32.totalorder %s85, %s99
      %p101 = scmp.eq.s32.totalorder %s28, 0
      %p102 = por %p100, %p101
      %s104 = sadd.s32 %s103, 1
      %p107 = scmp.eq.s32.totalorder %s22, 1
      %p108 = scmp.ne.s32.totalorder %s103, %s105
      %p109 = scmp.eq.s32.totalorder %s22, 0
      %p110 = por %p108, %p109
      %p111 = scmp.ne.s32.totalorder %s103, %s105
      %p112 = scmp.eq.s32.totalorder %s27, 1
      %p113 = por %p111, %p112
      %p114 = scmp.ne.s32.totalorder %s105, %s106
      %p115 = scmp.eq.s32.totalorder %s27, 0
      %p116 = por %p114, %p115
      %p117 = scmp.ne.s32.totalorder %s105, %s106
      %p118 = scmp.eq.s32.totalorder %s28, 1
      %p119 = por %p117, %p118
      %p121 = scmp.ne.s32.totalorder %s106, %s120
      %p122 = scmp.eq.s32.totalorder %s28, 0
      %p123 = por %p121, %p122
      %s125 = sadd.s32 %s124, 1
      %p128 = scmp.eq.s32.totalorder %s22, 1
      %p129 = scmp.ne.s32.totalorder %s124, %s126
      %p130 = scmp.eq.s32.totalorder %s22, 0
      %p131 = por %p129, %p130
      %p132 = scmp.ne.s32.totalorder %s124, %s126
      %p133 = scmp.eq.s32.totalorder %s27, 1
      %p134 = por %p132, %p133
      %p135 = scmp.ne.s32.totalorder %s126, %s127
      %p136 = scmp.eq.s32.totalorder %s27, 0
      %p137 = por %p135, %p136
      %p138 = scmp.ne.s32.totalorder %s126, %s127
      %p139 = scmp.eq.s32.totalorder %s28, 1
      %p140 = por %p138, %p139
      %p142 = scmp.ne.s32.totalorder %s127, %s141
      %p143 = scmp.eq.s32.totalorder %s28, 0
      %p144 = por %p142, %p143
      %s146 = sadd.s32 %s145, 1
      %p149 = scmp.eq.s32.totalorder %s22, 1
      %p150 = scmp.ne.s32.totalorder %s145, %s147
      %p151 = scmp.eq.s32.totalorder %s22, 0
      %p152 = por %p150, %p151
      %p153 = scmp.ne.s32.totalorder %s145, %s147
      %p154 = scmp.eq.s32.totalorder %s27, 1
      %p155 = por %p153, %p154
      %p156 = scmp.ne.s32.totalorder %s147, %s148
      %p157 = scmp.eq.s32.totalorder %s27, 0
      %p158 = por %p156, %p157
      %p159 = scmp.ne.s32.totalorder %s147, %s148
      %p160 = scmp.eq.s32.totalorder %s28, 1
      %p161 = por %p159, %p160
      %p163 = scmp.ne.s32.totalorder %s148, %s162
      %p164 = scmp.eq.s32.totalorder %s28, 0
      %p165 = por %p163, %p164
      %s166 = ssub.s32 %s22, %s29
      %p167 = scmp.eq.s32.totalorder %s166, 0
      %s169 = sadd.s32 %s168, 1
      %s170 = scalar_select %p167, %s168, %s169
      %p173 = pneg %p167
      %p174 = scmp.eq.s32.totalorder %s22, 1
      %p175 = por %p173, %p174
      %p176 = scmp.ne.s32.totalorder %s168, %s171
      %p177 = scmp.eq.s32.totalorder %s22, 0
      %p178 = por %p176, %p177
      %p179 = scmp.ne.s32.totalorder %s168, %s171
      %p180 = scmp.eq.s32.totalorder %s27, 1
      %p181 = por %p179, %p180
      %p182 = scmp.ne.s32.totalorder %s171, %s172
      %p183 = scmp.eq.s32.totalorder %s27, 0
      %p184 = por %p182, %p183
      %p185 = scmp.ne.s32.totalorder %s171, %s172
      %p186 = scmp.eq.s32.totalorder %s28, 1
      %p187 = por %p185, %p186
      %p189 = scmp.ne.s32.totalorder %s172, %s188
      %p190 = scmp.eq.s32.totalorder %s28, 0
      %p191 = por %p189, %p190
      %p192 = scmp.le.s32.totalorder 1, %s22
      %p193 = scmp.lt.s32.totalorder %s22, 3
      %p194 = pnand %p192, %p193
      %p195 = pneg %p194
      // Predicated region
      $region9: #{tpu_custom_call.1} parent=5 // pred_check
        _
      $region10: #{tpu_custom_call.1} parent=5 // pred_check_branch
        %197 = sbr.rel (%p194) target = $region12
      $region11: #{tpu_custom_call.1} parent=5 // pred_region
        %s198 = ssub.s32 %s22, 1
        // Predicated region
        $region13: #{tpu_custom_call.1} parent=11 // pred_check
          %p199 = pneg %p95
        $region14: #{tpu_custom_call.1} parent=11 // pred_check_branch
          %201 = sbr.rel (%p199) target = $region16
        $region15: #{tpu_custom_call.1} parent=11 // pred_region
          %203 = vsyncadd [#allocation6], 0
          %s204 = sshll.u32 %s2, 4
          %s205 = int_to_ptr.hbm [resolvable:$true] %s204
          %s206 = sshll.u32 [#allocation7], 4
          %s207 = int_to_ptr.vmem [resolvable:$true] %s206
          %212 = dma.hbm_to_vmem [thread:$0]  %s205, 6144, %s207, [#allocation6], 384, 384, 24
        $region16: #{tpu_custom_call.1} parent=11 // pred_fallthru
          _
        // Predicated region
        $region17: #{tpu_custom_call.1} parent=11 // pred_check
          %p213 = pneg %p116
        $region18: #{tpu_custom_call.1} parent=11 // pred_check_branch
          %215 = sbr.rel (%p213) target = $region20
        $region19: #{tpu_custom_call.1} parent=11 // pred_region
          %217 = vsyncadd [#allocation9], 0
          %s219 = sshll.u32 %s3, 4
          %s220 = int_to_ptr.hbm [resolvable:$true] %s219
          %s221 = sshll.u32 [#allocation8], 4
          %s222 = int_to_ptr.vmem [resolvable:$true] %s221
          %224 = dma.hbm_to_vmem [thread:$0]  %s220, 48, %s222, [#allocation9]
        $region20: #{tpu_custom_call.1} parent=11 // pred_fallthru
          _
        // Predicated region
        $region21: #{tpu_custom_call.1} parent=11 // pred_check
          %p225 = pneg %p137
        $region22: #{tpu_custom_call.1} parent=11 // pred_check_branch
          %227 = sbr.rel (%p225) target = $region24
        $region23: #{tpu_custom_call.1} parent=11 // pred_region
          %229 = vsyncadd [#allocation9], 0
          %s230 = sshll.u32 %s4, 4
          %s231 = int_to_ptr.hbm [resolvable:$true] %s230
          %s232 = sshll.u32 [#allocation10], 4
          %s233 = int_to_ptr.vmem [resolvable:$true] %s232
          %238 = dma.hbm_to_vmem [thread:$0]  %s231, 4096, %s233, [#allocation9], 128, 128, 8
        $region24: #{tpu_custom_call.1} parent=11 // pred_fallthru
          _
        // Predicated region
        $region25: #{tpu_custom_call.1} parent=11 // pred_check
          %p239 = pneg %p158
        $region26: #{tpu_custom_call.1} parent=11 // pred_check_branch
          %241 = sbr.rel (%p239) target = $region28
        $region27: #{tpu_custom_call.1} parent=11 // pred_region
          _
        $region28: #{tpu_custom_call.1} parent=11 // pred_fallthru
          _
      $region12: #{tpu_custom_call.1} parent=5 // pred_fallthru
        _
      %p242 = scmp.lt.s32.totalorder %s22, 2
      // Predicated region
      $region29: #{tpu_custom_call.1} parent=5 // pred_check
        %p243 = pneg %p242
      $region30: #{tpu_custom_call.1} parent=5 // pred_check_branch
        %245 = sbr.rel (%p243) target = $region32
      $region31: #{tpu_custom_call.1} parent=5 // pred_region
        // Predicated region
        $region33: #{tpu_custom_call.1} parent=31 // pred_check
          %p246 = pneg %p42
        $region34: #{tpu_custom_call.1} parent=31 // pred_check_branch
          %248 = sbr.rel (%p246) target = $region36
        $region35: #{tpu_custom_call.1} parent=31 // pred_region
          %s249 = sand.u32 %s32, 1
          %s250 = scalar_lea.sflag [#allocation3], %s249
          %s251 = sand.u32 %s32, 1
          %s252 = smul.addr %s251, 32
          %s253 = scalar_lea.vmem [#allocation2], %s252
          %255 = vsyncadd %s250, 0
          %s256 = smul.addr %s22, 4
          %s257 = smul.addr %s256, 8
          %s258 = scalar_lea.hbm %s0, %s257
          %s259 = sshll.u32 %s258, 4
          %s260 = int_to_ptr.hbm [resolvable:$true] %s259
          %s261 = sshll.u32 %s253, 4
          %s262 = int_to_ptr.vmem [resolvable:$true] %s261
          %267 = dma.hbm_to_vmem [thread:$0]  %s260, 512, %s262, %s250, 128, 128, 8
        $region36: #{tpu_custom_call.1} parent=31 // pred_fallthru
          _
        // Predicated region
        $region37: #{tpu_custom_call.1} parent=31 // pred_check
          %p268 = pneg %p68
        $region38: #{tpu_custom_call.1} parent=31 // pred_check_branch
          %270 = sbr.rel (%p268) target = $region40
        $region39: #{tpu_custom_call.1} parent=31 // pred_region
          %s271 = sand.u32 %s22, 1
          %s272 = scalar_lea.sflag [#allocation6], %s271
          %s273 = sand.u32 %s58, 1
          %s274 = smul.addr %s273, 32
          %s275 = scalar_lea.vmem [#allocation5], %s274
          %277 = vsyncadd %s272, 0
          %s278 = smul.addr %s22, 4
          %s279 = smul.addr %s278, 8
          %s280 = scalar_lea.hbm %s1, %s279
          %s281 = sshll.u32 %s280, 4
          %s282 = int_to_ptr.hbm [resolvable:$true] %s281
          %s283 = sshll.u32 %s275, 4
          %s284 = int_to_ptr.vmem [resolvable:$true] %s283
          %289 = dma.hbm_to_vmem [thread:$0]  %s282, 512, %s284, %s272, 128, 128, 8
        $region40: #{tpu_custom_call.1} parent=31 // pred_fallthru
          _
      $region32: #{tpu_custom_call.1} parent=5 // pred_fallthru
        _
      %p290 = scmp.le.s32.totalorder 1, %s22
      %p291 = scmp.lt.s32.totalorder %s22, 3
      %p292 = pnand %p290, %p291
      %p293 = pneg %p292
      // Predicated region
      $region41: #{tpu_custom_call.1} parent=5 // pred_check
        _
      $region42: #{tpu_custom_call.1} parent=5 // pred_check_branch
        %295 = sbr.rel (%p292) target = $region44
      $region43: #{tpu_custom_call.1} parent=5 // pred_region
        %s296 = ssub.s32 %s22, 1
        %s297 = sand.u32 %s35, 1
        %s298 = scalar_lea.sflag [#allocation3], %s297
        %s299 = sand.u32 %s35, 1
        %s300 = smul.addr %s299, 32
        %s301 = scalar_lea.vmem [#allocation2], %s300
        // Predicated region
        $region45: #{tpu_custom_call.1} parent=43 // pred_check
          %p302 = pneg %p48
        $region46: #{tpu_custom_call.1} parent=43 // pred_check_branch
          %304 = sbr.rel (%p302) target = $region48
        $region47: #{tpu_custom_call.1} parent=43 // pred_region
          %306 = dma.done %s298, 512
        $region48: #{tpu_custom_call.1} parent=43 // pred_fallthru
          _
        %s307 = sand.u32 %s27, 1
        %s308 = scalar_lea.sflag [#allocation6], %s307
        %s309 = sand.u32 %s61, 1
        %s310 = smul.addr %s309, 32
        %s311 = scalar_lea.vmem [#allocation5], %s310
        // Predicated region
        $region49: #{tpu_custom_call.1} parent=43 // pred_check
          %p312 = pneg %p74
        $region50: #{tpu_custom_call.1} parent=43 // pred_check_branch
          %314 = sbr.rel (%p312) target = $region52
        $region51: #{tpu_custom_call.1} parent=43 // pred_region
          %316 = dma.done %s308, 512
        $region52: #{tpu_custom_call.1} parent=43 // pred_fallthru
          _
        // Predicated region
        $region53: #{tpu_custom_call.1} parent=43 // pred_check
          %p317 = pneg %p95
        $region54: #{tpu_custom_call.1} parent=43 // pred_check_branch
          %319 = sbr.rel (%p317) target = $region56
        $region55: #{tpu_custom_call.1} parent=43 // pred_region
          %321 = dma.done [#allocation6], 6144
        $region56: #{tpu_custom_call.1} parent=43 // pred_fallthru
          _
        // Predicated region
        $region57: #{tpu_custom_call.1} parent=43 // pred_check
          %p322 = pneg %p116
        $region58: #{tpu_custom_call.1} parent=43 // pred_check_branch
          %324 = sbr.rel (%p322) target = $region60
        $region59: #{tpu_custom_call.1} parent=43 // pred_region
          %326 = dma.done [#allocation9], 48
        $region60: #{tpu_custom_call.1} parent=43 // pred_fallthru
          _
        // Predicated region
        $region61: #{tpu_custom_call.1} parent=43 // pred_check
          %p327 = pneg %p137
        $region62: #{tpu_custom_call.1} parent=43 // pred_check_branch
          %329 = sbr.rel (%p327) target = $region64
        $region63: #{tpu_custom_call.1} parent=43 // pred_region
          %331 = dma.done [#allocation9], 4096
        $region64: #{tpu_custom_call.1} parent=43 // pred_fallthru
          _
        %s332 = sand.u32 %s35, 1
        %s333 = scalar_lea.sflag [#allocation3], %s332
        %s334 = sand.u32 %s35, 1
        %s335 = smul.addr %s334, 32
        %s336 = scalar_lea.vmem [#allocation2], %s335
        %p337 = pneg %p48
        %p338 = pneg %p45
        %s339 = sand.u32 %s27, 1
        %s340 = scalar_lea.sflag [#allocation6], %s339
        %s341 = sand.u32 %s61, 1
        %s342 = smul.addr %s341, 32
        %s343 = scalar_lea.vmem [#allocation5], %s342
        %p344 = pneg %p74
        %p345 = pneg %p71
        %p346 = pneg %p95
        %p347 = pneg %p92
        %p348 = pneg %p116
        %p349 = pneg %p113
        %p350 = pneg %p137
        %p351 = pneg %p134
        %p352 = pneg %p158
        %p353 = pneg %p155
        %p354 = pneg %p184
        %p355 = pneg %p181
        %s356 = sand.u32 %s171, 1
        %s357 = scalar_lea.sflag [#allocation4], %s356
        %s358 = sand.u32 %s171, 1
        %s359 = smul.addr %s358, 32
        %s360 = scalar_lea.vmem [#allocation11], %s359
        %v361 = vld [vmem:[%s301] sm:$0xff]
        %v362 = vld [vmem:[%s301 + $0x8] sm:$0xff]
        %v363 = vld [vmem:[%s301 + $0x10] sm:$0xff]
        %v364 = vld [vmem:[%s301 + $0x18] sm:$0xff]
        %v365 = vld [vmem:[#allocation7] sm:$0xff]
        %v366 = vld [vmem:[#allocation7 + $0x8] sm:$0xff]
        %v367 = vld [vmem:[#allocation7 + $0x10] sm:$0xff]
        %v368 = vld [vmem:[#allocation7 + $0x18] sm:$0xff]
        %v369 = vld [vmem:[#allocation7 + $0x20] sm:$0xff]
        %v370 = vld [vmem:[#allocation7 + $0x28] sm:$0xff]
        %v371 = vld [vmem:[#allocation7 + $0x30] sm:$0xff]
        %v372 = vld [vmem:[#allocation7 + $0x38] sm:$0xff]
        %v373 = vld [vmem:[#allocation7 + $0x40] sm:$0xff]
        %v374 = vld [vmem:[#allocation7 + $0x48] sm:$0xff]
        %v375 = vld [vmem:[#allocation7 + $0x50] sm:$0xff]
        %v376 = vld [vmem:[#allocation7 + $0x58] sm:$0xff]
        %v377 = vld [vmem:[#allocation7 + $0x60] sm:$0xff]
        %v378 = vld [vmem:[#allocation7 + $0x68] sm:$0xff]
        %v379 = vld [vmem:[#allocation7 + $0x70] sm:$0xff]
        %v380 = vld [vmem:[#allocation7 + $0x78] sm:$0xff]
        %v381 = vld [vmem:[#allocation7 + $0x80] sm:$0xff]
        %v382 = vld [vmem:[#allocation7 + $0x88] sm:$0xff]
        %v383 = vld [vmem:[#allocation7 + $0x90] sm:$0xff]
        %v384 = vld [vmem:[#allocation7 + $0x98] sm:$0xff]
        %v385 = vld [vmem:[#allocation7 + $0xa0] sm:$0xff]
        %v386 = vld [vmem:[#allocation7 + $0xa8] sm:$0xff]
        %v387 = vld [vmem:[#allocation7 + $0xb0] sm:$0xff]
        %v388 = vld [vmem:[#allocation7 + $0xb8] sm:$0xff]
        %v389 = vld [vmem:[#allocation7 + $0xc0] sm:$0xff]
        %v390 = vld [vmem:[#allocation7 + $0xc8] sm:$0xff]
        %v391 = vld [vmem:[#allocation7 + $0xd0] sm:$0xff]
        %v392 = vld [vmem:[#allocation7 + $0xd8] sm:$0xff]
        %v393 = vld [vmem:[#allocation7 + $0xe0] sm:$0xff]
        %v394 = vld [vmem:[#allocation7 + $0xe8] sm:$0xff]
        %v395 = vld [vmem:[#allocation7 + $0xf0] sm:$0xff]
        %v396 = vld [vmem:[#allocation7 + $0xf8] sm:$0xff]
        %v397 = vld [vmem:[#allocation7 + $0x100] sm:$0xff]
        %v398 = vld [vmem:[#allocation7 + $0x108] sm:$0xff]
        %v399 = vld [vmem:[#allocation7 + $0x110] sm:$0xff]
        %v400 = vld [vmem:[#allocation7 + $0x118] sm:$0xff]
        %v401 = vld [vmem:[#allocation7 + $0x120] sm:$0xff]
        %v402 = vld [vmem:[#allocation7 + $0x128] sm:$0xff]
        %v403 = vld [vmem:[#allocation7 + $0x130] sm:$0xff]
        %v404 = vld [vmem:[#allocation7 + $0x138] sm:$0xff]
        %v405 = vld [vmem:[#allocation7 + $0x140] sm:$0xff]
        %v406 = vld [vmem:[#allocation7 + $0x148] sm:$0xff]
        %v407 = vld [vmem:[#allocation7 + $0x150] sm:$0xff]
        %v408 = vld [vmem:[#allocation7 + $0x158] sm:$0xff]
        %v409 = vld [vmem:[#allocation7 + $0x160] sm:$0xff]
        %v410 = vld [vmem:[#allocation7 + $0x168] sm:$0xff]
        %v411 = vld [vmem:[#allocation7 + $0x170] sm:$0xff]
        %v412 = vld [vmem:[#allocation7 + $0x178] sm:$0xff]
        %v413 = vld [vmem:[#allocation8] sm:$0x7]
        %v415 = vperm.slane %v413, 0
        %v416 = vperm.slane %v413, 1
        %v417 = vperm.slane %v413, 2
        %421 = vmatpush.msra.mxu0 %v410
        %422 = vmatpush.msra.mxu0 %v407
        %423 = vmatpush.msra.mxu0 %v404
        %424 = vmatpush.msra.mxu0 %v401
        %425 = vmatpush.msra.mxu0 %v398
        %426 = vmatpush.msra.mxu0 %v395
        %427 = vmatpush.msra.mxu0 %v392
        %428 = vmatpush.msra.mxu0 %v389
        %429 = vmatpush.msra.mxu0 %v386
        %430 = vmatpush.msra.mxu0 %v383
        %431 = vmatpush.msra.mxu0 %v380
        %432 = vmatpush.msra.mxu0 %v377
        %433 = vmatpush.msra.mxu0 %v374
        %434 = vmatpush.msra.mxu0 %v371
        %435 = vmatpush.msra.mxu0 %v368
        %436 = vmatpush.msra.mxu0 %v365
        %437 = vmatmul.f32.gmra.mxu0 %v361
        %v438 = vpop.f32.mrf.mxu0
        %v439 = vadd.f32 %v415, %v438
        %440 = vmatmul.f32.gmra.mxu0 %v362
        %v441 = vpop.f32.mrf.mxu0
        %v442 = vadd.f32 %v415, %v441
        %443 = vmatmul.f32.gmra.mxu0 %v363
        %v444 = vpop.f32.mrf.mxu0
        %v445 = vadd.f32 %v415, %v444
        %446 = vmatmul.f32.gmra.mxu0 %v364
        %v447 = vpop.f32.mrf.mxu0
        %v448 = vadd.f32 %v415, %v447
        %449 = vdwg.mxu0
        %450 = vmatpush.msra.mxu0 %v411
        %451 = vmatpush.msra.mxu0 %v408
        %452 = vmatpush.msra.mxu0 %v405
        %453 = vmatpush.msra.mxu0 %v402
        %454 = vmatpush.msra.mxu0 %v399
        %455 = vmatpush.msra.mxu0 %v396
        %456 = vmatpush.msra.mxu0 %v393
        %457 = vmatpush.msra.mxu0 %v390
        %458 = vmatpush.msra.mxu0 %v387
        %459 = vmatpush.msra.mxu0 %v384
        %460 = vmatpush.msra.mxu0 %v381
        %461 = vmatpush.msra.mxu0 %v378
        %462 = vmatpush.msra.mxu0 %v375
        %463 = vmatpush.msra.mxu0 %v372
        %464 = vmatpush.msra.mxu0 %v369
        %465 = vmatpush.msra.mxu0 %v366
        %466 = vmatmul.f32.gmra.mxu0 %v361
        %v467 = vpop.f32.mrf.mxu0
        %v468 = vadd.f32 %v416, %v467
        %469 = vmatmul.f32.gmra.mxu0 %v362
        %v470 = vpop.f32.mrf.mxu0
        %v471 = vadd.f32 %v416, %v470
        %472 = vmatmul.f32.gmra.mxu0 %v363
        %v473 = vpop.f32.mrf.mxu0
        %v474 = vadd.f32 %v416, %v473
        %475 = vmatmul.f32.gmra.mxu0 %v364
        %v476 = vpop.f32.mrf.mxu0
        %v477 = vadd.f32 %v416, %v476
        %478 = vdwg.mxu0
        %479 = vmatpush.msra.mxu0 %v412
        %480 = vmatpush.msra.mxu0 %v409
        %481 = vmatpush.msra.mxu0 %v406
        %482 = vmatpush.msra.mxu0 %v403
        %483 = vmatpush.msra.mxu0 %v400
        %484 = vmatpush.msra.mxu0 %v397
        %485 = vmatpush.msra.mxu0 %v394
        %486 = vmatpush.msra.mxu0 %v391
        %487 = vmatpush.msra.mxu0 %v388
        %488 = vmatpush.msra.mxu0 %v385
        %489 = vmatpush.msra.mxu0 %v382
        %490 = vmatpush.msra.mxu0 %v379
        %491 = vmatpush.msra.mxu0 %v376
        %492 = vmatpush.msra.mxu0 %v373
        %493 = vmatpush.msra.mxu0 %v370
        %494 = vmatpush.msra.mxu0 %v367
        %495 = vmatmul.f32.gmra.mxu0 %v361
        %v496 = vpop.f32.mrf.mxu0
        %v497 = vadd.f32 %v417, %v496
        %498 = vmatmul.f32.gmra.mxu0 %v362
        %v499 = vpop.f32.mrf.mxu0
        %v500 = vadd.f32 %v417, %v499
        %501 = vmatmul.f32.gmra.mxu0 %v363
        %v502 = vpop.f32.mrf.mxu0
        %v503 = vadd.f32 %v417, %v502
        %504 = vmatmul.f32.gmra.mxu0 %v364
        %v505 = vpop.f32.mrf.mxu0
        %v506 = vadd.f32 %v417, %v505
        %507 = vdwg.mxu0
        %512 = vrot.lane.b32.xlu0 %v439, 96
        %v513 = vpop.permute.xlu0 %512
        %514 = vrot.lane.b32.xlu0 %v442, 96
        %v515 = vpop.permute.xlu0 %514
        %516 = vrot.lane.b32.xlu0 %v445, 96
        %v517 = vpop.permute.xlu0 %516
        %518 = vrot.lane.b32.xlu0 %v448, 96
        %v519 = vpop.permute.xlu0 %518
        %520 = vrot.lane.b32.xlu0 %v439, 64
        %v521 = vpop.permute.xlu0 %520
        %522 = vrot.lane.b32.xlu0 %v442, 64
        %v523 = vpop.permute.xlu0 %522
        %524 = vrot.lane.b32.xlu0 %v445, 64
        %v525 = vpop.permute.xlu0 %524
        %526 = vrot.lane.b32.xlu0 %v448, 64
        %v527 = vpop.permute.xlu0 %526
        %528 = vrot.lane.b32.xlu0 %v439, 32
        %v529 = vpop.permute.xlu0 %528
        %530 = vrot.lane.b32.xlu0 %v442, 32
        %v531 = vpop.permute.xlu0 %530
        %532 = vrot.lane.b32.xlu0 %v445, 32
        %v533 = vpop.permute.xlu0 %532
        %534 = vrot.lane.b32.xlu0 %v448, 32
        %v535 = vpop.permute.xlu0 %534
        %540 = vrot.lane.b32.xlu0 %v468, 96
        %v541 = vpop.permute.xlu0 %540
        %542 = vrot.lane.b32.xlu0 %v471, 96
        %v543 = vpop.permute.xlu0 %542
        %544 = vrot.lane.b32.xlu0 %v474, 96
        %v545 = vpop.permute.xlu0 %544
        %546 = vrot.lane.b32.xlu0 %v477, 96
        %v547 = vpop.permute.xlu0 %546
        %548 = vrot.lane.b32.xlu0 %v468, 64
        %v549 = vpop.permute.xlu0 %548
        %550 = vrot.lane.b32.xlu0 %v471, 64
        %v551 = vpop.permute.xlu0 %550
        %552 = vrot.lane.b32.xlu0 %v474, 64
        %v553 = vpop.permute.xlu0 %552
        %554 = vrot.lane.b32.xlu0 %v477, 64
        %v555 = vpop.permute.xlu0 %554
        %556 = vrot.lane.b32.xlu0 %v468, 32
        %v557 = vpop.permute.xlu0 %556
        %558 = vrot.lane.b32.xlu0 %v471, 32
        %v559 = vpop.permute.xlu0 %558
        %560 = vrot.lane.b32.xlu0 %v474, 32
        %v561 = vpop.permute.xlu0 %560
        %562 = vrot.lane.b32.xlu0 %v477, 32
        %v563 = vpop.permute.xlu0 %562
        %568 = vrot.lane.b32.xlu0 %v497, 96
        %v569 = vpop.permute.xlu0 %568
        %570 = vrot.lane.b32.xlu0 %v500, 96
        %v571 = vpop.permute.xlu0 %570
        %572 = vrot.lane.b32.xlu0 %v503, 96
        %v573 = vpop.permute.xlu0 %572
        %574 = vrot.lane.b32.xlu0 %v506, 96
        %v575 = vpop.permute.xlu0 %574
        %580 = vrot.lane.b32.xlu0 %v497, 64
        %v581 = vpop.permute.xlu0 %580
        %582 = vrot.lane.b32.xlu0 %v500, 64
        %v583 = vpop.permute.xlu0 %582
        %584 = vrot.lane.b32.xlu0 %v503, 64
        %v585 = vpop.permute.xlu0 %584
        %586 = vrot.lane.b32.xlu0 %v506, 64
        %v587 = vpop.permute.xlu0 %586
        %592 = vrot.lane.b32.xlu0 %v497, 32
        %v593 = vpop.permute.xlu0 %592
        %594 = vrot.lane.b32.xlu0 %v500, 32
        %v595 = vpop.permute.xlu0 %594
        %596 = vrot.lane.b32.xlu0 %v503, 32
        %v597 = vpop.permute.xlu0 %596
        %598 = vrot.lane.b32.xlu0 %v506, 32
        %v599 = vpop.permute.xlu0 %598
        %vm604 = vcmask 261120
        %v605 = vsel %vm604, %v439, 0
        %v607 = vsel %vm604, %v442, 0
        %v609 = vsel %vm604, %v445, 0
        %v611 = vsel %vm604, %v448, 0
        %v613 = vsel %vm604, %v468, 0
        %v615 = vsel %vm604, %v471, 0
        %v617 = vsel %vm604, %v474, 0
        %v619 = vsel %vm604, %v477, 0
        %621 = vmatpush.xpose.msra.mxu0 0.0
        %622 = vmatpush.xpose.msra.mxu0 0.0
        %623 = vmatpush.xpose.msra.mxu0 0.0
        %624 = vmatpush.xpose.msra.mxu0 0.0
        %625 = vmatpush.xpose.msra.mxu0 0.0
        %626 = vmatpush.xpose.msra.mxu0 0.0
        %627 = vmatpush.xpose.msra.mxu0 0.0
        %628 = vmatpush.xpose.msra.mxu0 0.0
        %629 = vmatpush.xpose.msra.mxu0 0.0
        %630 = vmatpush.xpose.msra.mxu0 0.0
        %631 = vmatpush.xpose.msra.mxu0 0.0
        %632 = vmatpush.xpose.msra.mxu0 0.0
        %633 = vmatpush.xpose.msra.mxu0 %v619
        %634 = vmatpush.xpose.msra.mxu0 %v617
        %635 = vmatpush.xpose.msra.mxu0 %v615
        %636 = vmatpush.xpose.msra.mxu0 %v613
        %637 = vmatmul.f32.gmra.mxu0 %v605
        %v638 = vpop.f32.mrf.mxu0
        %v639 = vadd.f32 0.0, %v638
        %640 = vmatmul.f32.gmra.mxu0 %v607
        %v641 = vpop.f32.mrf.mxu0
        %v642 = vadd.f32 0.0, %v641
        %643 = vmatmul.f32.gmra.mxu0 %v609
        %v644 = vpop.f32.mrf.mxu0
        %v645 = vadd.f32 0.0, %v644
        %646 = vmatmul.f32.gmra.mxu0 %v611
        %v647 = vpop.f32.mrf.mxu0
        %v648 = vadd.f32 0.0, %v647
        %649 = vdwg.mxu0
        %v650 = vsel %vm604, %v513, 0
        %v652 = vsel %vm604, %v515, 0
        %v654 = vsel %vm604, %v517, 0
        %v656 = vsel %vm604, %v519, 0
        %v658 = vsel %vm604, %v541, 0
        %v660 = vsel %vm604, %v543, 0
        %v662 = vsel %vm604, %v545, 0
        %v664 = vsel %vm604, %v547, 0
        %666 = vmatpush.xpose.msra.mxu0 0.0
        %667 = vmatpush.xpose.msra.mxu0 0.0
        %668 = vmatpush.xpose.msra.mxu0 0.0
        %669 = vmatpush.xpose.msra.mxu0 0.0
        %670 = vmatpush.xpose.msra.mxu0 0.0
        %671 = vmatpush.xpose.msra.mxu0 0.0
        %672 = vmatpush.xpose.msra.mxu0 0.0
        %673 = vmatpush.xpose.msra.mxu0 0.0
        %674 = vmatpush.xpose.msra.mxu0 0.0
        %675 = vmatpush.xpose.msra.mxu0 0.0
        %676 = vmatpush.xpose.msra.mxu0 0.0
        %677 = vmatpush.xpose.msra.mxu0 0.0
        %678 = vmatpush.xpose.msra.mxu0 %v664
        %679 = vmatpush.xpose.msra.mxu0 %v662
        %680 = vmatpush.xpose.msra.mxu0 %v660
        %681 = vmatpush.xpose.msra.mxu0 %v658
        %682 = vmatmul.f32.gmra.mxu0 %v650
        %v683 = vpop.f32.mrf.mxu0
        %v684 = vadd.f32 0.0, %v683
        %685 = vmatmul.f32.gmra.mxu0 %v652
        %v686 = vpop.f32.mrf.mxu0
        %v687 = vadd.f32 0.0, %v686
        %688 = vmatmul.f32.gmra.mxu0 %v654
        %v689 = vpop.f32.mrf.mxu0
        %v690 = vadd.f32 0.0, %v689
        %691 = vmatmul.f32.gmra.mxu0 %v656
        %v692 = vpop.f32.mrf.mxu0
        %v693 = vadd.f32 0.0, %v692
        %694 = vdwg.mxu0
        %v695 = vsel %vm604, %v521, 0
        %v697 = vsel %vm604, %v523, 0
        %v699 = vsel %vm604, %v525, 0
        %v701 = vsel %vm604, %v527, 0
        %v703 = vsel %vm604, %v549, 0
        %v705 = vsel %vm604, %v551, 0
        %v707 = vsel %vm604, %v553, 0
        %v709 = vsel %vm604, %v555, 0
        %711 = vmatpush.xpose.msra.mxu0 0.0
        %712 = vmatpush.xpose.msra.mxu0 0.0
        %713 = vmatpush.xpose.msra.mxu0 0.0
        %714 = vmatpush.xpose.msra.mxu0 0.0
        %715 = vmatpush.xpose.msra.mxu0 0.0
        %716 = vmatpush.xpose.msra.mxu0 0.0
        %717 = vmatpush.xpose.msra.mxu0 0.0
        %718 = vmatpush.xpose.msra.mxu0 0.0
        %719 = vmatpush.xpose.msra.mxu0 0.0
        %720 = vmatpush.xpose.msra.mxu0 0.0
        %721 = vmatpush.xpose.msra.mxu0 0.0
        %722 = vmatpush.xpose.msra.mxu0 0.0
        %723 = vmatpush.xpose.msra.mxu0 %v709
        %724 = vmatpush.xpose.msra.mxu0 %v707
        %725 = vmatpush.xpose.msra.mxu0 %v705
        %726 = vmatpush.xpose.msra.mxu0 %v703
        %727 = vmatmul.f32.gmra.mxu0 %v695
        %v728 = vpop.f32.mrf.mxu0
        %v729 = vadd.f32 0.0, %v728
        %730 = vmatmul.f32.gmra.mxu0 %v697
        %v731 = vpop.f32.mrf.mxu0
        %v732 = vadd.f32 0.0, %v731
        %733 = vmatmul.f32.gmra.mxu0 %v699
        %v734 = vpop.f32.mrf.mxu0
        %v735 = vadd.f32 0.0, %v734
        %736 = vmatmul.f32.gmra.mxu0 %v701
        %v737 = vpop.f32.mrf.mxu0
        %v738 = vadd.f32 0.0, %v737
        %739 = vdwg.mxu0
        %v740 = vsel %vm604, %v529, 0
        %v742 = vsel %vm604, %v531, 0
        %v744 = vsel %vm604, %v533, 0
        %v746 = vsel %vm604, %v535, 0
        %v748 = vsel %vm604, %v557, 0
        %v750 = vsel %vm604, %v559, 0
        %v752 = vsel %vm604, %v561, 0
        %v754 = vsel %vm604, %v563, 0
        %756 = vmatpush.xpose.msra.mxu0 0.0
        %757 = vmatpush.xpose.msra.mxu0 0.0
        %758 = vmatpush.xpose.msra.mxu0 0.0
        %759 = vmatpush.xpose.msra.mxu0 0.0
        %760 = vmatpush.xpose.msra.mxu0 0.0
        %761 = vmatpush.xpose.msra.mxu0 0.0
        %762 = vmatpush.xpose.msra.mxu0 0.0
        %763 = vmatpush.xpose.msra.mxu0 0.0
        %764 = vmatpush.xpose.msra.mxu0 0.0
        %765 = vmatpush.xpose.msra.mxu0 0.0
        %766 = vmatpush.xpose.msra.mxu0 0.0
        %767 = vmatpush.xpose.msra.mxu0 0.0
        %768 = vmatpush.xpose.msra.mxu0 %v754
        %769 = vmatpush.xpose.msra.mxu0 %v752
        %770 = vmatpush.xpose.msra.mxu0 %v750
        %771 = vmatpush.xpose.msra.mxu0 %v748
        %772 = vmatmul.f32.gmra.mxu0 %v740
        %v773 = vpop.f32.mrf.mxu0
        %v774 = vadd.f32 0.0, %v773
        %775 = vmatmul.f32.gmra.mxu0 %v742
        %v776 = vpop.f32.mrf.mxu0
        %v777 = vadd.f32 0.0, %v776
        %778 = vmatmul.f32.gmra.mxu0 %v744
        %v779 = vpop.f32.mrf.mxu0
        %v780 = vadd.f32 0.0, %v779
        %781 = vmatmul.f32.gmra.mxu0 %v746
        %v782 = vpop.f32.mrf.mxu0
        %v783 = vadd.f32 0.0, %v782
        %784 = vdwg.mxu0
        %v785 = vsel %vm604, %v639, -inf
        %786 = vmax.xlane.f32.xlu0 %v785
        %v787 = vpop.xlane.xlu0 %786
        %v788 = vsel %vm604, %v642, -inf
        %789 = vmax.xlane.f32.xlu0 %v788
        %v790 = vpop.xlane.xlu0 %789
        %v791 = vsel %vm604, %v645, -inf
        %792 = vmax.xlane.f32.xlu0 %v791
        %v793 = vpop.xlane.xlu0 %792
        %v794 = vsel %vm604, %v648, -inf
        %795 = vmax.xlane.f32.xlu0 %v794
        %v796 = vpop.xlane.xlu0 %795
        %v797 = vsel %vm604, %v684, -inf
        %798 = vmax.xlane.f32.xlu0 %v797
        %v799 = vpop.xlane.xlu0 %798
        %v800 = vsel %vm604, %v687, -inf
        %801 = vmax.xlane.f32.xlu0 %v800
        %v802 = vpop.xlane.xlu0 %801
        %v803 = vsel %vm604, %v690, -inf
        %804 = vmax.xlane.f32.xlu0 %v803
        %v805 = vpop.xlane.xlu0 %804
        %v806 = vsel %vm604, %v693, -inf
        %807 = vmax.xlane.f32.xlu0 %v806
        %v808 = vpop.xlane.xlu0 %807
        %v809 = vsel %vm604, %v729, -inf
        %810 = vmax.xlane.f32.xlu0 %v809
        %v811 = vpop.xlane.xlu0 %810
        %v812 = vsel %vm604, %v732, -inf
        %813 = vmax.xlane.f32.xlu0 %v812
        %v814 = vpop.xlane.xlu0 %813
        %v815 = vsel %vm604, %v735, -inf
        %816 = vmax.xlane.f32.xlu0 %v815
        %v817 = vpop.xlane.xlu0 %816
        %v818 = vsel %vm604, %v738, -inf
        %819 = vmax.xlane.f32.xlu0 %v818
        %v820 = vpop.xlane.xlu0 %819
        %v821 = vsel %vm604, %v774, -inf
        %822 = vmax.xlane.f32.xlu0 %v821
        %v823 = vpop.xlane.xlu0 %822
        %v824 = vsel %vm604, %v777, -inf
        %825 = vmax.xlane.f32.xlu0 %v824
        %v826 = vpop.xlane.xlu0 %825
        %v827 = vsel %vm604, %v780, -inf
        %828 = vmax.xlane.f32.xlu0 %v827
        %v829 = vpop.xlane.xlu0 %828
        %v830 = vsel %vm604, %v783, -inf
        %831 = vmax.xlane.f32.xlu0 %v830
        %v832 = vpop.xlane.xlu0 %831
        %v833 = vsub.f32 %v639, %v787
        %v834 = vsub.f32 %v642, %v790
        %v835 = vsub.f32 %v645, %v793
        %v836 = vsub.f32 %v648, %v796
        %v837 = vsub.f32 %v684, %v799
        %v838 = vsub.f32 %v687, %v802
        %v839 = vsub.f32 %v690, %v805
        %v840 = vsub.f32 %v693, %v808
        %v841 = vsub.f32 %v729, %v811
        %v842 = vsub.f32 %v732, %v814
        %v843 = vsub.f32 %v735, %v817
        %v844 = vsub.f32 %v738, %v820
        %v845 = vsub.f32 %v774, %v823
        %v846 = vsub.f32 %v777, %v826
        %v847 = vsub.f32 %v780, %v829
        %v848 = vsub.f32 %v783, %v832
        %v849 = vmul.f32 %v833, 1.442695
        %v850 = vpow.pop %v849
        %v851 = vmul.f32 %v834, 1.442695
        %v852 = vpow.pop %v851
        %v853 = vmul.f32 %v835, 1.442695
        %v854 = vpow.pop %v853
        %v855 = vmul.f32 %v836, 1.442695
        %v856 = vpow.pop %v855
        %v857 = vmul.f32 %v837, 1.442695
        %v858 = vpow.pop %v857
        %v859 = vmul.f32 %v838, 1.442695
        %v860 = vpow.pop %v859
        %v861 = vmul.f32 %v839, 1.442695
        %v862 = vpow.pop %v861
        %v863 = vmul.f32 %v840, 1.442695
        %v864 = vpow.pop %v863
        %v865 = vmul.f32 %v841, 1.442695
        %v866 = vpow.pop %v865
        %v867 = vmul.f32 %v842, 1.442695
        %v868 = vpow.pop %v867
        %v869 = vmul.f32 %v843, 1.442695
        %v870 = vpow.pop %v869
        %v871 = vmul.f32 %v844, 1.442695
        %v872 = vpow.pop %v871
        %v873 = vmul.f32 %v845, 1.442695
        %v874 = vpow.pop %v873
        %v875 = vmul.f32 %v846, 1.442695
        %v876 = vpow.pop %v875
        %v877 = vmul.f32 %v847, 1.442695
        %v878 = vpow.pop %v877
        %v879 = vmul.f32 %v848, 1.442695
        %v880 = vpow.pop %v879
        %v881 = vld [vmem:[%s311] sm:$0xff]
        %v882 = vld [vmem:[%s311 + $0x8] sm:$0xff]
        %v883 = vld [vmem:[%s311 + $0x10] sm:$0xff]
        %v884 = vld [vmem:[%s311 + $0x18] sm:$0xff]
        %v885 = vmul.f32 %v850, %v881
        %v886 = vmul.f32 %v852, %v882
        %v887 = vmul.f32 %v854, %v883
        %v888 = vmul.f32 %v856, %v884
        %v889 = vmul.f32 %v858, %v881
        %v890 = vmul.f32 %v860, %v882
        %v891 = vmul.f32 %v862, %v883
        %v892 = vmul.f32 %v864, %v884
        %v893 = vmul.f32 %v866, %v881
        %v894 = vmul.f32 %v868, %v882
        %v895 = vmul.f32 %v870, %v883
        %v896 = vmul.f32 %v872, %v884
        %v897 = vmul.f32 %v874, %v881
        %v898 = vmul.f32 %v876, %v882
        %v899 = vmul.f32 %v878, %v883
        %v900 = vmul.f32 %v880, %v884
        %v901 = vsel %vm604, %v885, 0.0
        %902 = vadd.xlane.f32.xlu0 %v901
        %v903 = vpop.xlane.xlu0 %902
        %v904 = vsel %vm604, %v886, 0.0
        %905 = vadd.xlane.f32.xlu0 %v904
        %v906 = vpop.xlane.xlu0 %905
        %v907 = vsel %vm604, %v887, 0.0
        %908 = vadd.xlane.f32.xlu0 %v907
        %v909 = vpop.xlane.xlu0 %908
        %v910 = vsel %vm604, %v888, 0.0
        %911 = vadd.xlane.f32.xlu0 %v910
        %v912 = vpop.xlane.xlu0 %911
        %v913 = vsel %vm604, %v889, 0.0
        %914 = vadd.xlane.f32.xlu0 %v913
        %v915 = vpop.xlane.xlu0 %914
        %v916 = vsel %vm604, %v890, 0.0
        %917 = vadd.xlane.f32.xlu0 %v916
        %v918 = vpop.xlane.xlu0 %917
        %v919 = vsel %vm604, %v891, 0.0
        %920 = vadd.xlane.f32.xlu0 %v919
        %v921 = vpop.xlane.xlu0 %920
        %v922 = vsel %vm604, %v892, 0.0
        %923 = vadd.xlane.f32.xlu0 %v922
        %v924 = vpop.xlane.xlu0 %923
        %v925 = vsel %vm604, %v893, 0.0
        %926 = vadd.xlane.f32.xlu0 %v925
        %v927 = vpop.xlane.xlu0 %926
        %v928 = vsel %vm604, %v894, 0.0
        %929 = vadd.xlane.f32.xlu0 %v928
        %v930 = vpop.xlane.xlu0 %929
        %v931 = vsel %vm604, %v895, 0.0
        %932 = vadd.xlane.f32.xlu0 %v931
        %v933 = vpop.xlane.xlu0 %932
        %v934 = vsel %vm604, %v896, 0.0
        %935 = vadd.xlane.f32.xlu0 %v934
        %v936 = vpop.xlane.xlu0 %935
        %v937 = vsel %vm604, %v897, 0.0
        %938 = vadd.xlane.f32.xlu0 %v937
        %v939 = vpop.xlane.xlu0 %938
        %v940 = vsel %vm604, %v898, 0.0
        %941 = vadd.xlane.f32.xlu0 %v940
        %v942 = vpop.xlane.xlu0 %941
        %v943 = vsel %vm604, %v899, 0.0
        %944 = vadd.xlane.f32.xlu0 %v943
        %v945 = vpop.xlane.xlu0 %944
        %v946 = vsel %vm604, %v900, 0.0
        %947 = vadd.xlane.f32.xlu0 %v946
        %v948 = vpop.xlane.xlu0 %947
        %v949 = vsel %vm604, %v850, 0.0
        %950 = vadd.xlane.f32.xlu0 %v949
        %v951 = vpop.xlane.xlu0 %950
        %v952 = vsel %vm604, %v852, 0.0
        %953 = vadd.xlane.f32.xlu0 %v952
        %v954 = vpop.xlane.xlu0 %953
        %v955 = vsel %vm604, %v854, 0.0
        %956 = vadd.xlane.f32.xlu0 %v955
        %v957 = vpop.xlane.xlu0 %956
        %v958 = vsel %vm604, %v856, 0.0
        %959 = vadd.xlane.f32.xlu0 %v958
        %v960 = vpop.xlane.xlu0 %959
        %v961 = vsel %vm604, %v858, 0.0
        %962 = vadd.xlane.f32.xlu0 %v961
        %v963 = vpop.xlane.xlu0 %962
        %v964 = vsel %vm604, %v860, 0.0
        %965 = vadd.xlane.f32.xlu0 %v964
        %v966 = vpop.xlane.xlu0 %965
        %v967 = vsel %vm604, %v862, 0.0
        %968 = vadd.xlane.f32.xlu0 %v967
        %v969 = vpop.xlane.xlu0 %968
        %v970 = vsel %vm604, %v864, 0.0
        %971 = vadd.xlane.f32.xlu0 %v970
        %v972 = vpop.xlane.xlu0 %971
        %v973 = vsel %vm604, %v866, 0.0
        %974 = vadd.xlane.f32.xlu0 %v973
        %v975 = vpop.xlane.xlu0 %974
        %v976 = vsel %vm604, %v868, 0.0
        %977 = vadd.xlane.f32.xlu0 %v976
        %v978 = vpop.xlane.xlu0 %977
        %v979 = vsel %vm604, %v870, 0.0
        %980 = vadd.xlane.f32.xlu0 %v979
        %v981 = vpop.xlane.xlu0 %980
        %v982 = vsel %vm604, %v872, 0.0
        %983 = vadd.xlane.f32.xlu0 %v982
        %v984 = vpop.xlane.xlu0 %983
        %v985 = vsel %vm604, %v874, 0.0
        %986 = vadd.xlane.f32.xlu0 %v985
        %v987 = vpop.xlane.xlu0 %986
        %v988 = vsel %vm604, %v876, 0.0
        %989 = vadd.xlane.f32.xlu0 %v988
        %v990 = vpop.xlane.xlu0 %989
        %v991 = vsel %vm604, %v878, 0.0
        %992 = vadd.xlane.f32.xlu0 %v991
        %v993 = vpop.xlane.xlu0 %992
        %v994 = vsel %vm604, %v880, 0.0
        %995 = vadd.xlane.f32.xlu0 %v994
        %v996 = vpop.xlane.xlu0 %995
        %v997 = vmul.f32 %v951, 1e-15
        %v998 = vmul.f32 %v954, 1e-15
        %v999 = vmul.f32 %v957, 1e-15
        %v1000 = vmul.f32 %v960, 1e-15
        %v1001 = vmul.f32 %v963, 1e-15
        %v1002 = vmul.f32 %v966, 1e-15
        %v1003 = vmul.f32 %v969, 1e-15
        %v1004 = vmul.f32 %v972, 1e-15
        %v1005 = vmul.f32 %v975, 1e-15
        %v1006 = vmul.f32 %v978, 1e-15
        %v1007 = vmul.f32 %v981, 1e-15
        %v1008 = vmul.f32 %v984, 1e-15
        %v1009 = vmul.f32 %v987, 1e-15
        %v1010 = vmul.f32 %v990, 1e-15
        %v1011 = vmul.f32 %v993, 1e-15
        %v1012 = vmul.f32 %v996, 1e-15
        %v1013 = vadd.f32 %v903, %v997
        %v1014 = vadd.f32 %v906, %v998
        %v1015 = vadd.f32 %v909, %v999
        %v1016 = vadd.f32 %v912, %v1000
        %v1017 = vadd.f32 %v915, %v1001
        %v1018 = vadd.f32 %v918, %v1002
        %v1019 = vadd.f32 %v921, %v1003
        %v1020 = vadd.f32 %v924, %v1004
        %v1021 = vadd.f32 %v927, %v1005
        %v1022 = vadd.f32 %v930, %v1006
        %v1023 = vadd.f32 %v933, %v1007
        %v1024 = vadd.f32 %v936, %v1008
        %v1025 = vadd.f32 %v939, %v1009
        %v1026 = vadd.f32 %v942, %v1010
        %v1027 = vadd.f32 %v945, %v1011
        %v1028 = vadd.f32 %v948, %v1012
        %v1030 = vsel %vm604, %v885, 0
        %v1033 = vsel %vm604, %v886, 0
        %v1036 = vsel %vm604, %v887, 0
        %v1039 = vsel %vm604, %v888, 0
        %1041 = vmatpush.msra.mxu0 0.0
        %1042 = vmatpush.msra.mxu0 0.0
        %1043 = vmatpush.msra.mxu0 0.0
        %1044 = vmatpush.msra.mxu0 0.0
        %1045 = vmatpush.msra.mxu0 0.0
        %1046 = vmatpush.msra.mxu0 0.0
        %1047 = vmatpush.msra.mxu0 0.0
        %1048 = vmatpush.msra.mxu0 0.0
        %1049 = vmatpush.msra.mxu0 0.0
        %1050 = vmatpush.msra.mxu0 0.0
        %1051 = vmatpush.msra.mxu0 0.0
        %1052 = vmatpush.msra.mxu0 0.0
        %1053 = vmatpush.msra.mxu0 %v506
        %1054 = vmatpush.msra.mxu0 %v503
        %1055 = vmatpush.msra.mxu0 %v500
        %1056 = vmatpush.msra.mxu0 %v497
        %1057 = vmatmul.f32.gmra.mxu0 %v1030
        %v1058 = vpop.f32.mrf.mxu0
        %v1059 = vadd.f32 0.0, %v1058
        %1060 = vmatmul.f32.gmra.mxu0 %v1033
        %v1061 = vpop.f32.mrf.mxu0
        %v1062 = vadd.f32 0.0, %v1061
        %1063 = vmatmul.f32.gmra.mxu0 %v1036
        %v1064 = vpop.f32.mrf.mxu0
        %v1065 = vadd.f32 0.0, %v1064
        %1066 = vmatmul.f32.gmra.mxu0 %v1039
        %v1067 = vpop.f32.mrf.mxu0
        %v1068 = vadd.f32 0.0, %v1067
        %1069 = vdwg.mxu0
        %v1071 = vsel %vm604, %v889, 0
        %v1074 = vsel %vm604, %v890, 0
        %v1077 = vsel %vm604, %v891, 0
        %v1080 = vsel %vm604, %v892, 0
        %1082 = vmatpush.msra.mxu0 0.0
        %1083 = vmatpush.msra.mxu0 0.0
        %1084 = vmatpush.msra.mxu0 0.0
        %1085 = vmatpush.msra.mxu0 0.0
        %1086 = vmatpush.msra.mxu0 0.0
        %1087 = vmatpush.msra.mxu0 0.0
        %1088 = vmatpush.msra.mxu0 0.0
        %1089 = vmatpush.msra.mxu0 0.0
        %1090 = vmatpush.msra.mxu0 0.0
        %1091 = vmatpush.msra.mxu0 0.0
        %1092 = vmatpush.msra.mxu0 0.0
        %1093 = vmatpush.msra.mxu0 0.0
        %1094 = vmatpush.msra.mxu0 %v575
        %1095 = vmatpush.msra.mxu0 %v573
        %1096 = vmatpush.msra.mxu0 %v571
        %1097 = vmatpush.msra.mxu0 %v569
        %1098 = vmatmul.f32.gmra.mxu0 %v1071
        %v1099 = vpop.f32.mrf.mxu0
        %v1100 = vadd.f32 0.0, %v1099
        %1101 = vmatmul.f32.gmra.mxu0 %v1074
        %v1102 = vpop.f32.mrf.mxu0
        %v1103 = vadd.f32 0.0, %v1102
        %1104 = vmatmul.f32.gmra.mxu0 %v1077
        %v1105 = vpop.f32.mrf.mxu0
        %v1106 = vadd.f32 0.0, %v1105
        %1107 = vmatmul.f32.gmra.mxu0 %v1080
        %v1108 = vpop.f32.mrf.mxu0
        %v1109 = vadd.f32 0.0, %v1108
        %1110 = vdwg.mxu0
        %v1112 = vsel %vm604, %v893, 0
        %v1115 = vsel %vm604, %v894, 0
        %v1118 = vsel %vm604, %v895, 0
        %v1121 = vsel %vm604, %v896, 0
        %1123 = vmatpush.msra.mxu0 0.0
        %1124 = vmatpush.msra.mxu0 0.0
        %1125 = vmatpush.msra.mxu0 0.0
        %1126 = vmatpush.msra.mxu0 0.0
        %1127 = vmatpush.msra.mxu0 0.0
        %1128 = vmatpush.msra.mxu0 0.0
        %1129 = vmatpush.msra.mxu0 0.0
        %1130 = vmatpush.msra.mxu0 0.0
        %1131 = vmatpush.msra.mxu0 0.0
        %1132 = vmatpush.msra.mxu0 0.0
        %1133 = vmatpush.msra.mxu0 0.0
        %1134 = vmatpush.msra.mxu0 0.0
        %1135 = vmatpush.msra.mxu0 %v587
        %1136 = vmatpush.msra.mxu0 %v585
        %1137 = vmatpush.msra.mxu0 %v583
        %1138 = vmatpush.msra.mxu0 %v581
        %1139 = vmatmul.f32.gmra.mxu0 %v1112
        %v1140 = vpop.f32.mrf.mxu0
        %v1141 = vadd.f32 0.0, %v1140
        %1142 = vmatmul.f32.gmra.mxu0 %v1115
        %v1143 = vpop.f32.mrf.mxu0
        %v1144 = vadd.f32 0.0, %v1143
        %1145 = vmatmul.f32.gmra.mxu0 %v1118
        %v1146 = vpop.f32.mrf.mxu0
        %v1147 = vadd.f32 0.0, %v1146
        %1148 = vmatmul.f32.gmra.mxu0 %v1121
        %v1149 = vpop.f32.mrf.mxu0
        %v1150 = vadd.f32 0.0, %v1149
        %1151 = vdwg.mxu0
        %v1153 = vsel %vm604, %v897, 0
        %v1156 = vsel %vm604, %v898, 0
        %v1159 = vsel %vm604, %v899, 0
        %v1162 = vsel %vm604, %v900, 0
        %1164 = vmatpush.msra.mxu0 0.0
        %1165 = vmatpush.msra.mxu0 0.0
        %1166 = vmatpush.msra.mxu0 0.0
        %1167 = vmatpush.msra.mxu0 0.0
        %1168 = vmatpush.msra.mxu0 0.0
        %1169 = vmatpush.msra.mxu0 0.0
        %1170 = vmatpush.msra.mxu0 0.0
        %1171 = vmatpush.msra.mxu0 0.0
        %1172 = vmatpush.msra.mxu0 0.0
        %1173 = vmatpush.msra.mxu0 0.0
        %1174 = vmatpush.msra.mxu0 0.0
        %1175 = vmatpush.msra.mxu0 0.0
        %1176 = vmatpush.msra.mxu0 %v599
        %1177 = vmatpush.msra.mxu0 %v597
        %1178 = vmatpush.msra.mxu0 %v595
        %1179 = vmatpush.msra.mxu0 %v593
        %1180 = vmatmul.f32.gmra.mxu0 %v1153
        %v1181 = vpop.f32.mrf.mxu0
        %v1182 = vadd.f32 0.0, %v1181
        %1183 = vmatmul.f32.gmra.mxu0 %v1156
        %v1184 = vpop.f32.mrf.mxu0
        %v1185 = vadd.f32 0.0, %v1184
        %1186 = vmatmul.f32.gmra.mxu0 %v1159
        %v1187 = vpop.f32.mrf.mxu0
        %v1188 = vadd.f32 0.0, %v1187
        %1189 = vmatmul.f32.gmra.mxu0 %v1162
        %v1190 = vpop.f32.mrf.mxu0
        %v1191 = vadd.f32 0.0, %v1190
        %1192 = vdwg.mxu0
        %v1193 = vrcp.pop %v1013
        %v1194 = vmul.f32 %v1013, %v1193
        %v1195 = vsub.f32 1.0, %v1194
        %v1196 = vmul.f32 %v1193, %v1195
        %v1197 = vadd.f32 %v1193, %v1196
        %vm1198 = vweird.f32 %v1013
        %vm1199 = vweird.f32 %v1193
        %vm1200 = vmor %vm1198, %vm1199
        %v1201 = vsel %vm1200, %v1193, %v1197
        %v1202 = vand.u32 2147483647, %v1013
        %vm1203 = vcmp.eq.f32.partialorder %v1202, 8.507059e+37
        %v1204 = vand.u32 %v1013, 2147483648
        %v1205 = vor.u32 1.1754944e-38, %v1204
        %v1206 = vsel %vm1203, %v1205, %v1201
        %v1207 = vrcp.pop %v1014
        %v1208 = vmul.f32 %v1014, %v1207
        %v1209 = vsub.f32 1.0, %v1208
        %v1210 = vmul.f32 %v1207, %v1209
        %v1211 = vadd.f32 %v1207, %v1210
        %vm1212 = vweird.f32 %v1014
        %vm1213 = vweird.f32 %v1207
        %vm1214 = vmor %vm1212, %vm1213
        %v1215 = vsel %vm1214, %v1207, %v1211
        %v1216 = vand.u32 2147483647, %v1014
        %vm1217 = vcmp.eq.f32.partialorder %v1216, 8.507059e+37
        %v1218 = vand.u32 %v1014, 2147483648
        %v1219 = vor.u32 1.1754944e-38, %v1218
        %v1220 = vsel %vm1217, %v1219, %v1215
        %v1221 = vrcp.pop %v1015
        %v1222 = vmul.f32 %v1015, %v1221
        %v1223 = vsub.f32 1.0, %v1222
        %v1224 = vmul.f32 %v1221, %v1223
        %v1225 = vadd.f32 %v1221, %v1224
        %vm1226 = vweird.f32 %v1015
        %vm1227 = vweird.f32 %v1221
        %vm1228 = vmor %vm1226, %vm1227
        %v1229 = vsel %vm1228, %v1221, %v1225
        %v1230 = vand.u32 2147483647, %v1015
        %vm1231 = vcmp.eq.f32.partialorder %v1230, 8.507059e+37
        %v1232 = vand.u32 %v1015, 2147483648
        %v1233 = vor.u32 1.1754944e-38, %v1232
        %v1234 = vsel %vm1231, %v1233, %v1229
        %v1235 = vrcp.pop %v1016
        %v1236 = vmul.f32 %v1016, %v1235
        %v1237 = vsub.f32 1.0, %v1236
        %v1238 = vmul.f32 %v1235, %v1237
        %v1239 = vadd.f32 %v1235, %v1238
        %vm1240 = vweird.f32 %v1016
        %vm1241 = vweird.f32 %v1235
        %vm1242 = vmor %vm1240, %vm1241
        %v1243 = vsel %vm1242, %v1235, %v1239
        %v1244 = vand.u32 2147483647, %v1016
        %vm1245 = vcmp.eq.f32.partialorder %v1244, 8.507059e+37
        %v1246 = vand.u32 %v1016, 2147483648
        %v1247 = vor.u32 1.1754944e-38, %v1246
        %v1248 = vsel %vm1245, %v1247, %v1243
        %v1249 = vrcp.pop %v1017
        %v1250 = vmul.f32 %v1017, %v1249
        %v1251 = vsub.f32 1.0, %v1250
        %v1252 = vmul.f32 %v1249, %v1251
        %v1253 = vadd.f32 %v1249, %v1252
        %vm1254 = vweird.f32 %v1017
        %vm1255 = vweird.f32 %v1249
        %vm1256 = vmor %vm1254, %vm1255
        %v1257 = vsel %vm1256, %v1249, %v1253
        %v1258 = vand.u32 2147483647, %v1017
        %vm1259 = vcmp.eq.f32.partialorder %v1258, 8.507059e+37
        %v1260 = vand.u32 %v1017, 2147483648
        %v1261 = vor.u32 1.1754944e-38, %v1260
        %v1262 = vsel %vm1259, %v1261, %v1257
        %v1263 = vrcp.pop %v1018
        %v1264 = vmul.f32 %v1018, %v1263
        %v1265 = vsub.f32 1.0, %v1264
        %v1266 = vmul.f32 %v1263, %v1265
        %v1267 = vadd.f32 %v1263, %v1266
        %vm1268 = vweird.f32 %v1018
        %vm1269 = vweird.f32 %v1263
        %vm1270 = vmor %vm1268, %vm1269
        %v1271 = vsel %vm1270, %v1263, %v1267
        %v1272 = vand.u32 2147483647, %v1018
        %vm1273 = vcmp.eq.f32.partialorder %v1272, 8.507059e+37
        %v1274 = vand.u32 %v1018, 2147483648
        %v1275 = vor.u32 1.1754944e-38, %v1274
        %v1276 = vsel %vm1273, %v1275, %v1271
        %v1277 = vrcp.pop %v1019
        %v1278 = vmul.f32 %v1019, %v1277
        %v1279 = vsub.f32 1.0, %v1278
        %v1280 = vmul.f32 %v1277, %v1279
        %v1281 = vadd.f32 %v1277, %v1280
        %vm1282 = vweird.f32 %v1019
        %vm1283 = vweird.f32 %v1277
        %vm1284 = vmor %vm1282, %vm1283
        %v1285 = vsel %vm1284, %v1277, %v1281
        %v1286 = vand.u32 2147483647, %v1019
        %vm1287 = vcmp.eq.f32.partialorder %v1286, 8.507059e+37
        %v1288 = vand.u32 %v1019, 2147483648
        %v1289 = vor.u32 1.1754944e-38, %v1288
        %v1290 = vsel %vm1287, %v1289, %v1285
        %v1291 = vrcp.pop %v1020
        %v1292 = vmul.f32 %v1020, %v1291
        %v1293 = vsub.f32 1.0, %v1292
        %v1294 = vmul.f32 %v1291, %v1293
        %v1295 = vadd.f32 %v1291, %v1294
        %vm1296 = vweird.f32 %v1020
        %vm1297 = vweird.f32 %v1291
        %vm1298 = vmor %vm1296, %vm1297
        %v1299 = vsel %vm1298, %v1291, %v1295
        %v1300 = vand.u32 2147483647, %v1020
        %vm1301 = vcmp.eq.f32.partialorder %v1300, 8.507059e+37
        %v1302 = vand.u32 %v1020, 2147483648
        %v1303 = vor.u32 1.1754944e-38, %v1302
        %v1304 = vsel %vm1301, %v1303, %v1299
        %v1305 = vrcp.pop %v1021
        %v1306 = vmul.f32 %v1021, %v1305
        %v1307 = vsub.f32 1.0, %v1306
        %v1308 = vmul.f32 %v1305, %v1307
        %v1309 = vadd.f32 %v1305, %v1308
        %vm1310 = vweird.f32 %v1021
        %vm1311 = vweird.f32 %v1305
        %vm1312 = vmor %vm1310, %vm1311
        %v1313 = vsel %vm1312, %v1305, %v1309
        %v1314 = vand.u32 2147483647, %v1021
        %vm1315 = vcmp.eq.f32.partialorder %v1314, 8.507059e+37
        %v1316 = vand.u32 %v1021, 2147483648
        %v1317 = vor.u32 1.1754944e-38, %v1316
        %v1318 = vsel %vm1315, %v1317, %v1313
        %v1319 = vrcp.pop %v1022
        %v1320 = vmul.f32 %v1022, %v1319
        %v1321 = vsub.f32 1.0, %v1320
        %v1322 = vmul.f32 %v1319, %v1321
        %v1323 = vadd.f32 %v1319, %v1322
        %vm1324 = vweird.f32 %v1022
        %vm1325 = vweird.f32 %v1319
        %vm1326 = vmor %vm1324, %vm1325
        %v1327 = vsel %vm1326, %v1319, %v1323
        %v1328 = vand.u32 2147483647, %v1022
        %vm1329 = vcmp.eq.f32.partialorder %v1328, 8.507059e+37
        %v1330 = vand.u32 %v1022, 2147483648
        %v1331 = vor.u32 1.1754944e-38, %v1330
        %v1332 = vsel %vm1329, %v1331, %v1327
        %v1333 = vrcp.pop %v1023
        %v1334 = vmul.f32 %v1023, %v1333
        %v1335 = vsub.f32 1.0, %v1334
        %v1336 = vmul.f32 %v1333, %v1335
        %v1337 = vadd.f32 %v1333, %v1336
        %vm1338 = vweird.f32 %v1023
        %vm1339 = vweird.f32 %v1333
        %vm1340 = vmor %vm1338, %vm1339
        %v1341 = vsel %vm1340, %v1333, %v1337
        %v1342 = vand.u32 2147483647, %v1023
        %vm1343 = vcmp.eq.f32.partialorder %v1342, 8.507059e+37
        %v1344 = vand.u32 %v1023, 2147483648
        %v1345 = vor.u32 1.1754944e-38, %v1344
        %v1346 = vsel %vm1343, %v1345, %v1341
        %v1347 = vrcp.pop %v1024
        %v1348 = vmul.f32 %v1024, %v1347
        %v1349 = vsub.f32 1.0, %v1348
        %v1350 = vmul.f32 %v1347, %v1349
        %v1351 = vadd.f32 %v1347, %v1350
        %vm1352 = vweird.f32 %v1024
        %vm1353 = vweird.f32 %v1347
        %vm1354 = vmor %vm1352, %vm1353
        %v1355 = vsel %vm1354, %v1347, %v1351
        %v1356 = vand.u32 2147483647, %v1024
        %vm1357 = vcmp.eq.f32.partialorder %v1356, 8.507059e+37
        %v1358 = vand.u32 %v1024, 2147483648
        %v1359 = vor.u32 1.1754944e-38, %v1358
        %v1360 = vsel %vm1357, %v1359, %v1355
        %v1361 = vrcp.pop %v1025
        %v1362 = vmul.f32 %v1025, %v1361
        %v1363 = vsub.f32 1.0, %v1362
        %v1364 = vmul.f32 %v1361, %v1363
        %v1365 = vadd.f32 %v1361, %v1364
        %vm1366 = vweird.f32 %v1025
        %vm1367 = vweird.f32 %v1361
        %vm1368 = vmor %vm1366, %vm1367
        %v1369 = vsel %vm1368, %v1361, %v1365
        %v1370 = vand.u32 2147483647, %v1025
        %vm1371 = vcmp.eq.f32.partialorder %v1370, 8.507059e+37
        %v1372 = vand.u32 %v1025, 2147483648
        %v1373 = vor.u32 1.1754944e-38, %v1372
        %v1374 = vsel %vm1371, %v1373, %v1369
        %v1375 = vrcp.pop %v1026
        %v1376 = vmul.f32 %v1026, %v1375
        %v1377 = vsub.f32 1.0, %v1376
        %v1378 = vmul.f32 %v1375, %v1377
        %v1379 = vadd.f32 %v1375, %v1378
        %vm1380 = vweird.f32 %v1026
        %vm1381 = vweird.f32 %v1375
        %vm1382 = vmor %vm1380, %vm1381
        %v1383 = vsel %vm1382, %v1375, %v1379
        %v1384 = vand.u32 2147483647, %v1026
        %vm1385 = vcmp.eq.f32.partialorder %v1384, 8.507059e+37
        %v1386 = vand.u32 %v1026, 2147483648
        %v1387 = vor.u32 1.1754944e-38, %v1386
        %v1388 = vsel %vm1385, %v1387, %v1383
        %v1389 = vrcp.pop %v1027
        %v1390 = vmul.f32 %v1027, %v1389
        %v1391 = vsub.f32 1.0, %v1390
        %v1392 = vmul.f32 %v1389, %v1391
        %v1393 = vadd.f32 %v1389, %v1392
        %vm1394 = vweird.f32 %v1027
        %vm1395 = vweird.f32 %v1389
        %vm1396 = vmor %vm1394, %vm1395
        %v1397 = vsel %vm1396, %v1389, %v1393
        %v1398 = vand.u32 2147483647, %v1027
        %vm1399 = vcmp.eq.f32.partialorder %v1398, 8.507059e+37
        %v1400 = vand.u32 %v1027, 2147483648
        %v1401 = vor.u32 1.1754944e-38, %v1400
        %v1402 = vsel %vm1399, %v1401, %v1397
        %v1403 = vrcp.pop %v1028
        %v1404 = vmul.f32 %v1028, %v1403
        %v1405 = vsub.f32 1.0, %v1404
        %v1406 = vmul.f32 %v1403, %v1405
        %v1407 = vadd.f32 %v1403, %v1406
        %vm1408 = vweird.f32 %v1028
        %vm1409 = vweird.f32 %v1403
        %vm1410 = vmor %vm1408, %vm1409
        %v1411 = vsel %vm1410, %v1403, %v1407
        %v1412 = vand.u32 2147483647, %v1028
        %vm1413 = vcmp.eq.f32.partialorder %v1412, 8.507059e+37
        %v1414 = vand.u32 %v1028, 2147483648
        %v1415 = vor.u32 1.1754944e-38, %v1414
        %v1416 = vsel %vm1413, %v1415, %v1411
        %v1417 = vmul.f32 %v1059, %v1206
        %v1418 = vmul.f32 %v1062, %v1220
        %v1419 = vmul.f32 %v1065, %v1234
        %v1420 = vmul.f32 %v1068, %v1248
        %v1421 = vmul.f32 %v1100, %v1262
        %v1422 = vmul.f32 %v1103, %v1276
        %v1423 = vmul.f32 %v1106, %v1290
        %v1424 = vmul.f32 %v1109, %v1304
        %v1425 = vmul.f32 %v1141, %v1318
        %v1426 = vmul.f32 %v1144, %v1332
        %v1427 = vmul.f32 %v1147, %v1346
        %v1428 = vmul.f32 %v1150, %v1360
        %v1429 = vmul.f32 %v1182, %v1374
        %v1430 = vmul.f32 %v1185, %v1388
        %v1431 = vmul.f32 %v1188, %v1402
        %v1432 = vmul.f32 %v1191, %v1416
        %1437 = vrot.lane.b32.xlu0 %v1421, 32
        %v1438 = vpop.permute.xlu0 %1437
        %1439 = vrot.lane.b32.xlu0 %v1422, 32
        %v1440 = vpop.permute.xlu0 %1439
        %1441 = vrot.lane.b32.xlu0 %v1423, 32
        %v1442 = vpop.permute.xlu0 %1441
        %1443 = vrot.lane.b32.xlu0 %v1424, 32
        %v1444 = vpop.permute.xlu0 %1443
        %1453 = vrot.lane.b32.xlu0 %v1425, 64
        %v1454 = vpop.permute.xlu0 %1453
        %1455 = vrot.lane.b32.xlu0 %v1426, 64
        %v1456 = vpop.permute.xlu0 %1455
        %1457 = vrot.lane.b32.xlu0 %v1427, 64
        %v1458 = vpop.permute.xlu0 %1457
        %1459 = vrot.lane.b32.xlu0 %v1428, 64
        %v1460 = vpop.permute.xlu0 %1459
        %1469 = vrot.lane.b32.xlu0 %v1429, 96
        %v1470 = vpop.permute.xlu0 %1469
        %1471 = vrot.lane.b32.xlu0 %v1430, 96
        %v1472 = vpop.permute.xlu0 %1471
        %1473 = vrot.lane.b32.xlu0 %v1431, 96
        %v1474 = vpop.permute.xlu0 %1473
        %1475 = vrot.lane.b32.xlu0 %v1432, 96
        %v1476 = vpop.permute.xlu0 %1475
        %v1481 = vsel %vm604, %v1417, %v1438
        %v1482 = vsel %vm604, %v1418, %v1440
        %v1483 = vsel %vm604, %v1419, %v1442
        %v1484 = vsel %vm604, %v1420, %v1444
        %vm1485 = vcmask 523264
        %v1486 = vsel %vm1485, %v1481, %v1454
        %v1487 = vsel %vm1485, %v1482, %v1456
        %v1488 = vsel %vm1485, %v1483, %v1458
        %v1489 = vsel %vm1485, %v1484, %v1460
        %vm1490 = vcmask 785408
        %v1491 = vsel %vm1490, %v1486, %v1470
        %v1492 = vsel %vm1490, %v1487, %v1472
        %v1493 = vsel %vm1490, %v1488, %v1474
        %v1494 = vsel %vm1490, %v1489, %v1476
        %v1495 = vld [vmem:[#allocation10] sm:$0xff]
        %v1496 = vld [vmem:[#allocation10 + $0x8] sm:$0xff]
        %v1497 = vld [vmem:[#allocation10 + $0x10] sm:$0xff]
        %v1498 = vld [vmem:[#allocation10 + $0x18] sm:$0xff]
        %v1499 = vld [vmem:[#allocation10 + $0x20] sm:$0xff]
        %v1500 = vld [vmem:[#allocation10 + $0x28] sm:$0xff]
        %v1501 = vld [vmem:[#allocation10 + $0x30] sm:$0xff]
        %v1502 = vld [vmem:[#allocation10 + $0x38] sm:$0xff]
        %v1503 = vld [vmem:[#allocation10 + $0x40] sm:$0xff]
        %v1504 = vld [vmem:[#allocation10 + $0x48] sm:$0xff]
        %v1505 = vld [vmem:[#allocation10 + $0x50] sm:$0xff]
        %v1506 = vld [vmem:[#allocation10 + $0x58] sm:$0xff]
        %v1507 = vld [vmem:[#allocation10 + $0x60] sm:$0xff]
        %v1508 = vld [vmem:[#allocation10 + $0x68] sm:$0xff]
        %v1509 = vld [vmem:[#allocation10 + $0x70] sm:$0xff]
        %v1510 = vld [vmem:[#allocation10 + $0x78] sm:$0xff]
        %v1511 = vld [vmem:[#allocation10 + $0x80] sm:$0xff]
        %v1512 = vld [vmem:[#allocation10 + $0x88] sm:$0xff]
        %v1513 = vld [vmem:[#allocation10 + $0x90] sm:$0xff]
        %v1514 = vld [vmem:[#allocation10 + $0x98] sm:$0xff]
        %v1515 = vld [vmem:[#allocation10 + $0xa0] sm:$0xff]
        %v1516 = vld [vmem:[#allocation10 + $0xa8] sm:$0xff]
        %v1517 = vld [vmem:[#allocation10 + $0xb0] sm:$0xff]
        %v1518 = vld [vmem:[#allocation10 + $0xb8] sm:$0xff]
        %v1519 = vld [vmem:[#allocation10 + $0xc0] sm:$0xff]
        %v1520 = vld [vmem:[#allocation10 + $0xc8] sm:$0xff]
        %v1521 = vld [vmem:[#allocation10 + $0xd0] sm:$0xff]
        %v1522 = vld [vmem:[#allocation10 + $0xd8] sm:$0xff]
        %v1523 = vld [vmem:[#allocation10 + $0xe0] sm:$0xff]
        %v1524 = vld [vmem:[#allocation10 + $0xe8] sm:$0xff]
        %v1525 = vld [vmem:[#allocation10 + $0xf0] sm:$0xff]
        %v1526 = vld [vmem:[#allocation10 + $0xf8] sm:$0xff]
        %v1527 = vld [vmem:[%s5] sm:$0x1]
        %v1529 = vperm.slane %v1527, 0
        %1531 = vmatpush.msra.mxu0 %v1510
        %1532 = vmatpush.msra.mxu0 %v1509
        %1533 = vmatpush.msra.mxu0 %v1508
        %1534 = vmatpush.msra.mxu0 %v1507
        %1535 = vmatpush.msra.mxu0 %v1506
        %1536 = vmatpush.msra.mxu0 %v1505
        %1537 = vmatpush.msra.mxu0 %v1504
        %1538 = vmatpush.msra.mxu0 %v1503
        %1539 = vmatpush.msra.mxu0 %v1502
        %1540 = vmatpush.msra.mxu0 %v1501
        %1541 = vmatpush.msra.mxu0 %v1500
        %1542 = vmatpush.msra.mxu0 %v1499
        %1543 = vmatpush.msra.mxu0 %v1498
        %1544 = vmatpush.msra.mxu0 %v1497
        %1545 = vmatpush.msra.mxu0 %v1496
        %1546 = vmatpush.msra.mxu0 %v1495
        %1547 = vmatmul.f32.gmra.mxu0 %v1491
        %v1548 = vpop.f32.mrf.mxu0
        %v1549 = vadd.f32 %v1529, %v1548
        %1550 = vmatmul.f32.gmra.mxu0 %v1492
        %v1551 = vpop.f32.mrf.mxu0
        %v1552 = vadd.f32 %v1529, %v1551
        %1553 = vmatmul.f32.gmra.mxu0 %v1493
        %v1554 = vpop.f32.mrf.mxu0
        %v1555 = vadd.f32 %v1529, %v1554
        %1556 = vmatmul.f32.gmra.mxu0 %v1494
        %v1557 = vpop.f32.mrf.mxu0
        %v1558 = vadd.f32 %v1529, %v1557
        %1559 = vdwg.mxu0
        %1560 = vmatpush.msra.mxu0 %v1526
        %1561 = vmatpush.msra.mxu0 %v1525
        %1562 = vmatpush.msra.mxu0 %v1524
        %1563 = vmatpush.msra.mxu0 %v1523
        %1564 = vmatpush.msra.mxu0 %v1522
        %1565 = vmatpush.msra.mxu0 %v1521
        %1566 = vmatpush.msra.mxu0 %v1520
        %1567 = vmatpush.msra.mxu0 %v1519
        %1568 = vmatpush.msra.mxu0 %v1518
        %1569 = vmatpush.msra.mxu0 %v1517
        %1570 = vmatpush.msra.mxu0 %v1516
        %1571 = vmatpush.msra.mxu0 %v1515
        %1572 = vmatpush.msra.mxu0 %v1514
        %1573 = vmatpush.msra.mxu0 %v1513
        %1574 = vmatpush.msra.mxu0 %v1512
        %1575 = vmatpush.msra.mxu0 %v1511
        %1576 = vmatmul.f32.gmra.mxu0 %v361
        %v1577 = vpop.f32.mrf.mxu0
        %v1578 = vadd.f32 %v1549, %v1577
        %1579 = vmatmul.f32.gmra.mxu0 %v362
        %v1580 = vpop.f32.mrf.mxu0
        %v1581 = vadd.f32 %v1552, %v1580
        %1582 = vmatmul.f32.gmra.mxu0 %v363
        %v1583 = vpop.f32.mrf.mxu0
        %v1584 = vadd.f32 %v1555, %v1583
        %1585 = vmatmul.f32.gmra.mxu0 %v364
        %v1586 = vpop.f32.mrf.mxu0
        %v1587 = vadd.f32 %v1558, %v1586
        %1588 = vdwg.mxu0
        %1589 = vst [vmem:[%s360] sm:$0xff] %v1578
        %1590 = vst [vmem:[%s360 + $0x8] sm:$0xff] %v1581
        %1591 = vst [vmem:[%s360 + $0x10] sm:$0xff] %v1584
        %1592 = vst [vmem:[%s360 + $0x18] sm:$0xff] %v1587
        %s1593 = sand.u32 %s171, 1
        %s1594 = scalar_lea.sflag [#allocation4], %s1593
        %s1595 = sand.u32 %s171, 1
        %s1596 = smul.addr %s1595, 32
        %s1597 = scalar_lea.vmem [#allocation11], %s1596
        // Predicated region
        $region65: #{tpu_custom_call.1} parent=43 // pred_check
          %p1598 = pneg %p181
        $region66: #{tpu_custom_call.1} parent=43 // pred_check_branch
          %1600 = sbr.rel (%p1598) target = $region68
        $region67: #{tpu_custom_call.1} parent=43 // pred_region
          %1602 = vsyncadd %s1594, 0
          %s1603 = smul.addr %s27, 4
          %s1604 = smul.addr %s1603, 8
          %s1605 = scalar_lea.hbm %s6, %s1604
          %s1606 = sshll.u32 %s1597, 4
          %s1607 = int_to_ptr.vmem [resolvable:$true] %s1606
          %s1608 = sshll.u32 %s1605, 4
          %s1609 = int_to_ptr.hbm [resolvable:$true] %s1608
          %1614 = dma.vmem_to_hbm [thread:$0]  %s1607, 512, %s1609, %s1594, 128, 128, 8
        $region68: #{tpu_custom_call.1} parent=43 // pred_fallthru
          _
      $region44: #{tpu_custom_call.1} parent=5 // pred_fallthru
        _
      %p1615 = scmp.le.s32.totalorder 2, %s22
      // Predicated region
      $region69: #{tpu_custom_call.1} parent=5 // pred_check
        %p1616 = pneg %p1615
      $region70: #{tpu_custom_call.1} parent=5 // pred_check_branch
        %1618 = sbr.rel (%p1616) target = $region72
      $region71: #{tpu_custom_call.1} parent=5 // pred_region
        %s1619 = ssub.s32 %s22, 2
        // Predicated region
        $region73: #{tpu_custom_call.1} parent=71 // pred_check
          %p1620 = pneg %p187
        $region74: #{tpu_custom_call.1} parent=71 // pred_check_branch
          %1622 = sbr.rel (%p1620) target = $region76
        $region75: #{tpu_custom_call.1} parent=71 // pred_region
          %s1623 = sand.u32 %s172, 1
          %s1624 = scalar_lea.sflag [#allocation4], %s1623
          %s1625 = sand.u32 %s172, 1
          %s1626 = smul.addr %s1625, 32
          %s1627 = scalar_lea.vmem [#allocation11], %s1626
          %1629 = dma.done %s1624, 512
        $region76: #{tpu_custom_call.1} parent=71 // pred_fallthru
          _
      $region72: #{tpu_custom_call.1} parent=5 // pred_fallthru
        _
    $region6: #{tpu_custom_call.1} parent=1 // loop_footer
      %s26 = sadd.s32 1, %s22
    $region7: #{tpu_custom_call.1} parent=1 // loop_footer_branch
      %21 = sbr.rel target = $region3
    $region8: #{tpu_custom_call.1} parent=1 // loop_exit
      _
    %1630 = vsyncpa [#allocation3], 1
    %s1631 = scalar_lea.sflag [#allocation3], 1
    %1632 = vsyncpa %s1631, 1
    %1633 = vsyncpa [#allocation6], 1
    %s1634 = scalar_lea.sflag [#allocation6], 1
    %1635 = vsyncpa %s1634, 1
    %1636 = vsyncpa [#allocation9], 1
    %1637 = vsyncpa [#allocation4], 1
    %s1638 = scalar_lea.sflag [#allocation4], 1
    %1639 = vsyncpa %s1638, 1

// kernel: tpu_custom_call.1
$region0: #{tpu_custom_call.1}
  #allocation0 [shape = 'u32[]', space=smem, size = 0x4, offset = 0x4, fixed_abs, tag = 'smem constant byte address 0x4 - core index']
  #allocation1 [shape = 'u32[72,128]{1,0:T(1,128)}', space=vmem, size = 0x9000, scoped, tag = 'internal scratch']
  %s0 = inlined_call_operand.hbm [shape: f32[2,32,128], index: 0, kind: input, shape index: {}]
  %s1 = inlined_call_operand.hbm [shape: f32[2,32,32], index: 1, kind: input, shape index: {}]
  %s2 = inlined_call_operand.hbm [shape: f32[128,384], index: 2, kind: input, shape index: {}]
  %s3 = inlined_call_operand.hbm [shape: f32[1,384], index: 3, kind: input, shape index: {}]
  %s4 = inlined_call_operand.hbm [shape: f32[256,128], index: 4, kind: input, shape index: {}]
  %s5 = inlined_call_operand.vmem [shape: f32[1,128], index: 5, kind: input, shape index: {}]
  %s6 = inlined_call_operand.hbm [shape: f32[2,32,128], index: 6, kind: output, shape index: {}]
  %s7 = sld [smem:[#allocation0]]
  $region77: #{tpu_custom_call.1} parent=0
    _
  %s9 = ssub.s32 1, %s7
  %s10 = scalar_select 0, %s9, %s7
  $region1: #{tpu_custom_call.1} parent=0
    #allocation2 [shape = 'u8[32768]{0}', space=vmem, size = 0x8000, scoped, tag = 'input window, operand 0']
    #allocation3 [shape = 's32[2]{0}', space=sflag, size = 0x8, scoped, tag = 'scoped memory for tpu_custom_call.1']
    #allocation4 [shape = 's32[2]{0}', space=sflag, size = 0x8, scoped, tag = 'scoped memory for tpu_custom_call.1']
    #allocation5 [shape = 'u8[32768]{0}', space=vmem, size = 0x8000, scoped, tag = 'input window, operand 1']
    #allocation6 [shape = 's32[2]{0}', space=sflag, size = 0x8, scoped, tag = 'scoped memory for tpu_custom_call.1']
    #allocation7 [shape = 'u8[196608]{0}', space=vmem, size = 0x30000, scoped, tag = 'input window, operand 2, single buffered']
    #allocation8 [shape = 'u8[1536]{0}', space=vmem, size = 0x800, scoped, tag = 'input window, operand 3, single buffered']
    #allocation9 [shape = 's32[1]{0}', space=sflag, size = 0x4, scoped, tag = 'scoped memory for tpu_custom_call.1']
    #allocation10 [shape = 'u8[131072]{0}', space=vmem, size = 0x20000, scoped, tag = 'input window, operand 4, single buffered']
    #allocation11 [shape = 'u8[32768]{0}', space=vmem, size = 0x8000, scoped, tag = 'output window, operand 0']
    %11 = vsyncpa [#allocation3], 0
    %s12 = scalar_lea.sflag [#allocation3], 1
    %13 = vsyncpa %s12, 0
    %14 = vsyncpa [#allocation6], 0
    %s15 = scalar_lea.sflag [#allocation6], 1
    %16 = vsyncpa %s15, 0
    %17 = vsyncpa [#allocation9], 0
    %18 = vsyncpa [#allocation4], 0
    %s19 = scalar_lea.sflag [#allocation4], 1
    %20 = vsyncpa %s19, 0
    loop: start=0, step=1, limit=4
    $region2: #{tpu_custom_call.1} parent=1 // loop_pre_header
      _
    $region3: #{tpu_custom_call.1} parent=1 // loop_header
      %s22 = sphi 0, %s26
      %p23 = scmp.ge.s32.totalorder %s22, 4
      %s32 = sphi 0, %s34
      %s35 = sphi 0, %s32
      %s36 = sphi 0, %s35
      %s52 = sphi 0, %s36
      %s58 = sphi 0, %s60
      %s61 = sphi 0, %s58
      %s62 = sphi 0, %s61
      %s78 = sphi 0, %s62
      %s82 = sphi 0, %s82
      %s84 = sphi 0, %s82
      %s85 = sphi 0, %s84
      %s99 = sphi 0, %s85
      %s103 = sphi 0, %s103
      %s105 = sphi 0, %s103
      %s106 = sphi 0, %s105
      %s120 = sphi 0, %s106
      %s124 = sphi 0, %s124
      %s126 = sphi 0, %s124
      %s127 = sphi 0, %s126
      %s141 = sphi 0, %s127
      %s145 = sphi 0, %s145
      %s147 = sphi 0, %s145
      %s148 = sphi 0, %s147
      %s162 = sphi 0, %s148
      %s168 = sphi 0, %s170
      %s171 = sphi 0, %s168
      %s172 = sphi 0, %s171
      %s188 = sphi 0, %s172
    $region4: #{tpu_custom_call.1} parent=1 // loop_header_branch
      %25 = sbr.rel (%p23) target = $region8
    $region5: #{tpu_custom_call.1} parent=1 // loop_body
      %s27 = ssub.s32 %s22, 1
      %s28 = ssub.s32 %s22, 2
      %s29 = sadd.s32 %s22, 1
      %s30 = ssub.s32 %s22, %s29
      %p31 = scmp.eq.s32.totalorder %s30, 0
      %s33 = sadd.s32 %s32, 1
      %s34 = scalar_select %p31, %s32, %s33
      %p37 = pneg %p31
      %p38 = scmp.eq.s32.totalorder %s22, 1
      %p39 = por %p37, %p38
      %p40 = scmp.ne.s32.totalorder %s32, %s35
      %p41 = scmp.eq.s32.totalorder %s22, 0
      %p42 = por %p40, %p41
      %p43 = scmp.ne.s32.totalorder %s32, %s35
      %p44 = scmp.eq.s32.totalorder %s27, 1
      %p45 = por %p43, %p44
      %p46 = scmp.ne.s32.totalorder %s35, %s36
      %p47 = scmp.eq.s32.totalorder %s27, 0
      %p48 = por %p46, %p47
      %p49 = scmp.ne.s32.totalorder %s35, %s36
      %p50 = scmp.eq.s32.totalorder %s28, 1
      %p51 = por %p49, %p50
      %p53 = scmp.ne.s32.totalorder %s36, %s52
      %p54 = scmp.eq.s32.totalorder %s28, 0
      %p55 = por %p53, %p54
      %s56 = ssub.s32 %s22, %s29
      %p57 = scmp.eq.s32.totalorder %s56, 0
      %s59 = sadd.s32 %s58, 1
      %s60 = scalar_select %p57, %s58, %s59
      %p63 = pneg %p57
      %p64 = scmp.eq.s32.totalorder %s22, 1
      %p65 = por %p63, %p64
      %p66 = scmp.ne.s32.totalorder %s58, %s61
      %p67 = scmp.eq.s32.totalorder %s22, 0
      %p68 = por %p66, %p67
      %p69 = scmp.ne.s32.totalorder %s58, %s61
      %p70 = scmp.eq.s32.totalorder %s27, 1
      %p71 = por %p69, %p70
      %p72 = scmp.ne.s32.totalorder %s61, %s62
      %p73 = scmp.eq.s32.totalorder %s27, 0
      %p74 = por %p72, %p73
      %p75 = scmp.ne.s32.totalorder %s61, %s62
      %p76 = scmp.eq.s32.totalorder %s28, 1
      %p77 = por %p75, %p76
      %p79 = scmp.ne.s32.totalorder %s62, %s78
      %p80 = scmp.eq.s32.totalorder %s28, 0
      %p81 = por %p79, %p80
      %s83 = sadd.s32 %s82, 1
      %p86 = scmp.eq.s32.totalorder %s22, 1
      %p87 = scmp.ne.s32.totalorder %s82, %s84
      %p88 = scmp.eq.s32.totalorder %s22, 0
      %p89 = por %p87, %p88
      %p90 = scmp.ne.s32.totalorder %s82, %s84
      %p91 = scmp.eq.s32.totalorder %s27, 1
      %p92 = por %p90, %p91
      %p93 = scmp.ne.s32.totalorder %s84, %s85
      %p94 = scmp.eq.s32.totalorder %s27, 0
      %p95 = por %p93, %p94
      %p96 = scmp.ne.s32.totalorder %s84, %s85
      %p97 = scmp.eq.s32.totalorder %s28, 1
      %p98 = por %p96, %p97
      %p100 = scmp.ne.s32.totalorder %s85, %s99
      %p101 = scmp.eq.s32.totalorder %s28, 0
      %p102 = por %p100, %p101
      %s104 = sadd.s32 %s103, 1
      %p107 = scmp.eq.s32.totalorder %s22, 1
      %p108 = scmp.ne.s32.totalorder %s103, %s105
      %p109 = scmp.eq.s32.totalorder %s22, 0
      %p110 = por %p108, %p109
      %p111 = scmp.ne.s32.totalorder %s103, %s105
      %p112 = scmp.eq.s32.totalorder %s27, 1
      %p113 = por %p111, %p112
      %p114 = scmp.ne.s32.totalorder %s105, %s106
      %p115 = scmp.eq.s32.totalorder %s27, 0
      %p116 = por %p114, %p115
      %p117 = scmp.ne.s32.totalorder %s105, %s106
      %p118 = scmp.eq.s32.totalorder %s28, 1
      %p119 = por %p117, %p118
      %p121 = scmp.ne.s32.totalorder %s106, %s120
      %p122 = scmp.eq.s32.totalorder %s28, 0
      %p123 = por %p121, %p122
      %s125 = sadd.s32 %s124, 1
      %p128 = scmp.eq.s32.totalorder %s22, 1
      %p129 = scmp.ne.s32.totalorder %s124, %s126
      %p130 = scmp.eq.s32.totalorder %s22, 0
      %p131 = por %p129, %p130
      %p132 = scmp.ne.s32.totalorder %s124, %s126
      %p133 = scmp.eq.s32.totalorder %s27, 1
      %p134 = por %p132, %p133
      %p135 = scmp.ne.s32.totalorder %s126, %s127
      %p136 = scmp.eq.s32.totalorder %s27, 0
      %p137 = por %p135, %p136
      %p138 = scmp.ne.s32.totalorder %s126, %s127
      %p139 = scmp.eq.s32.totalorder %s28, 1
      %p140 = por %p138, %p139
      %p142 = scmp.ne.s32.totalorder %s127, %s141
      %p143 = scmp.eq.s32.totalorder %s28, 0
      %p144 = por %p142, %p143
      %s146 = sadd.s32 %s145, 1
      %p149 = scmp.eq.s32.totalorder %s22, 1
      %p150 = scmp.ne.s32.totalorder %s145, %s147
      %p151 = scmp.eq.s32.totalorder %s22, 0
      %p152 = por %p150, %p151
      %p153 = scmp.ne.s32.totalorder %s145, %s147
      %p154 = scmp.eq.s32.totalorder %s27, 1
      %p155 = por %p153, %p154
      %p156 = scmp.ne.s32.totalorder %s147, %s148
      %p157 = scmp.eq.s32.totalorder %s27, 0
      %p158 = por %p156, %p157
      %p159 = scmp.ne.s32.totalorder %s147, %s148
      %p160 = scmp.eq.s32.totalorder %s28, 1
      %p161 = por %p159, %p160
      %p163 = scmp.ne.s32.totalorder %s148, %s162
      %p164 = scmp.eq.s32.totalorder %s28, 0
      %p165 = por %p163, %p164
      %s166 = ssub.s32 %s22, %s29
      %p167 = scmp.eq.s32.totalorder %s166, 0
      %s169 = sadd.s32 %s168, 1
      %s170 = scalar_select %p167, %s168, %s169
      %p173 = pneg %p167
      %p174 = scmp.eq.s32.totalorder %s22, 1
      %p175 = por %p173, %p174
      %p176 = scmp.ne.s32.totalorder %s168, %s171
      %p177 = scmp.eq.s32.totalorder %s22, 0
      %p178 = por %p176, %p177
      %p179 = scmp.ne.s32.totalorder %s168, %s171
      %p180 = scmp.eq.s32.totalorder %s27, 1
      %p181 = por %p179, %p180
      %p182 = scmp.ne.s32.totalorder %s171, %s172
      %p183 = scmp.eq.s32.totalorder %s27, 0
      %p184 = por %p182, %p183
      %p185 = scmp.ne.s32.totalorder %s171, %s172
      %p186 = scmp.eq.s32.totalorder %s28, 1
      %p187 = por %p185, %p186
      %p189 = scmp.ne.s32.totalorder %s172, %s188
      %p190 = scmp.eq.s32.totalorder %s28, 0
      %p191 = por %p189, %p190
      %p192 = scmp.le.s32.totalorder 1, %s22
      %p193 = scmp.lt.s32.totalorder %s22, 3
      %p194 = pnand %p192, %p193
      %p195 = pneg %p194
      // Predicated region
      $region9: #{tpu_custom_call.1} parent=5 // pred_check
        _
      $region10: #{tpu_custom_call.1} parent=5 // pred_check_branch
        %197 = sbr.rel (%p194) target = $region12
      $region11: #{tpu_custom_call.1} parent=5 // pred_region
        %s198 = ssub.s32 %s22, 1
        // Predicated region
        $region13: #{tpu_custom_call.1} parent=11 // pred_check
          %p199 = pneg %p95
        $region14: #{tpu_custom_call.1} parent=11 // pred_check_branch
          %201 = sbr.rel (%p199) target = $region16
        $region15: #{tpu_custom_call.1} parent=11 // pred_region
          %203 = vsyncadd [#allocation6], 0
          %s204 = sshll.u32 %s2, 4
          %s205 = int_to_ptr.hbm [resolvable:$true] %s204
          %s206 = sshll.u32 [#allocation7], 4
          %s207 = int_to_ptr.vmem [resolvable:$true] %s206
          %212 = dma.hbm_to_vmem [thread:$0]  %s205, 6144, %s207, [#allocation6], 384, 384, 24
        $region16: #{tpu_custom_call.1} parent=11 // pred_fallthru
          _
        // Predicated region
        $region17: #{tpu_custom_call.1} parent=11 // pred_check
          %p213 = pneg %p116
        $region18: #{tpu_custom_call.1} parent=11 // pred_check_branch
          %215 = sbr.rel (%p213) target = $region20
        $region19: #{tpu_custom_call.1} parent=11 // pred_region
          %217 = vsyncadd [#allocation9], 0
          %s219 = sshll.u32 %s3, 4
          %s220 = int_to_ptr.hbm [resolvable:$true] %s219
          %s221 = sshll.u32 [#allocation8], 4
          %s222 = int_to_ptr.vmem [resolvable:$true] %s221
          %224 = dma.hbm_to_vmem [thread:$0]  %s220, 48, %s222, [#allocation9]
        $region20: #{tpu_custom_call.1} parent=11 // pred_fallthru
          _
        // Predicated region
        $region21: #{tpu_custom_call.1} parent=11 // pred_check
          %p225 = pneg %p137
        $region22: #{tpu_custom_call.1} parent=11 // pred_check_branch
          %227 = sbr.rel (%p225) target = $region24
        $region23: #{tpu_custom_call.1} parent=11 // pred_region
          %229 = vsyncadd [#allocation9], 0
          %s230 = sshll.u32 %s4, 4
          %s231 = int_to_ptr.hbm [resolvable:$true] %s230
          %s232 = sshll.u32 [#allocation10], 4
          %s233 = int_to_ptr.vmem [resolvable:$true] %s232
          %238 = dma.hbm_to_vmem [thread:$0]  %s231, 4096, %s233, [#allocation9], 128, 128, 8
        $region24: #{tpu_custom_call.1} parent=11 // pred_fallthru
          _
        // Predicated region
        $region25: #{tpu_custom_call.1} parent=11 // pred_check
          %p239 = pneg %p158
        $region26: #{tpu_custom_call.1} parent=11 // pred_check_branch
          %241 = sbr.rel (%p239) target = $region28
        $region27: #{tpu_custom_call.1} parent=11 // pred_region
          _
        $region28: #{tpu_custom_call.1} parent=11 // pred_fallthru
          _
      $region12: #{tpu_custom_call.1} parent=5 // pred_fallthru
        _
      %p242 = scmp.lt.s32.totalorder %s22, 2
      // Predicated region
      $region29: #{tpu_custom_call.1} parent=5 // pred_check
        %p243 = pneg %p242
      $region30: #{tpu_custom_call.1} parent=5 // pred_check_branch
        %245 = sbr.rel (%p243) target = $region32
      $region31: #{tpu_custom_call.1} parent=5 // pred_region
        // Predicated region
        $region33: #{tpu_custom_call.1} parent=31 // pred_check
          %p246 = pneg %p42
        $region34: #{tpu_custom_call.1} parent=31 // pred_check_branch
          %248 = sbr.rel (%p246) target = $region36
        $region35: #{tpu_custom_call.1} parent=31 // pred_region
          %s249 = sand.u32 %s32, 1
          %s250 = scalar_lea.sflag [#allocation3], %s249
          %s251 = sand.u32 %s32, 1
          %s252 = smul.addr %s251, 32
          %s253 = scalar_lea.vmem [#allocation2], %s252
          %255 = vsyncadd %s250, 0
          %s256 = smul.addr %s22, 4
          %s257 = smul.addr %s256, 8
          %s258 = scalar_lea.hbm %s0, %s257
          %s259 = sshll.u32 %s258, 4
          %s260 = int_to_ptr.hbm [resolvable:$true] %s259
          %s261 = sshll.u32 %s253, 4
          %s262 = int_to_ptr.vmem [resolvable:$true] %s261
          %267 = dma.hbm_to_vmem [thread:$0]  %s260, 512, %s262, %s250, 128, 128, 8
        $region36: #{tpu_custom_call.1} parent=31 // pred_fallthru
          _
        // Predicated region
        $region37: #{tpu_custom_call.1} parent=31 // pred_check
          %p268 = pneg %p68
        $region38: #{tpu_custom_call.1} parent=31 // pred_check_branch
          %270 = sbr.rel (%p268) target = $region40
        $region39: #{tpu_custom_call.1} parent=31 // pred_region
          %s271 = sand.u32 %s22, 1
          %s272 = scalar_lea.sflag [#allocation6], %s271
          %s273 = sand.u32 %s58, 1
          %s274 = smul.addr %s273, 32
          %s275 = scalar_lea.vmem [#allocation5], %s274
          %277 = vsyncadd %s272, 0
          %s278 = smul.addr %s22, 4
          %s279 = smul.addr %s278, 8
          %s280 = scalar_lea.hbm %s1, %s279
          %s281 = sshll.u32 %s280, 4
          %s282 = int_to_ptr.hbm [resolvable:$true] %s281
          %s283 = sshll.u32 %s275, 4
          %s284 = int_to_ptr.vmem [resolvable:$true] %s283
          %289 = dma.hbm_to_vmem [thread:$0]  %s282, 512, %s284, %s272, 128, 128, 8
        $region40: #{tpu_custom_call.1} parent=31 // pred_fallthru
          _
      $region32: #{tpu_custom_call.1} parent=5 // pred_fallthru
        _
      %p290 = scmp.le.s32.totalorder 1, %s22
      %p291 = scmp.lt.s32.totalorder %s22, 3
      %p292 = pnand %p290, %p291
      %p293 = pneg %p292
      // Predicated region
      $region41: #{tpu_custom_call.1} parent=5 // pred_check
        _
      $region42: #{tpu_custom_call.1} parent=5 // pred_check_branch
        %295 = sbr.rel (%p292) target = $region44
      $region43: #{tpu_custom_call.1} parent=5 // pred_region
        %s296 = ssub.s32 %s22, 1
        %s297 = sand.u32 %s35, 1
        %s298 = scalar_lea.sflag [#allocation3], %s297
        %s299 = sand.u32 %s35, 1
        %s300 = smul.addr %s299, 32
        %s301 = scalar_lea.vmem [#allocation2], %s300
        // Predicated region
        $region45: #{tpu_custom_call.1} parent=43 // pred_check
          %p302 = pneg %p48
        $region46: #{tpu_custom_call.1} parent=43 // pred_check_branch
          %304 = sbr.rel (%p302) target = $region48
        $region47: #{tpu_custom_call.1} parent=43 // pred_region
          %306 = dma.done %s298, 512
        $region48: #{tpu_custom_call.1} parent=43 // pred_fallthru
          _
        %s307 = sand.u32 %s27, 1
        %s308 = scalar_lea.sflag [#allocation6], %s307
        %s309 = sand.u32 %s61, 1
        %s310 = smul.addr %s309, 32
        %s311 = scalar_lea.vmem [#allocation5], %s310
        // Predicated region
        $region49: #{tpu_custom_call.1} parent=43 // pred_check
          %p312 = pneg %p74
        $region50: #{tpu_custom_call.1} parent=43 // pred_check_branch
          %314 = sbr.rel (%p312) target = $region52
        $region51: #{tpu_custom_call.1} parent=43 // pred_region
          %316 = dma.done %s308, 512
        $region52: #{tpu_custom_call.1} parent=43 // pred_fallthru
          _
        // Predicated region
        $region53: #{tpu_custom_call.1} parent=43 // pred_check
          %p317 = pneg %p95
        $region54: #{tpu_custom_call.1} parent=43 // pred_check_branch
          %319 = sbr.rel (%p317) target = $region56
        $region55: #{tpu_custom_call.1} parent=43 // pred_region
          %321 = dma.done [#allocation6], 6144
        $region56: #{tpu_custom_call.1} parent=43 // pred_fallthru
          _
        // Predicated region
        $region57: #{tpu_custom_call.1} parent=43 // pred_check
          %p322 = pneg %p116
        $region58: #{tpu_custom_call.1} parent=43 // pred_check_branch
          %324 = sbr.rel (%p322) target = $region60
        $region59: #{tpu_custom_call.1} parent=43 // pred_region
          %326 = dma.done [#allocation9], 48
        $region60: #{tpu_custom_call.1} parent=43 // pred_fallthru
          _
        // Predicated region
        $region61: #{tpu_custom_call.1} parent=43 // pred_check
          %p327 = pneg %p137
        $region62: #{tpu_custom_call.1} parent=43 // pred_check_branch
          %329 = sbr.rel (%p327) target = $region64
        $region63: #{tpu_custom_call.1} parent=43 // pred_region
          %331 = dma.done [#allocation9], 4096
        $region64: #{tpu_custom_call.1} parent=43 // pred_fallthru
          _
        %s332 = sand.u32 %s35, 1
        %s333 = scalar_lea.sflag [#allocation3], %s332
        %s334 = sand.u32 %s35, 1
        %s335 = smul.addr %s334, 32
        %s336 = scalar_lea.vmem [#allocation2], %s335
        %p337 = pneg %p48
        %p338 = pneg %p45
        %s339 = sand.u32 %s27, 1
        %s340 = scalar_lea.sflag [#allocation6], %s339
        %s341 = sand.u32 %s61, 1
        %s342 = smul.addr %s341, 32
        %s343 = scalar_lea.vmem [#allocation5], %s342
        %p344 = pneg %p74
        %p345 = pneg %p71
        %p346 = pneg %p95
        %p347 = pneg %p92
        %p348 = pneg %p116
        %p349 = pneg %p113
        %p350 = pneg %p137
        %p351 = pneg %p134
        %p352 = pneg %p158
        %p353 = pneg %p155
        %p354 = pneg %p184
        %p355 = pneg %p181
        %s356 = sand.u32 %s171, 1
        %s357 = scalar_lea.sflag [#allocation4], %s356
        %s358 = sand.u32 %s171, 1
        %s359 = smul.addr %s358, 32
        %s360 = scalar_lea.vmem [#allocation11], %s359
        %v361 = vld [vmem:[%s301] sm:$0xff]
        %v362 = vld [vmem:[%s301 + $0x8] sm:$0xff]
        %v363 = vld [vmem:[%s301 + $0x10] sm:$0xff]
        %v364 = vld [vmem:[%s301 + $0x18] sm:$0xff]
        %v365 = vld [vmem:[#allocation7] sm:$0xff]
        %v366 = vld [vmem:[#allocation7 + $0x8] sm:$0xff]
        %v367 = vld [vmem:[#allocation7 + $0x10] sm:$0xff]
        %v368 = vld [vmem:[#allocation7 + $0x18] sm:$0xff]
        %v369 = vld [vmem:[#allocation7 + $0x20] sm:$0xff]
        %v370 = vld [vmem:[#allocation7 + $0x28] sm:$0xff]
        %v371 = vld [vmem:[#allocation7 + $0x30] sm:$0xff]
        %v372 = vld [vmem:[#allocation7 + $0x38] sm:$0xff]
        %v373 = vld [vmem:[#allocation7 + $0x40] sm:$0xff]
        %v374 = vld [vmem:[#allocation7 + $0x48] sm:$0xff]
        %v375 = vld [vmem:[#allocation7 + $0x50] sm:$0xff]
        %v376 = vld [vmem:[#allocation7 + $0x58] sm:$0xff]
        %v377 = vld [vmem:[#allocation7 + $0x60] sm:$0xff]
        %v378 = vld [vmem:[#allocation7 + $0x68] sm:$0xff]
        %v379 = vld [vmem:[#allocation7 + $0x70] sm:$0xff]
        %v380 = vld [vmem:[#allocation7 + $0x78] sm:$0xff]
        %v381 = vld [vmem:[#allocation7 + $0x80] sm:$0xff]
        %v382 = vld [vmem:[#allocation7 + $0x88] sm:$0xff]
        %v383 = vld [vmem:[#allocation7 + $0x90] sm:$0xff]
        %v384 = vld [vmem:[#allocation7 + $0x98] sm:$0xff]
        %v385 = vld [vmem:[#allocation7 + $0xa0] sm:$0xff]
        %v386 = vld [vmem:[#allocation7 + $0xa8] sm:$0xff]
        %v387 = vld [vmem:[#allocation7 + $0xb0] sm:$0xff]
        %v388 = vld [vmem:[#allocation7 + $0xb8] sm:$0xff]
        %v389 = vld [vmem:[#allocation7 + $0xc0] sm:$0xff]
        %v390 = vld [vmem:[#allocation7 + $0xc8] sm:$0xff]
        %v391 = vld [vmem:[#allocation7 + $0xd0] sm:$0xff]
        %v392 = vld [vmem:[#allocation7 + $0xd8] sm:$0xff]
        %v393 = vld [vmem:[#allocation7 + $0xe0] sm:$0xff]
        %v394 = vld [vmem:[#allocation7 + $0xe8] sm:$0xff]
        %v395 = vld [vmem:[#allocation7 + $0xf0] sm:$0xff]
        %v396 = vld [vmem:[#allocation7 + $0xf8] sm:$0xff]
        %v397 = vld [vmem:[#allocation7 + $0x100] sm:$0xff]
        %v398 = vld [vmem:[#allocation7 + $0x108] sm:$0xff]
        %v399 = vld [vmem:[#allocation7 + $0x110] sm:$0xff]
        %v400 = vld [vmem:[#allocation7 + $0x118] sm:$0xff]
        %v401 = vld [vmem:[#allocation7 + $0x120] sm:$0xff]
        %v402 = vld [vmem:[#allocation7 + $0x128] sm:$0xff]
        %v403 = vld [vmem:[#allocation7 + $0x130] sm:$0xff]
        %v404 = vld [vmem:[#allocation7 + $0x138] sm:$0xff]
        %v405 = vld [vmem:[#allocation7 + $0x140] sm:$0xff]
        %v406 = vld [vmem:[#allocation7 + $0x148] sm:$0xff]
        %v407 = vld [vmem:[#allocation7 + $0x150] sm:$0xff]
        %v408 = vld [vmem:[#allocation7 + $0x158] sm:$0xff]
        %v409 = vld [vmem:[#allocation7 + $0x160] sm:$0xff]
        %v410 = vld [vmem:[#allocation7 + $0x168] sm:$0xff]
        %v411 = vld [vmem:[#allocation7 + $0x170] sm:$0xff]
        %v412 = vld [vmem:[#allocation7 + $0x178] sm:$0xff]
        %v413 = vld [vmem:[#allocation8] sm:$0x7]
        %v415 = vperm.slane %v413, 0
        %v416 = vperm.slane %v413, 1
        %v417 = vperm.slane %v413, 2
        %421 = vmatpush.msra.mxu0 %v410
        %422 = vmatpush.msra.mxu0 %v407
        %423 = vmatpush.msra.mxu0 %v404
        %424 = vmatpush.msra.mxu0 %v401
        %425 = vmatpush.msra.mxu0 %v398
        %426 = vmatpush.msra.mxu0 %v395
        %427 = vmatpush.msra.mxu0 %v392
        %428 = vmatpush.msra.mxu0 %v389
        %429 = vmatpush.msra.mxu0 %v386
        %430 = vmatpush.msra.mxu0 %v383
        %431 = vmatpush.msra.mxu0 %v380
        %432 = vmatpush.msra.mxu0 %v377
        %433 = vmatpush.msra.mxu0 %v374
        %434 = vmatpush.msra.mxu0 %v371
        %435 = vmatpush.msra.mxu0 %v368
        %436 = vmatpush.msra.mxu0 %v365
        %437 = vmatmul.f32.gmra.mxu0 %v361
        %v438 = vpop.f32.mrf.mxu0
        %v439 = vadd.f32 %v415, %v438
        %440 = vmatmul.f32.gmra.mxu0 %v362
        %v441 = vpop.f32.mrf.mxu0
        %v442 = vadd.f32 %v415, %v441
        %443 = vmatmul.f32.gmra.mxu0 %v363
        %v444 = vpop.f32.mrf.mxu0
        %v445 = vadd.f32 %v415, %v444
        %446 = vmatmul.f32.gmra.mxu0 %v364
        %v447 = vpop.f32.mrf.mxu0
        %v448 = vadd.f32 %v415, %v447
        %449 = vdwg.mxu0
        %450 = vmatpush.msra.mxu0 %v411
        %451 = vmatpush.msra.mxu0 %v408
        %452 = vmatpush.msra.mxu0 %v405
        %453 = vmatpush.msra.mxu0 %v402
        %454 = vmatpush.msra.mxu0 %v399
        %455 = vmatpush.msra.mxu0 %v396
        %456 = vmatpush.msra.mxu0 %v393
        %457 = vmatpush.msra.mxu0 %v390
        %458 = vmatpush.msra.mxu0 %v387
        %459 = vmatpush.msra.mxu0 %v384
        %460 = vmatpush.msra.mxu0 %v381
        %461 = vmatpush.msra.mxu0 %v378
        %462 = vmatpush.msra.mxu0 %v375
        %463 = vmatpush.msra.mxu0 %v372
        %464 = vmatpush.msra.mxu0 %v369
        %465 = vmatpush.msra.mxu0 %v366
        %466 = vmatmul.f32.gmra.mxu0 %v361
        %v467 = vpop.f32.mrf.mxu0
        %v468 = vadd.f32 %v416, %v467
        %469 = vmatmul.f32.gmra.mxu0 %v362
        %v470 = vpop.f32.mrf.mxu0
        %v471 = vadd.f32 %v416, %v470
        %472 = vmatmul.f32.gmra.mxu0 %v363
        %v473 = vpop.f32.mrf.mxu0
        %v474 = vadd.f32 %v416, %v473
        %475 = vmatmul.f32.gmra.mxu0 %v364
        %v476 = vpop.f32.mrf.mxu0
        %v477 = vadd.f32 %v416, %v476
        %478 = vdwg.mxu0
        %479 = vmatpush.msra.mxu0 %v412
        %480 = vmatpush.msra.mxu0 %v409
        %481 = vmatpush.msra.mxu0 %v406
        %482 = vmatpush.msra.mxu0 %v403
        %483 = vmatpush.msra.mxu0 %v400
        %484 = vmatpush.msra.mxu0 %v397
        %485 = vmatpush.msra.mxu0 %v394
        %486 = vmatpush.msra.mxu0 %v391
        %487 = vmatpush.msra.mxu0 %v388
        %488 = vmatpush.msra.mxu0 %v385
        %489 = vmatpush.msra.mxu0 %v382
        %490 = vmatpush.msra.mxu0 %v379
        %491 = vmatpush.msra.mxu0 %v376
        %492 = vmatpush.msra.mxu0 %v373
        %493 = vmatpush.msra.mxu0 %v370
        %494 = vmatpush.msra.mxu0 %v367
        %495 = vmatmul.f32.gmra.mxu0 %v361
        %v496 = vpop.f32.mrf.mxu0
        %v497 = vadd.f32 %v417, %v496
        %498 = vmatmul.f32.gmra.mxu0 %v362
        %v499 = vpop.f32.mrf.mxu0
        %v500 = vadd.f32 %v417, %v499
        %501 = vmatmul.f32.gmra.mxu0 %v363
        %v502 = vpop.f32.mrf.mxu0
        %v503 = vadd.f32 %v417, %v502
        %504 = vmatmul.f32.gmra.mxu0 %v364
        %v505 = vpop.f32.mrf.mxu0
        %v506 = vadd.f32 %v417, %v505
        %507 = vdwg.mxu0
        %512 = vrot.lane.b32.xlu0 %v439, 96
        %v513 = vpop.permute.xlu0 %512
        %514 = vrot.lane.b32.xlu0 %v442, 96
        %v515 = vpop.permute.xlu0 %514
        %516 = vrot.lane.b32.xlu0 %v445, 96
        %v517 = vpop.permute.xlu0 %516
        %518 = vrot.lane.b32.xlu0 %v448, 96
        %v519 = vpop.permute.xlu0 %518
        %520 = vrot.lane.b32.xlu0 %v439, 64
        %v521 = vpop.permute.xlu0 %520
        %522 = vrot.lane.b32.xlu0 %v442, 64
        %v523 = vpop.permute.xlu0 %522
        %524 = vrot.lane.b32.xlu0 %v445, 64
        %v525 = vpop.permute.xlu0 %524
        %526 = vrot.lane.b32.xlu0 %v448, 64
        %v527 = vpop.permute.xlu0 %526
        %528 = vrot.lane.b32.xlu0 %v439, 32
        %v529 = vpop.permute.xlu0 %528
        %530 = vrot.lane.b32.xlu0 %v442, 32
        %v531 = vpop.permute.xlu0 %530
        %532 = vrot.lane.b32.xlu0 %v445, 32
        %v533 = vpop.permute.xlu0 %532
        %534 = vrot.lane.b32.xlu0 %v448, 32
        %v535 = vpop.permute.xlu0 %534
        %540 = vrot.lane.b32.xlu0 %v468, 96
        %v541 = vpop.permute.xlu0 %540
        %542 = vrot.lane.b32.xlu0 %v471, 96
        %v543 = vpop.permute.xlu0 %542
        %544 = vrot.lane.b32.xlu0 %v474, 96
        %v545 = vpop.permute.xlu0 %544
        %546 = vrot.lane.b32.xlu0 %v477, 96
        %v547 = vpop.permute.xlu0 %546
        %548 = vrot.lane.b32.xlu0 %v468, 64
        %v549 = vpop.permute.xlu0 %548
        %550 = vrot.lane.b32.xlu0 %v471, 64
        %v551 = vpop.permute.xlu0 %550
        %552 = vrot.lane.b32.xlu0 %v474, 64
        %v553 = vpop.permute.xlu0 %552
        %554 = vrot.lane.b32.xlu0 %v477, 64
        %v555 = vpop.permute.xlu0 %554
        %556 = vrot.lane.b32.xlu0 %v468, 32
        %v557 = vpop.permute.xlu0 %556
        %558 = vrot.lane.b32.xlu0 %v471, 32
        %v559 = vpop.permute.xlu0 %558
        %560 = vrot.lane.b32.xlu0 %v474, 32
        %v561 = vpop.permute.xlu0 %560
        %562 = vrot.lane.b32.xlu0 %v477, 32
        %v563 = vpop.permute.xlu0 %562
        %568 = vrot.lane.b32.xlu0 %v497, 96
        %v569 = vpop.permute.xlu0 %568
        %570 = vrot.lane.b32.xlu0 %v500, 96
        %v571 = vpop.permute.xlu0 %570
        %572 = vrot.lane.b32.xlu0 %v503, 96
        %v573 = vpop.permute.xlu0 %572
        %574 = vrot.lane.b32.xlu0 %v506, 96
        %v575 = vpop.permute.xlu0 %574
        %580 = vrot.lane.b32.xlu0 %v497, 64
        %v581 = vpop.permute.xlu0 %580
        %582 = vrot.lane.b32.xlu0 %v500, 64
        %v583 = vpop.permute.xlu0 %582
        %584 = vrot.lane.b32.xlu0 %v503, 64
        %v585 = vpop.permute.xlu0 %584
        %586 = vrot.lane.b32.xlu0 %v506, 64
        %v587 = vpop.permute.xlu0 %586
        %592 = vrot.lane.b32.xlu0 %v497, 32
        %v593 = vpop.permute.xlu0 %592
        %594 = vrot.lane.b32.xlu0 %v500, 32
        %v595 = vpop.permute.xlu0 %594
        %596 = vrot.lane.b32.xlu0 %v503, 32
        %v597 = vpop.permute.xlu0 %596
        %598 = vrot.lane.b32.xlu0 %v506, 32
        %v599 = vpop.permute.xlu0 %598
        %vm604 = vcmask 261120
        %v605 = vsel %vm604, %v439, 0
        %v607 = vsel %vm604, %v442, 0
        %v609 = vsel %vm604, %v445, 0
        %v611 = vsel %vm604, %v448, 0
        %v613 = vsel %vm604, %v468, 0
        %v615 = vsel %vm604, %v471, 0
        %v617 = vsel %vm604, %v474, 0
        %v619 = vsel %vm604, %v477, 0
        %621 = vmatpush.xpose.msra.mxu0 0.0
        %622 = vmatpush.xpose.msra.mxu0 0.0
        %623 = vmatpush.xpose.msra.mxu0 0.0
        %624 = vmatpush.xpose.msra.mxu0 0.0
        %625 = vmatpush.xpose.msra.mxu0 0.0
        %626 = vmatpush.xpose.msra.mxu0 0.0
        %627 = vmatpush.xpose.msra.mxu0 0.0
        %628 = vmatpush.xpose.msra.mxu0 0.0
        %629 = vmatpush.xpose.msra.mxu0 0.0
        %630 = vmatpush.xpose.msra.mxu0 0.0
        %631 = vmatpush.xpose.msra.mxu0 0.0
        %632 = vmatpush.xpose.msra.mxu0 0.0
        %633 = vmatpush.xpose.msra.mxu0 %v619
        %634 = vmatpush.xpose.msra.mxu0 %v617
        %635 = vmatpush.xpose.msra.mxu0 %v615
        %636 = vmatpush.xpose.msra.mxu0 %v613
        %637 = vmatmul.f32.gmra.mxu0 %v605
        %v638 = vpop.f32.mrf.mxu0
        %v639 = vadd.f32 0.0, %v638
        %640 = vmatmul.f32.gmra.mxu0 %v607
        %v641 = vpop.f32.mrf.mxu0
        %v642 = vadd.f32 0.0, %v641
        %643 = vmatmul.f32.gmra.mxu0 %v609
        %v644 = vpop.f32.mrf.mxu0
        %v645 = vadd.f32 0.0, %v644
        %646 = vmatmul.f32.gmra.mxu0 %v611
        %v647 = vpop.f32.mrf.mxu0
        %v648 = vadd.f32 0.0, %v647
        %649 = vdwg.mxu0
        %v650 = vsel %vm604, %v513, 0
        %v652 = vsel %vm604, %v515, 0
        %v654 = vsel %vm604, %v517, 0
        %v656 = vsel %vm604, %v519, 0
        %v658 = vsel %vm604, %v541, 0
        %v660 = vsel %vm604, %v543, 0
        %v662 = vsel %vm604, %v545, 0
        %v664 = vsel %vm604, %v547, 0
        %666 = vmatpush.xpose.msra.mxu0 0.0
        %667 = vmatpush.xpose.msra.mxu0 0.0
        %668 = vmatpush.xpose.msra.mxu0 0.0
        %669 = vmatpush.xpose.msra.mxu0 0.0
        %670 = vmatpush.xpose.msra.mxu0 0.0
        %671 = vmatpush.xpose.msra.mxu0 0.0
        %672 = vmatpush.xpose.msra.mxu0 0.0
        %673 = vmatpush.xpose.msra.mxu0 0.0
        %674 = vmatpush.xpose.msra.mxu0 0.0
        %675 = vmatpush.xpose.msra.mxu0 0.0
        %676 = vmatpush.xpose.msra.mxu0 0.0
        %677 = vmatpush.xpose.msra.mxu0 0.0
        %678 = vmatpush.xpose.msra.mxu0 %v664
        %679 = vmatpush.xpose.msra.mxu0 %v662
        %680 = vmatpush.xpose.msra.mxu0 %v660
        %681 = vmatpush.xpose.msra.mxu0 %v658
        %682 = vmatmul.f32.gmra.mxu0 %v650
        %v683 = vpop.f32.mrf.mxu0
        %v684 = vadd.f32 0.0, %v683
        %685 = vmatmul.f32.gmra.mxu0 %v652
        %v686 = vpop.f32.mrf.mxu0
        %v687 = vadd.f32 0.0, %v686
        %688 = vmatmul.f32.gmra.mxu0 %v654
        %v689 = vpop.f32.mrf.mxu0
        %v690 = vadd.f32 0.0, %v689
        %691 = vmatmul.f32.gmra.mxu0 %v656
        %v692 = vpop.f32.mrf.mxu0
        %v693 = vadd.f32 0.0, %v692
        %694 = vdwg.mxu0
        %v695 = vsel %vm604, %v521, 0
        %v697 = vsel %vm604, %v523, 0
        %v699 = vsel %vm604, %v525, 0
        %v701 = vsel %vm604, %v527, 0
        %v703 = vsel %vm604, %v549, 0
        %v705 = vsel %vm604, %v551, 0
        %v707 = vsel %vm604, %v553, 0
        %v709 = vsel %vm604, %v555, 0
        %711 = vmatpush.xpose.msra.mxu0 0.0
        %712 = vmatpush.xpose.msra.mxu0 0.0
        %713 = vmatpush.xpose.msra.mxu0 0.0
        %714 = vmatpush.xpose.msra.mxu0 0.0
        %715 = vmatpush.xpose.msra.mxu0 0.0
        %716 = vmatpush.xpose.msra.mxu0 0.0
        %717 = vmatpush.xpose.msra.mxu0 0.0
        %718 = vmatpush.xpose.msra.mxu0 0.0
        %719 = vmatpush.xpose.msra.mxu0 0.0
        %720 = vmatpush.xpose.msra.mxu0 0.0
        %721 = vmatpush.xpose.msra.mxu0 0.0
        %722 = vmatpush.xpose.msra.mxu0 0.0
        %723 = vmatpush.xpose.msra.mxu0 %v709
        %724 = vmatpush.xpose.msra.mxu0 %v707
        %725 = vmatpush.xpose.msra.mxu0 %v705
        %726 = vmatpush.xpose.msra.mxu0 %v703
        %727 = vmatmul.f32.gmra.mxu0 %v695
        %v728 = vpop.f32.mrf.mxu0
        %v729 = vadd.f32 0.0, %v728
        %730 = vmatmul.f32.gmra.mxu0 %v697
        %v731 = vpop.f32.mrf.mxu0
        %v732 = vadd.f32 0.0, %v731
        %733 = vmatmul.f32.gmra.mxu0 %v699
        %v734 = vpop.f32.mrf.mxu0
        %v735 = vadd.f32 0.0, %v734
        %736 = vmatmul.f32.gmra.mxu0 %v701
        %v737 = vpop.f32.mrf.mxu0
        %v738 = vadd.f32 0.0, %v737
        %739 = vdwg.mxu0
        %v740 = vsel %vm604, %v529, 0
        %v742 = vsel %vm604, %v531, 0
        %v744 = vsel %vm604, %v533, 0
        %v746 = vsel %vm604, %v535, 0
        %v748 = vsel %vm604, %v557, 0
        %v750 = vsel %vm604, %v559, 0
        %v752 = vsel %vm604, %v561, 0
        %v754 = vsel %vm604, %v563, 0
        %756 = vmatpush.xpose.msra.mxu0 0.0
        %757 = vmatpush.xpose.msra.mxu0 0.0
        %758 = vmatpush.xpose.msra.mxu0 0.0
        %759 = vmatpush.xpose.msra.mxu0 0.0
        %760 = vmatpush.xpose.msra.mxu0 0.0
        %761 = vmatpush.xpose.msra.mxu0 0.0
        %762 = vmatpush.xpose.msra.mxu0 0.0
        %763 = vmatpush.xpose.msra.mxu0 0.0
        %764 = vmatpush.xpose.msra.mxu0 0.0
        %765 = vmatpush.xpose.msra.mxu0 0.0
        %766 = vmatpush.xpose.msra.mxu0 0.0
        %767 = vmatpush.xpose.msra.mxu0 0.0
        %768 = vmatpush.xpose.msra.mxu0 %v754
        %769 = vmatpush.xpose.msra.mxu0 %v752
        %770 = vmatpush.xpose.msra.mxu0 %v750
        %771 = vmatpush.xpose.msra.mxu0 %v748
        %772 = vmatmul.f32.gmra.mxu0 %v740
        %v773 = vpop.f32.mrf.mxu0
        %v774 = vadd.f32 0.0, %v773
        %775 = vmatmul.f32.gmra.mxu0 %v742
        %v776 = vpop.f32.mrf.mxu0
        %v777 = vadd.f32 0.0, %v776
        %778 = vmatmul.f32.gmra.mxu0 %v744
        %v779 = vpop.f32.mrf.mxu0
        %v780 = vadd.f32 0.0, %v779
        %781 = vmatmul.f32.gmra.mxu0 %v746
        %v782 = vpop.f32.mrf.mxu0
        %v783 = vadd.f32 0.0, %v782
        %784 = vdwg.mxu0
        %v785 = vsel %vm604, %v639, -inf
        %786 = vmax.xlane.f32.xlu0 %v785
        %v787 = vpop.xlane.xlu0 %786
        %v788 = vsel %vm604, %v642, -inf
        %789 = vmax.xlane.f32.xlu0 %v788
        %v790 = vpop.xlane.xlu0 %789
        %v791 = vsel %vm604, %v645, -inf
        %792 = vmax.xlane.f32.xlu0 %v791
        %v793 = vpop.xlane.xlu0 %792
        %v794 = vsel %vm604, %v648, -inf
        %795 = vmax.xlane.f32.xlu0 %v794
        %v796 = vpop.xlane.xlu0 %795
        %v797 = vsel %vm604, %v684, -inf
        %798 = vmax.xlane.f32.xlu0 %v797
        %v799 = vpop.xlane.xlu0 %798
        %v800 = vsel %vm604, %v687, -inf
        %801 = vmax.xlane.f32.xlu0 %v800
        %v802 = vpop.xlane.xlu0 %801
        %v803 = vsel %vm604, %v690, -inf
        %804 = vmax.xlane.f32.xlu0 %v803
        %v805 = vpop.xlane.xlu0 %804
        %v806 = vsel %vm604, %v693, -inf
        %807 = vmax.xlane.f32.xlu0 %v806
        %v808 = vpop.xlane.xlu0 %807
        %v809 = vsel %vm604, %v729, -inf
        %810 = vmax.xlane.f32.xlu0 %v809
        %v811 = vpop.xlane.xlu0 %810
        %v812 = vsel %vm604, %v732, -inf
        %813 = vmax.xlane.f32.xlu0 %v812
        %v814 = vpop.xlane.xlu0 %813
        %v815 = vsel %vm604, %v735, -inf
        %816 = vmax.xlane.f32.xlu0 %v815
        %v817 = vpop.xlane.xlu0 %816
        %v818 = vsel %vm604, %v738, -inf
        %819 = vmax.xlane.f32.xlu0 %v818
        %v820 = vpop.xlane.xlu0 %819
        %v821 = vsel %vm604, %v774, -inf
        %822 = vmax.xlane.f32.xlu0 %v821
        %v823 = vpop.xlane.xlu0 %822
        %v824 = vsel %vm604, %v777, -inf
        %825 = vmax.xlane.f32.xlu0 %v824
        %v826 = vpop.xlane.xlu0 %825
        %v827 = vsel %vm604, %v780, -inf
        %828 = vmax.xlane.f32.xlu0 %v827
        %v829 = vpop.xlane.xlu0 %828
        %v830 = vsel %vm604, %v783, -inf
        %831 = vmax.xlane.f32.xlu0 %v830
        %v832 = vpop.xlane.xlu0 %831
        %v833 = vsub.f32 %v639, %v787
        %v834 = vsub.f32 %v642, %v790
        %v835 = vsub.f32 %v645, %v793
        %v836 = vsub.f32 %v648, %v796
        %v837 = vsub.f32 %v684, %v799
        %v838 = vsub.f32 %v687, %v802
        %v839 = vsub.f32 %v690, %v805
        %v840 = vsub.f32 %v693, %v808
        %v841 = vsub.f32 %v729, %v811
        %v842 = vsub.f32 %v732, %v814
        %v843 = vsub.f32 %v735, %v817
        %v844 = vsub.f32 %v738, %v820
        %v845 = vsub.f32 %v774, %v823
        %v846 = vsub.f32 %v777, %v826
        %v847 = vsub.f32 %v780, %v829
        %v848 = vsub.f32 %v783, %v832
        %v849 = vmul.f32 %v833, 1.442695
        %v850 = vpow.pop %v849
        %v851 = vmul.f32 %v834, 1.442695
        %v852 = vpow.pop %v851
        %v853 = vmul.f32 %v835, 1.442695
        %v854 = vpow.pop %v853
        %v855 = vmul.f32 %v836, 1.442695
        %v856 = vpow.pop %v855
        %v857 = vmul.f32 %v837, 1.442695
        %v858 = vpow.pop %v857
        %v859 = vmul.f32 %v838, 1.442695
        %v860 = vpow.pop %v859
        %v861 = vmul.f32 %v839, 1.442695
        %v862 = vpow.pop %v861
        %v863 = vmul.f32 %v840, 1.442695
        %v864 = vpow.pop %v863
        %v865 = vmul.f32 %v841, 1.442695
        %v866 = vpow.pop %v865
        %v867 = vmul.f32 %v842, 1.442695
        %v868 = vpow.pop %v867
        %v869 = vmul.f32 %v843, 1.442695
        %v870 = vpow.pop %v869
        %v871 = vmul.f32 %v844, 1.442695
        %v872 = vpow.pop %v871
        %v873 = vmul.f32 %v845, 1.442695
        %v874 = vpow.pop %v873
        %v875 = vmul.f32 %v846, 1.442695
        %v876 = vpow.pop %v875
        %v877 = vmul.f32 %v847, 1.442695
        %v878 = vpow.pop %v877
        %v879 = vmul.f32 %v848, 1.442695
        %v880 = vpow.pop %v879
        %v881 = vld [vmem:[%s311] sm:$0xff]
        %v882 = vld [vmem:[%s311 + $0x8] sm:$0xff]
        %v883 = vld [vmem:[%s311 + $0x10] sm:$0xff]
        %v884 = vld [vmem:[%s311 + $0x18] sm:$0xff]
        %v885 = vmul.f32 %v850, %v881
        %v886 = vmul.f32 %v852, %v882
        %v887 = vmul.f32 %v854, %v883
        %v888 = vmul.f32 %v856, %v884
        %v889 = vmul.f32 %v858, %v881
        %v890 = vmul.f32 %v860, %v882
        %v891 = vmul.f32 %v862, %v883
        %v892 = vmul.f32 %v864, %v884
        %v893 = vmul.f32 %v866, %v881
        %v894 = vmul.f32 %v868, %v882
        %v895 = vmul.f32 %v870, %v883
        %v896 = vmul.f32 %v872, %v884
        %v897 = vmul.f32 %v874, %v881
        %v898 = vmul.f32 %v876, %v882
        %v899 = vmul.f32 %v878, %v883
        %v900 = vmul.f32 %v880, %v884
        %v901 = vsel %vm604, %v885, 0.0
        %902 = vadd.xlane.f32.xlu0 %v901
        %v903 = vpop.xlane.xlu0 %902
        %v904 = vsel %vm604, %v886, 0.0
        %905 = vadd.xlane.f32.xlu0 %v904
        %v906 = vpop.xlane.xlu0 %905
        %v907 = vsel %vm604, %v887, 0.0
        %908 = vadd.xlane.f32.xlu0 %v907
        %v909 = vpop.xlane.xlu0 %908
        %v910 = vsel %vm604, %v888, 0.0
        %911 = vadd.xlane.f32.xlu0 %v910
        %v912 = vpop.xlane.xlu0 %911
        %v913 = vsel %vm604, %v889, 0.0
        %914 = vadd.xlane.f32.xlu0 %v913
        %v915 = vpop.xlane.xlu0 %914
        %v916 = vsel %vm604, %v890, 0.0
        %917 = vadd.xlane.f32.xlu0 %v916
        %v918 = vpop.xlane.xlu0 %917
        %v919 = vsel %vm604, %v891, 0.0
        %920 = vadd.xlane.f32.xlu0 %v919
        %v921 = vpop.xlane.xlu0 %920
        %v922 = vsel %vm604, %v892, 0.0
        %923 = vadd.xlane.f32.xlu0 %v922
        %v924 = vpop.xlane.xlu0 %923
        %v925 = vsel %vm604, %v893, 0.0
        %926 = vadd.xlane.f32.xlu0 %v925
        %v927 = vpop.xlane.xlu0 %926
        %v928 = vsel %vm604, %v894, 0.0
        %929 = vadd.xlane.f32.xlu0 %v928
        %v930 = vpop.xlane.xlu0 %929
        %v931 = vsel %vm604, %v895, 0.0
        %932 = vadd.xlane.f32.xlu0 %v931
        %v933 = vpop.xlane.xlu0 %932
        %v934 = vsel %vm604, %v896, 0.0
        %935 = vadd.xlane.f32.xlu0 %v934
        %v936 = vpop.xlane.xlu0 %935
        %v937 = vsel %vm604, %v897, 0.0
        %938 = vadd.xlane.f32.xlu0 %v937
        %v939 = vpop.xlane.xlu0 %938
        %v940 = vsel %vm604, %v898, 0.0
        %941 = vadd.xlane.f32.xlu0 %v940
        %v942 = vpop.xlane.xlu0 %941
        %v943 = vsel %vm604, %v899, 0.0
        %944 = vadd.xlane.f32.xlu0 %v943
        %v945 = vpop.xlane.xlu0 %944
        %v946 = vsel %vm604, %v900, 0.0
        %947 = vadd.xlane.f32.xlu0 %v946
        %v948 = vpop.xlane.xlu0 %947
        %v949 = vsel %vm604, %v850, 0.0
        %950 = vadd.xlane.f32.xlu0 %v949
        %v951 = vpop.xlane.xlu0 %950
        %v952 = vsel %vm604, %v852, 0.0
        %953 = vadd.xlane.f32.xlu0 %v952
        %v954 = vpop.xlane.xlu0 %953
        %v955 = vsel %vm604, %v854, 0.0
        %956 = vadd.xlane.f32.xlu0 %v955
        %v957 = vpop.xlane.xlu0 %956
        %v958 = vsel %vm604, %v856, 0.0
        %959 = vadd.xlane.f32.xlu0 %v958
        %v960 = vpop.xlane.xlu0 %959
        %v961 = vsel %vm604, %v858, 0.0
        %962 = vadd.xlane.f32.xlu0 %v961
        %v963 = vpop.xlane.xlu0 %962
        %v964 = vsel %vm604, %v860, 0.0
        %965 = vadd.xlane.f32.xlu0 %v964
        %v966 = vpop.xlane.xlu0 %965
        %v967 = vsel %vm604, %v862, 0.0
        %968 = vadd.xlane.f32.xlu0 %v967
        %v969 = vpop.xlane.xlu0 %968
        %v970 = vsel %vm604, %v864, 0.0
        %971 = vadd.xlane.f32.xlu0 %v970
        %v972 = vpop.xlane.xlu0 %971
        %v973 = vsel %vm604, %v866, 0.0
        %974 = vadd.xlane.f32.xlu0 %v973
        %v975 = vpop.xlane.xlu0 %974
        %v976 = vsel %vm604, %v868, 0.0
        %977 = vadd.xlane.f32.xlu0 %v976
        %v978 = vpop.xlane.xlu0 %977
        %v979 = vsel %vm604, %v870, 0.0
        %980 = vadd.xlane.f32.xlu0 %v979
        %v981 = vpop.xlane.xlu0 %980
        %v982 = vsel %vm604, %v872, 0.0
        %983 = vadd.xlane.f32.xlu0 %v982
        %v984 = vpop.xlane.xlu0 %983
        %v985 = vsel %vm604, %v874, 0.0
        %986 = vadd.xlane.f32.xlu0 %v985
        %v987 = vpop.xlane.xlu0 %986
        %v988 = vsel %vm604, %v876, 0.0
        %989 = vadd.xlane.f32.xlu0 %v988
        %v990 = vpop.xlane.xlu0 %989
        %v991 = vsel %vm604, %v878, 0.0
        %992 = vadd.xlane.f32.xlu0 %v991
        %v993 = vpop.xlane.xlu0 %992
        %v994 = vsel %vm604, %v880, 0.0
        %995 = vadd.xlane.f32.xlu0 %v994
        %v996 = vpop.xlane.xlu0 %995
        %v997 = vmul.f32 %v951, 1e-15
        %v998 = vmul.f32 %v954, 1e-15
        %v999 = vmul.f32 %v957, 1e-15
        %v1000 = vmul.f32 %v960, 1e-15
        %v1001 = vmul.f32 %v963, 1e-15
        %v1002 = vmul.f32 %v966, 1e-15
        %v1003 = vmul.f32 %v969, 1e-15
        %v1004 = vmul.f32 %v972, 1e-15
        %v1005 = vmul.f32 %v975, 1e-15
        %v1006 = vmul.f32 %v978, 1e-15
        %v1007 = vmul.f32 %v981, 1e-15
        %v1008 = vmul.f32 %v984, 1e-15
        %v1009 = vmul.f32 %v987, 1e-15
        %v1010 = vmul.f32 %v990, 1e-15
        %v1011 = vmul.f32 %v993, 1e-15
        %v1012 = vmul.f32 %v996, 1e-15
        %v1013 = vadd.f32 %v903, %v997
        %v1014 = vadd.f32 %v906, %v998
        %v1015 = vadd.f32 %v909, %v999
        %v1016 = vadd.f32 %v912, %v1000
        %v1017 = vadd.f32 %v915, %v1001
        %v1018 = vadd.f32 %v918, %v1002
        %v1019 = vadd.f32 %v921, %v1003
        %v1020 = vadd.f32 %v924, %v1004
        %v1021 = vadd.f32 %v927, %v1005
        %v1022 = vadd.f32 %v930, %v1006
        %v1023 = vadd.f32 %v933, %v1007
        %v1024 = vadd.f32 %v936, %v1008
        %v1025 = vadd.f32 %v939, %v1009
        %v1026 = vadd.f32 %v942, %v1010
        %v1027 = vadd.f32 %v945, %v1011
        %v1028 = vadd.f32 %v948, %v1012
        %v1030 = vsel %vm604, %v885, 0
        %v1033 = vsel %vm604, %v886, 0
        %v1036 = vsel %vm604, %v887, 0
        %v1039 = vsel %vm604, %v888, 0
        %1041 = vmatpush.msra.mxu0 0.0
        %1042 = vmatpush.msra.mxu0 0.0
        %1043 = vmatpush.msra.mxu0 0.0
        %1044 = vmatpush.msra.mxu0 0.0
        %1045 = vmatpush.msra.mxu0 0.0
        %1046 = vmatpush.msra.mxu0 0.0
        %1047 = vmatpush.msra.mxu0 0.0
        %1048 = vmatpush.msra.mxu0 0.0
        %1049 = vmatpush.msra.mxu0 0.0
        %1050 = vmatpush.msra.mxu0 0.0
        %1051 = vmatpush.msra.mxu0 0.0
        %1052 = vmatpush.msra.mxu0 0.0
        %1053 = vmatpush.msra.mxu0 %v506
        %1054 = vmatpush.msra.mxu0 %v503
        %1055 = vmatpush.msra.mxu0 %v500
        %1056 = vmatpush.msra.mxu0 %v497
        %1057 = vmatmul.f32.gmra.mxu0 %v1030
        %v1058 = vpop.f32.mrf.mxu0
        %v1059 = vadd.f32 0.0, %v1058
        %1060 = vmatmul.f32.gmra.mxu0 %v1033
        %v1061 = vpop.f32.mrf.mxu0
        %v1062 = vadd.f32 0.0, %v1061
        %1063 = vmatmul.f32.gmra.mxu0 %v1036
        %v1064 = vpop.f32.mrf.mxu0
        %v1065 = vadd.f32 0.0, %v1064
        %1066 = vmatmul.f32.gmra.mxu0 %v1039
        %v1067 = vpop.f32.mrf.mxu0
        %v1068 = vadd.f32 0.0, %v1067
        %1069 = vdwg.mxu0
        %v1071 = vsel %vm604, %v889, 0
        %v1074 = vsel %vm604, %v890, 0
        %v1077 = vsel %vm604, %v891, 0
        %v1080 = vsel %vm604, %v892, 0
        %1082 = vmatpush.msra.mxu0 0.0
        %1083 = vmatpush.msra.mxu0 0.0
        %1084 = vmatpush.msra.mxu0 0.0
        %1085 = vmatpush.msra.mxu0 0.0
        %1086 = vmatpush.msra.mxu0 0.0
        %1087 = vmatpush.msra.mxu0 0.0
        %1088 = vmatpush.msra.mxu0 0.0
        %1089 = vmatpush.msra.mxu0 0.0
        %1090 = vmatpush.msra.mxu0 0.0
        %1091 = vmatpush.msra.mxu0 0.0
        %1092 = vmatpush.msra.mxu0 0.0
        %1093 = vmatpush.msra.mxu0 0.0
        %1094 = vmatpush.msra.mxu0 %v575
        %1095 = vmatpush.msra.mxu0 %v573
        %1096 = vmatpush.msra.mxu0 %v571
        %1097 = vmatpush.msra.mxu0 %v569
        %1098 = vmatmul.f32.gmra.mxu0 %v1071
        %v1099 = vpop.f32.mrf.mxu0
        %v1100 = vadd.f32 0.0, %v1099
        %1101 = vmatmul.f32.gmra.mxu0 %v1074
        %v1102 = vpop.f32.mrf.mxu0
        %v1103 = vadd.f32 0.0, %v1102
        %1104 = vmatmul.f32.gmra.mxu0 %v1077
        %v1105 = vpop.f32.mrf.mxu0
        %v1106 = vadd.f32 0.0, %v1105
        %1107 = vmatmul.f32.gmra.mxu0 %v1080
        %v1108 = vpop.f32.mrf.mxu0
        %v1109 = vadd.f32 0.0, %v1108
        %1110 = vdwg.mxu0
        %v1112 = vsel %vm604, %v893, 0
        %v1115 = vsel %vm604, %v894, 0
        %v1118 = vsel %vm604, %v895, 0
        %v1121 = vsel %vm604, %v896, 0
        %1123 = vmatpush.msra.mxu0 0.0
        %1124 = vmatpush.msra.mxu0 0.0
        %1125 = vmatpush.msra.mxu0 0.0
        %1126 = vmatpush.msra.mxu0 0.0
        %1127 = vmatpush.msra.mxu0 0.0
        %1128 = vmatpush.msra.mxu0 0.0
        %1129 = vmatpush.msra.mxu0 0.0
        %1130 = vmatpush.msra.mxu0 0.0
        %1131 = vmatpush.msra.mxu0 0.0
        %1132 = vmatpush.msra.mxu0 0.0
        %1133 = vmatpush.msra.mxu0 0.0
        %1134 = vmatpush.msra.mxu0 0.0
        %1135 = vmatpush.msra.mxu0 %v587
        %1136 = vmatpush.msra.mxu0 %v585
        %1137 = vmatpush.msra.mxu0 %v583
        %1138 = vmatpush.msra.mxu0 %v581
        %1139 = vmatmul.f32.gmra.mxu0 %v1112
        %v1140 = vpop.f32.mrf.mxu0
        %v1141 = vadd.f32 0.0, %v1140
        %1142 = vmatmul.f32.gmra.mxu0 %v1115
        %v1143 = vpop.f32.mrf.mxu0
        %v1144 = vadd.f32 0.0, %v1143
        %1145 = vmatmul.f32.gmra.mxu0 %v1118
        %v1146 = vpop.f32.mrf.mxu0
        %v1147 = vadd.f32 0.0, %v1146
        %1148 = vmatmul.f32.gmra.mxu0 %v1121
        %v1149 = vpop.f32.mrf.mxu0
        %v1150 = vadd.f32 0.0, %v1149
        %1151 = vdwg.mxu0
        %v1153 = vsel %vm604, %v897, 0
        %v1156 = vsel %vm604, %v898, 0
        %v1159 = vsel %vm604, %v899, 0
        %v1162 = vsel %vm604, %v900, 0
        %1164 = vmatpush.msra.mxu0 0.0
        %1165 = vmatpush.msra.mxu0 0.0
        %1166 = vmatpush.msra.mxu0 0.0
        %1167 = vmatpush.msra.mxu0 0.0
        %1168 = vmatpush.msra.mxu0 0.0
        %1169 = vmatpush.msra.mxu0 0.0
        %1170 = vmatpush.msra.mxu0 0.0
        %1171 = vmatpush.msra.mxu0 0.0
        %1172 = vmatpush.msra.mxu0 0.0
        %1173 = vmatpush.msra.mxu0 0.0
        %1174 = vmatpush.msra.mxu0 0.0
        %1175 = vmatpush.msra.mxu0 0.0
        %1176 = vmatpush.msra.mxu0 %v599
        %1177 = vmatpush.msra.mxu0 %v597
        %1178 = vmatpush.msra.mxu0 %v595
        %1179 = vmatpush.msra.mxu0 %v593
        %1180 = vmatmul.f32.gmra.mxu0 %v1153
        %v1181 = vpop.f32.mrf.mxu0
        %v1182 = vadd.f32 0.0, %v1181
        %1183 = vmatmul.f32.gmra.mxu0 %v1156
        %v1184 = vpop.f32.mrf.mxu0
        %v1185 = vadd.f32 0.0, %v1184
        %1186 = vmatmul.f32.gmra.mxu0 %v1159
        %v1187 = vpop.f32.mrf.mxu0
        %v1188 = vadd.f32 0.0, %v1187
        %1189 = vmatmul.f32.gmra.mxu0 %v1162
        %v1190 = vpop.f32.mrf.mxu0
        %v1191 = vadd.f32 0.0, %v1190
        %1192 = vdwg.mxu0
        %v1193 = vrcp.pop %v1013
        %v1194 = vmul.f32 %v1013, %v1193
        %v1195 = vsub.f32 1.0, %v1194
        %v1196 = vmul.f32 %v1193, %v1195
        %v1197 = vadd.f32 %v1193, %v1196
        %vm1198 = vweird.f32 %v1013
        %vm1199 = vweird.f32 %v1193
        %vm1200 = vmor %vm1198, %vm1199
        %v1201 = vsel %vm1200, %v1193, %v1197
        %v1202 = vand.u32 2147483647, %v1013
        %vm1203 = vcmp.eq.f32.partialorder %v1202, 8.507059e+37
        %v1204 = vand.u32 %v1013, 2147483648
        %v1205 = vor.u32 1.1754944e-38, %v1204
        %v1206 = vsel %vm1203, %v1205, %v1201
        %v1207 = vrcp.pop %v1014
        %v1208 = vmul.f32 %v1014, %v1207
        %v1209 = vsub.f32 1.0, %v1208
        %v1210 = vmul.f32 %v1207, %v1209
        %v1211 = vadd.f32 %v1207, %v1210
        %vm1212 = vweird.f32 %v1014
        %vm1213 = vweird.f32 %v1207
        %vm1214 = vmor %vm1212, %vm1213
        %v1215 = vsel %vm1214, %v1207, %v1211
        %v1216 = vand.u32 2147483647, %v1014
        %vm1217 = vcmp.eq.f32.partialorder %v1216, 8.507059e+37
        %v1218 = vand.u32 %v1014, 2147483648
        %v1219 = vor.u32 1.1754944e-38, %v1218
        %v1220 = vsel %vm1217, %v1219, %v1215
        %v1221 = vrcp.pop %v1015
        %v1222 = vmul.f32 %v1015, %v1221
        %v1223 = vsub.f32 1.0, %v1222
        %v1224 = vmul.f32 %v1221, %v1223
        %v1225 = vadd.f32 %v1221, %v1224
        %vm1226 = vweird.f32 %v1015
        %vm1227 = vweird.f32 %v1221
        %vm1228 = vmor %vm1226, %vm1227
        %v1229 = vsel %vm1228, %v1221, %v1225
        %v1230 = vand.u32 2147483647, %v1015
        %vm1231 = vcmp.eq.f32.partialorder %v1230, 8.507059e+37
        %v1232 = vand.u32 %v1015, 2147483648
        %v1233 = vor.u32 1.1754944e-38, %v1232
        %v1234 = vsel %vm1231, %v1233, %v1229
        %v1235 = vrcp.pop %v1016
        %v1236 = vmul.f32 %v1016, %v1235
        %v1237 = vsub.f32 1.0, %v1236
        %v1238 = vmul.f32 %v1235, %v1237
        %v1239 = vadd.f32 %v1235, %v1238
        %vm1240 = vweird.f32 %v1016
        %vm1241 = vweird.f32 %v1235
        %vm1242 = vmor %vm1240, %vm1241
        %v1243 = vsel %vm1242, %v1235, %v1239
        %v1244 = vand.u32 2147483647, %v1016
        %vm1245 = vcmp.eq.f32.partialorder %v1244, 8.507059e+37
        %v1246 = vand.u32 %v1016, 2147483648
        %v1247 = vor.u32 1.1754944e-38, %v1246
        %v1248 = vsel %vm1245, %v1247, %v1243
        %v1249 = vrcp.pop %v1017
        %v1250 = vmul.f32 %v1017, %v1249
        %v1251 = vsub.f32 1.0, %v1250
        %v1252 = vmul.f32 %v1249, %v1251
        %v1253 = vadd.f32 %v1249, %v1252
        %vm1254 = vweird.f32 %v1017
        %vm1255 = vweird.f32 %v1249
        %vm1256 = vmor %vm1254, %vm1255
        %v1257 = vsel %vm1256, %v1249, %v1253
        %v1258 = vand.u32 2147483647, %v1017
        %vm1259 = vcmp.eq.f32.partialorder %v1258, 8.507059e+37
        %v1260 = vand.u32 %v1017, 2147483648
        %v1261 = vor.u32 1.1754944e-38, %v1260
        %v1262 = vsel %vm1259, %v1261, %v1257
        %v1263 = vrcp.pop %v1018
        %v1264 = vmul.f32 %v1018, %v1263
        %v1265 = vsub.f32 1.0, %v1264
        %v1266 = vmul.f32 %v1263, %v1265
        %v1267 = vadd.f32 %v1263, %v1266
        %vm1268 = vweird.f32 %v1018
        %vm1269 = vweird.f32 %v1263
        %vm1270 = vmor %vm1268, %vm1269
        %v1271 = vsel %vm1270, %v1263, %v1267
        %v1272 = vand.u32 2147483647, %v1018
        %vm1273 = vcmp.eq.f32.partialorder %v1272, 8.507059e+37
        %v1274 = vand.u32 %v1018, 2147483648
        %v1275 = vor.u32 1.1754944e-38, %v1274
        %v1276 = vsel %vm1273, %v1275, %v1271
        %v1277 = vrcp.pop %v1019
        %v1278 = vmul.f32 %v1019, %v1277
        %v1279 = vsub.f32 1.0, %v1278
        %v1280 = vmul.f32 %v1277, %v1279
        %v1281 = vadd.f32 %v1277, %v1280
        %vm1282 = vweird.f32 %v1019
        %vm1283 = vweird.f32 %v1277
        %vm1284 = vmor %vm1282, %vm1283
        %v1285 = vsel %vm1284, %v1277, %v1281
        %v1286 = vand.u32 2147483647, %v1019
        %vm1287 = vcmp.eq.f32.partialorder %v1286, 8.507059e+37
        %v1288 = vand.u32 %v1019, 2147483648
        %v1289 = vor.u32 1.1754944e-38, %v1288
        %v1290 = vsel %vm1287, %v1289, %v1285
        %v1291 = vrcp.pop %v1020
        %v1292 = vmul.f32 %v1020, %v1291
        %v1293 = vsub.f32 1.0, %v1292
        %v1294 = vmul.f32 %v1291, %v1293
        %v1295 = vadd.f32 %v1291, %v1294
        %vm1296 = vweird.f32 %v1020
        %vm1297 = vweird.f32 %v1291
        %vm1298 = vmor %vm1296, %vm1297
        %v1299 = vsel %vm1298, %v1291, %v1295
        %v1300 = vand.u32 2147483647, %v1020
        %vm1301 = vcmp.eq.f32.partialorder %v1300, 8.507059e+37
        %v1302 = vand.u32 %v1020, 2147483648
        %v1303 = vor.u32 1.1754944e-38, %v1302
        %v1304 = vsel %vm1301, %v1303, %v1299
        %v1305 = vrcp.pop %v1021
        %v1306 = vmul.f32 %v1021, %v1305
        %v1307 = vsub.f32 1.0, %v1306
        %v1308 = vmul.f32 %v1305, %v1307
        %v1309 = vadd.f32 %v1305, %v1308
        %vm1310 = vweird.f32 %v1021
        %vm1311 = vweird.f32 %v1305
        %vm1312 = vmor %vm1310, %vm1311
        %v1313 = vsel %vm1312, %v1305, %v1309
        %v1314 = vand.u32 2147483647, %v1021
        %vm1315 = vcmp.eq.f32.partialorder %v1314, 8.507059e+37
        %v1316 = vand.u32 %v1021, 2147483648
        %v1317 = vor.u32 1.1754944e-38, %v1316
        %v1318 = vsel %vm1315, %v1317, %v1313
        %v1319 = vrcp.pop %v1022
        %v1320 = vmul.f32 %v1022, %v1319
        %v1321 = vsub.f32 1.0, %v1320
        %v1322 = vmul.f32 %v1319, %v1321
        %v1323 = vadd.f32 %v1319, %v1322
        %vm1324 = vweird.f32 %v1022
        %vm1325 = vweird.f32 %v1319
        %vm1326 = vmor %vm1324, %vm1325
        %v1327 = vsel %vm1326, %v1319, %v1323
        %v1328 = vand.u32 2147483647, %v1022
        %vm1329 = vcmp.eq.f32.partialorder %v1328, 8.507059e+37
        %v1330 = vand.u32 %v1022, 2147483648
        %v1331 = vor.u32 1.1754944e-38, %v1330
        %v1332 = vsel %vm1329, %v1331, %v1327
        %v1333 = vrcp.pop %v1023
        %v1334 = vmul.f32 %v1023, %v1333
        %v1335 = vsub.f32 1.0, %v1334
        %v1336 = vmul.f32 %v1333, %v1335
        %v1337 = vadd.f32 %v1333, %v1336
        %vm1338 = vweird.f32 %v1023
        %vm1339 = vweird.f32 %v1333
        %vm1340 = vmor %vm1338, %vm1339
        %v1341 = vsel %vm1340, %v1333, %v1337
        %v1342 = vand.u32 2147483647, %v1023
        %vm1343 = vcmp.eq.f32.partialorder %v1342, 8.507059e+37
        %v1344 = vand.u32 %v1023, 2147483648
        %v1345 = vor.u32 1.1754944e-38, %v1344
        %v1346 = vsel %vm1343, %v1345, %v1341
        %v1347 = vrcp.pop %v1024
        %v1348 = vmul.f32 %v1024, %v1347
        %v1349 = vsub.f32 1.0, %v1348
        %v1350 = vmul.f32 %v1347, %v1349
        %v1351 = vadd.f32 %v1347, %v1350
        %vm1352 = vweird.f32 %v1024
        %vm1353 = vweird.f32 %v1347
        %vm1354 = vmor %vm1352, %vm1353
        %v1355 = vsel %vm1354, %v1347, %v1351
        %v1356 = vand.u32 2147483647, %v1024
        %vm1357 = vcmp.eq.f32.partialorder %v1356, 8.507059e+37
        %v1358 = vand.u32 %v1024, 2147483648
        %v1359 = vor.u32 1.1754944e-38, %v1358
        %v1360 = vsel %vm1357, %v1359, %v1355
        %v1361 = vrcp.pop %v1025
        %v1362 = vmul.f32 %v1025, %v1361
        %v1363 = vsub.f32 1.0, %v1362
        %v1364 = vmul.f32 %v1361, %v1363
        %v1365 = vadd.f32 %v1361, %v1364
        %vm1366 = vweird.f32 %v1025
        %vm1367 = vweird.f32 %v1361
        %vm1368 = vmor %vm1366, %vm1367
        %v1369 = vsel %vm1368, %v1361, %v1365
        %v1370 = vand.u32 2147483647, %v1025
        %vm1371 = vcmp.eq.f32.partialorder %v1370, 8.507059e+37
        %v1372 = vand.u32 %v1025, 2147483648
        %v1373 = vor.u32 1.1754944e-38, %v1372
        %v1374 = vsel %vm1371, %v1373, %v1369
        %v1375 = vrcp.pop %v1026
        %v1376 = vmul.f32 %v1026, %v1375
        %v1377 = vsub.f32 1.0, %v1376
        %v1378 = vmul.f32 %v1375, %v1377
        %v1379 = vadd.f32 %v1375, %v1378
        %vm1380 = vweird.f32 %v1026
        %vm1381 = vweird.f32 %v1375
        %vm1382 = vmor %vm1380, %vm1381
        %v1383 = vsel %vm1382, %v1375, %v1379
        %v1384 = vand.u32 2147483647, %v1026
        %vm1385 = vcmp.eq.f32.partialorder %v1384, 8.507059e+37
        %v1386 = vand.u32 %v1026, 2147483648
        %v1387 = vor.u32 1.1754944e-38, %v1386
        %v1388 = vsel %vm1385, %v1387, %v1383
        %v1389 = vrcp.pop %v1027
        %v1390 = vmul.f32 %v1027, %v1389
        %v1391 = vsub.f32 1.0, %v1390
        %v1392 = vmul.f32 %v1389, %v1391
        %v1393 = vadd.f32 %v1389, %v1392
        %vm1394 = vweird.f32 %v1027
        %vm1395 = vweird.f32 %v1389
        %vm1396 = vmor %vm1394, %vm1395
        %v1397 = vsel %vm1396, %v1389, %v1393
        %v1398 = vand.u32 2147483647, %v1027
        %vm1399 = vcmp.eq.f32.partialorder %v1398, 8.507059e+37
        %v1400 = vand.u32 %v1027, 2147483648
        %v1401 = vor.u32 1.1754944e-38, %v1400
        %v1402 = vsel %vm1399, %v1401, %v1397
        %v1403 = vrcp.pop %v1028
        %v1404 = vmul.f32 %v1028, %v1403
        %v1405 = vsub.f32 1.0, %v1404
        %v1406 = vmul.f32 %v1403, %v1405
        %v1407 = vadd.f32 %v1403, %v1406
        %vm1408 = vweird.f32 %v1028
        %vm1409 = vweird.f32 %v1403
        %vm1410 = vmor %vm1408, %vm1409
        %v1411 = vsel %vm1410, %v1403, %v1407
        %v1412 = vand.u32 2147483647, %v1028
        %vm1413 = vcmp.eq.f32.partialorder %v1412, 8.507059e+37
        %v1414 = vand.u32 %v1028, 2147483648
        %v1415 = vor.u32 1.1754944e-38, %v1414
        %v1416 = vsel %vm1413, %v1415, %v1411
        %v1417 = vmul.f32 %v1059, %v1206
        %v1418 = vmul.f32 %v1062, %v1220
        %v1419 = vmul.f32 %v1065, %v1234
        %v1420 = vmul.f32 %v1068, %v1248
        %v1421 = vmul.f32 %v1100, %v1262
        %v1422 = vmul.f32 %v1103, %v1276
        %v1423 = vmul.f32 %v1106, %v1290
        %v1424 = vmul.f32 %v1109, %v1304
        %v1425 = vmul.f32 %v1141, %v1318
        %v1426 = vmul.f32 %v1144, %v1332
        %v1427 = vmul.f32 %v1147, %v1346
        %v1428 = vmul.f32 %v1150, %v1360
        %v1429 = vmul.f32 %v1182, %v1374
        %v1430 = vmul.f32 %v1185, %v1388
        %v1431 = vmul.f32 %v1188, %v1402
        %v1432 = vmul.f32 %v1191, %v1416
        %1437 = vrot.lane.b32.xlu0 %v1421, 32
        %v1438 = vpop.permute.xlu0 %1437
        %1439 = vrot.lane.b32.xlu0 %v1422, 32
        %v1440 = vpop.permute.xlu0 %1439
        %1441 = vrot.lane.b32.xlu0 %v1423, 32
        %v1442 = vpop.permute.xlu0 %1441
        %1443 = vrot.lane.b32.xlu0 %v1424, 32
        %v1444 = vpop.permute.xlu0 %1443
        %1453 = vrot.lane.b32.xlu0 %v1425, 64
        %v1454 = vpop.permute.xlu0 %1453
        %1455 = vrot.lane.b32.xlu0 %v1426, 64
        %v1456 = vpop.permute.xlu0 %1455
        %1457 = vrot.lane.b32.xlu0 %v1427, 64
        %v1458 = vpop.permute.xlu0 %1457
        %1459 = vrot.lane.b32.xlu0 %v1428, 64
        %v1460 = vpop.permute.xlu0 %1459
        %1469 = vrot.lane.b32.xlu0 %v1429, 96
        %v1470 = vpop.permute.xlu0 %1469
        %1471 = vrot.lane.b32.xlu0 %v1430, 96
        %v1472 = vpop.permute.xlu0 %1471
        %1473 = vrot.lane.b32.xlu0 %v1431, 96
        %v1474 = vpop.permute.xlu0 %1473
        %1475 = vrot.lane.b32.xlu0 %v1432, 96
        %v1476 = vpop.permute.xlu0 %1475
        %v1481 = vsel %vm604, %v1417, %v1438
        %v1482 = vsel %vm604, %v1418, %v1440
        %v1483 = vsel %vm604, %v1419, %v1442
        %v1484 = vsel %vm604, %v1420, %v1444
        %vm1485 = vcmask 523264
        %v1486 = vsel %vm1485, %v1481, %v1454
        %v1487 = vsel %vm1485, %v1482, %v1456
        %v1488 = vsel %vm1485, %v1483, %v1458
        %v1489 = vsel %vm1485, %v1484, %v1460
        %vm1490 = vcmask 785408
        %v1491 = vsel %vm1490, %v1486, %v1470
        %v1492 = vsel %vm1490, %v1487, %v1472
        %v1493 = vsel %vm1490, %v1488, %v1474
        %v1494 = vsel %vm1490, %v1489, %v1476
        %v1495 = vld [vmem:[#allocation10] sm:$0xff]
        %v1496 = vld [vmem:[#allocation10 + $0x8] sm:$0xff]
        %v1497 = vld [vmem:[#allocation10 + $0x10] sm:$0xff]
        %v1498 = vld [vmem:[#allocation10 + $0x18] sm:$0xff]
        %v1499 = vld [vmem:[#allocation10 + $0x20] sm:$0xff]
        %v1500 = vld [vmem:[#allocation10 + $0x28] sm:$0xff]
        %v1501 = vld [vmem:[#allocation10 + $0x30] sm:$0xff]
        %v1502 = vld [vmem:[#allocation10 + $0x38] sm:$0xff]
        %v1503 = vld [vmem:[#allocation10 + $0x40] sm:$0xff]
        %v1504 = vld [vmem:[#allocation10 + $0x48] sm:$0xff]
        %v1505 = vld [vmem:[#allocation10 + $0x50] sm:$0xff]
        %v1506 = vld [vmem:[#allocation10 + $0x58] sm:$0xff]
        %v1507 = vld [vmem:[#allocation10 + $0x60] sm:$0xff]
        %v1508 = vld [vmem:[#allocation10 + $0x68] sm:$0xff]
        %v1509 = vld [vmem:[#allocation10 + $0x70] sm:$0xff]
        %v1510 = vld [vmem:[#allocation10 + $0x78] sm:$0xff]
        %v1511 = vld [vmem:[#allocation10 + $0x80] sm:$0xff]
        %v1512 = vld [vmem:[#allocation10 + $0x88] sm:$0xff]
        %v1513 = vld [vmem:[#allocation10 + $0x90] sm:$0xff]
        %v1514 = vld [vmem:[#allocation10 + $0x98] sm:$0xff]
        %v1515 = vld [vmem:[#allocation10 + $0xa0] sm:$0xff]
        %v1516 = vld [vmem:[#allocation10 + $0xa8] sm:$0xff]
        %v1517 = vld [vmem:[#allocation10 + $0xb0] sm:$0xff]
        %v1518 = vld [vmem:[#allocation10 + $0xb8] sm:$0xff]
        %v1519 = vld [vmem:[#allocation10 + $0xc0] sm:$0xff]
        %v1520 = vld [vmem:[#allocation10 + $0xc8] sm:$0xff]
        %v1521 = vld [vmem:[#allocation10 + $0xd0] sm:$0xff]
        %v1522 = vld [vmem:[#allocation10 + $0xd8] sm:$0xff]
        %v1523 = vld [vmem:[#allocation10 + $0xe0] sm:$0xff]
        %v1524 = vld [vmem:[#allocation10 + $0xe8] sm:$0xff]
        %v1525 = vld [vmem:[#allocation10 + $0xf0] sm:$0xff]
        %v1526 = vld [vmem:[#allocation10 + $0xf8] sm:$0xff]
        %v1527 = vld [vmem:[%s5] sm:$0x1]
        %v1529 = vperm.slane %v1527, 0
        %1531 = vmatpush.msra.mxu0 %v1510
        %1532 = vmatpush.msra.mxu0 %v1509
        %1533 = vmatpush.msra.mxu0 %v1508
        %1534 = vmatpush.msra.mxu0 %v1507
        %1535 = vmatpush.msra.mxu0 %v1506
        %1536 = vmatpush.msra.mxu0 %v1505
        %1537 = vmatpush.msra.mxu0 %v1504
        %1538 = vmatpush.msra.mxu0 %v1503
        %1539 = vmatpush.msra.mxu0 %v1502
        %1540 = vmatpush.msra.mxu0 %v1501
        %1541 = vmatpush.msra.mxu0 %v1500
        %1542 = vmatpush.msra.mxu0 %v1499
        %1543 = vmatpush.msra.mxu0 %v1498
        %1544 = vmatpush.msra.mxu0 %v1497
        %1545 = vmatpush.msra.mxu0 %v1496
        %1546 = vmatpush.msra.mxu0 %v1495
        %1547 = vmatmul.f32.gmra.mxu0 %v1491
        %v1548 = vpop.f32.mrf.mxu0
        %v1549 = vadd.f32 %v1529, %v1548
        %1550 = vmatmul.f32.gmra.mxu0 %v1492
        %v1551 = vpop.f32.mrf.mxu0
        %v1552 = vadd.f32 %v1529, %v1551
        %1553 = vmatmul.f32.gmra.mxu0 %v1493
        %v1554 = vpop.f32.mrf.mxu0
        %v1555 = vadd.f32 %v1529, %v1554
        %1556 = vmatmul.f32.gmra.mxu0 %v1494
        %v1557 = vpop.f32.mrf.mxu0
        %v1558 = vadd.f32 %v1529, %v1557
        %1559 = vdwg.mxu0
        %1560 = vmatpush.msra.mxu0 %v1526
        %1561 = vmatpush.msra.mxu0 %v1525
        %1562 = vmatpush.msra.mxu0 %v1524
        %1563 = vmatpush.msra.mxu0 %v1523
        %1564 = vmatpush.msra.mxu0 %v1522
        %1565 = vmatpush.msra.mxu0 %v1521
        %1566 = vmatpush.msra.mxu0 %v1520
        %1567 = vmatpush.msra.mxu0 %v1519
        %1568 = vmatpush.msra.mxu0 %v1518
        %1569 = vmatpush.msra.mxu0 %v1517
        %1570 = vmatpush.msra.mxu0 %v1516
        %1571 = vmatpush.msra.mxu0 %v1515
        %1572 = vmatpush.msra.mxu0 %v1514
        %1573 = vmatpush.msra.mxu0 %v1513
        %1574 = vmatpush.msra.mxu0 %v1512
        %1575 = vmatpush.msra.mxu0 %v1511
        %1576 = vmatmul.f32.gmra.mxu0 %v361
        %v1577 = vpop.f32.mrf.mxu0
        %v1578 = vadd.f32 %v1549, %v1577
        %1579 = vmatmul.f32.gmra.mxu0 %v362
        %v1580 = vpop.f32.mrf.mxu0
        %v1581 = vadd.f32 %v1552, %v1580
        %1582 = vmatmul.f32.gmra.mxu0 %v363
        %v1583 = vpop.f32.mrf.mxu0
        %v1584 = vadd.f32 %v1555, %v1583
        %1585 = vmatmul.f32.gmra.mxu0 %v364
        %v1586 = vpop.f32.mrf.mxu0
        %v1587 = vadd.f32 %v1558, %v1586
        %1588 = vdwg.mxu0
        %1589 = vst [vmem:[%s360] sm:$0xff] %v1578
        %1590 = vst [vmem:[%s360 + $0x8] sm:$0xff] %v1581
        %1591 = vst [vmem:[%s360 + $0x10] sm:$0xff] %v1584
        %1592 = vst [vmem:[%s360 + $0x18] sm:$0xff] %v1587
        %s1593 = sand.u32 %s171, 1
        %s1594 = scalar_lea.sflag [#allocation4], %s1593
        %s1595 = sand.u32 %s171, 1
        %s1596 = smul.addr %s1595, 32
        %s1597 = scalar_lea.vmem [#allocation11], %s1596
        // Predicated region
        $region65: #{tpu_custom_call.1} parent=43 // pred_check
          %p1598 = pneg %p181
        $region66: #{tpu_custom_call.1} parent=43 // pred_check_branch
          %1600 = sbr.rel (%p1598) target = $region68
        $region67: #{tpu_custom_call.1} parent=43 // pred_region
          %1602 = vsyncadd %s1594, 0
          %s1603 = smul.addr %s27, 4
          %s1604 = smul.addr %s1603, 8
          %s1605 = scalar_lea.hbm %s6, %s1604
          %s1606 = sshll.u32 %s1597, 4
          %s1607 = int_to_ptr.vmem [resolvable:$true] %s1606
          %s1608 = sshll.u32 %s1605, 4
          %s1609 = int_to_ptr.hbm [resolvable:$true] %s1608
          %1614 = dma.vmem_to_hbm [thread:$0]  %s1607, 512, %s1609, %s1594, 128, 128, 8
        $region68: #{tpu_custom_call.1} parent=43 // pred_fallthru
          _
      $region44: #{tpu_custom_call.1} parent=5 // pred_fallthru
        _
      %p1615 = scmp.le.s32.totalorder 2, %s22
      // Predicated region
      $region69: #{tpu_custom_call.1} parent=5 // pred_check
        %p1616 = pneg %p1615
      $region70: #{tpu_custom_call.1} parent=5 // pred_check_branch
        %1618 = sbr.rel (%p1616) target = $region72
      $region71: #{tpu_custom_call.1} parent=5 // pred_region
        %s1619 = ssub.s32 %s22, 2
        // Predicated region
        $region73: #{tpu_custom_call.1} parent=71 // pred_check
          %p1620 = pneg %p187
        $region74: #{tpu_custom_call.1} parent=71 // pred_check_branch
          %1622 = sbr.rel (%p1620) target = $region76
        $region75: #{tpu_custom_call.1} parent=71 // pred_region
          %s1623 = sand.u32 %s172, 1
          %s1624 = scalar_lea.sflag [#allocation4], %s1623
          %s1625 = sand.u32 %s172, 1
          %s1626 = smul.addr %s1625, 32
          %s1627 = scalar_lea.vmem [#allocation11], %s1626
          %1629 = dma.done %s1624, 512
        $region76: #{tpu_custom_call.1} parent=71 // pred_fallthru
          _
      $region72: #{tpu_custom_call.1} parent=5 // pred_fallthru
        _
    $region6: #{tpu_custom_call.1} parent=1 // loop_footer
      %s26 = sadd.s32 1, %s22
    $region7: #{tpu_custom_call.1} parent=1 // loop_footer_branch
      %21 = sbr.rel target = $region3
    $region8: #{tpu_custom_call.1} parent=1 // loop_exit
      _
    %1630 = vsyncpa [#allocation3], 1
    %s1631 = scalar_lea.sflag [#allocation3], 1
    %1632 = vsyncpa %s1631, 1
    %1633 = vsyncpa [#allocation6], 1
    %s1634 = scalar_lea.sflag [#allocation6], 1
    %1635 = vsyncpa %s1634, 1
    %1636 = vsyncpa [#allocation9], 1
    %1637 = vsyncpa [#allocation4], 1
    %s1638 = scalar_lea.sflag [#allocation4], 1
    %1639 = vsyncpa %s1638, 1

</llo_original>
